<compile_context>
chip_gen: v7x
topology: tpu7x:2x2x1
jax: 0.10.0
libtpu: 0.0.40
codegen_flags: <defaults>
</compile_context>

<pallas_src>
import functools
import math

import jax
import jax.numpy as jnp
from jax.experimental import pallas as pl
from jax.experimental.pallas import tpu as pltpu


# ----------------------------- in-kernel helpers -----------------------------

def _erf(x):
    # torch.erf has no direct Mosaic lowering; high-accuracy (~1.2e-7)
    # Numerical-Recipes erfc polynomial from supported elementwise ops.
    # The single exp() goes to the EUP slot; the rest is a short VALU chain.
    a = jnp.abs(x)
    t = 1.0 / (1.0 + 0.5 * a)
    y = t * jnp.exp(
        -a * a - 1.26551223 + t * (1.00002368 + t * (0.37409196 + t * (
            0.09678418 + t * (-0.18628806 + t * (0.27886807 + t * (
                -1.13520398 + t * (1.48851587 + t * (
                    -0.82215223 + t * 0.17087277))))))))
    )
    return jnp.where(x >= 0.0, 1.0 - y, y - 1.0)


def _activation(x, act):
    if act == "gelu":
        # exact erf-GELU (matches the reference gelu), 1/sqrt(2) pre-folded.
        return x * 0.5 * (1.0 + _erf(x * 0.7071067811865476))
    elif act == "relu":
        return jnp.maximum(x, 0.0)
    elif act == "swish":
        return x * jax.nn.sigmoid(x)
    raise ValueError(act)


def _layernorm(x, w, b, eps=1e-12):
    # TF-style LayerNorm (eps inside sqrt), biased variance; rsqrt -> EUP.
    u = jnp.mean(x, axis=-1, keepdims=True)
    d = x - u
    s = jnp.mean(d * d, axis=-1, keepdims=True)
    return w * (d * jax.lax.rsqrt(s + eps)) + b


def _mm(a, b):
    return jax.lax.dot_general(a, b, (((1,), (0,)), ((), ())),
                               preferred_element_type=jnp.float32)


# --------------------------------- kernel ------------------------------------

def _encoder_kernel(x_ref, m_ref,
                    wq_ref, bq_ref, wk_ref, bk_ref, wv_ref, bv_ref,
                    wo_ref, bo_ref, g1_ref, be1_ref,
                    w1_ref, b1_ref, w2_ref, b2_ref, g2_ref, be2_ref,
                    o_ref, *, num_layers, num_heads, act, compute_dtype):
    S, H = x_ref.shape
    hd = H // num_heads
    scale = 1.0 / math.sqrt(hd)

    x = x_ref[...]                 # (S, H), f32
    mask = m_ref[...][None]        # (1, 1, S) additive mask, hoisted out of loop

    def cd(a):                     # matmul-input dtype (f32 or bf16); acc is f32
        return a.astype(compute_dtype)

    def layer_body(l, h):
        # ---- SelfAttention: head-batched QKV projections (batch dim = heads)
        hb = cd(jnp.broadcast_to(h, (num_heads, S, H)))            # (nh, S, H)
        q = jnp.einsum("nsk,nkd->nsd", hb, cd(wq_ref[l]),
                       preferred_element_type=jnp.float32) + bq_ref[l]
        k = jnp.einsum("nsk,nkd->nsd", hb, cd(wk_ref[l]),
                       preferred_element_type=jnp.float32) + bk_ref[l]
        v = jnp.einsum("nsk,nkd->nsd", hb, cd(wv_ref[l]),
                       preferred_element_type=jnp.float32) + bv_ref[l]
        q = q * scale                              # fold 1/sqrt(hd) into q

        # scores / softmax (f32), single batched matmul over all heads
        scores = jnp.einsum("nqd,nkd->nqk", cd(q), cd(k),
                            preferred_element_type=jnp.float32) + mask
        scores = scores - jnp.max(scores, axis=-1, keepdims=True)
        p = jnp.exp(scores)
        p = p * pl.reciprocal(jnp.sum(p, axis=-1, keepdims=True), approx=True)
        # attn_dropout: eval mode -> identity

        ctx = jnp.einsum("nqk,nkd->nqd", cd(p), cd(v),
                         preferred_element_type=jnp.float32)       # (nh, S, hd)

        # Output projection: head-batched matmul, summed over the untiled
        # leading head axis (no lane-axis concat / reshape needed).
        attn = jnp.sum(
            jnp.einsum("nsd,ndh->nsh", cd(ctx), cd(wo_ref[l]),
                       preferred_element_type=jnp.float32),
            axis=0) + bo_ref[l]
        # out_dropout: eval mode -> identity
        h1 = _layernorm(attn + h, g1_ref[l], be1_ref[l])

        # ---- Intermediate (FFN) ----
        inter = _activation(_mm(cd(h1), cd(w1_ref[l])) + b1_ref[l], act)
        ffn = _mm(cd(inter), cd(w2_ref[l])) + b2_ref[l]
        # dropout: eval mode -> identity
        return _layernorm(ffn + h1, g2_ref[l], be2_ref[l])

    out = jax.lax.fori_loop(0, num_layers, layer_body, x, unroll=True)
    o_ref[...] = out.astype(o_ref.dtype)


# --------------------------------- wrapper -----------------------------------

def _prepare_params(params, num_layers, num_heads):
    """Pre-split weights into head-major form and stack a leading layer axis.

    All Encoder layers are deepcopies of one initialized Layer, so the per-layer
    stacks are identical replicas here; a trained model would stack its distinct
    per-layer tensors in the same way.  This is pure-JAX layout plumbing.
    """
    (wq, bq, wk, bk, wv, bv, wo, bo,
     g1, be1, w1, b1, w2, b2, g2, be2) = params
    H = wq.shape[0]
    hd = H // num_heads

    def split_w(w):   # (H, H) -> (nh, H, hd): heads over output columns
        return w.reshape(H, num_heads, hd).transpose(1, 0, 2)

    def split_b(b):   # (1, H) -> (nh, 1, hd)
        return b.reshape(num_heads, 1, hd)

    per_layer = (
        split_w(wq), split_b(bq), split_w(wk), split_b(bk),
        split_w(wv), split_b(bv),
        wo.reshape(num_heads, hd, H), bo,     # heads over input rows of Wo
        g1, be1, w1, b1, w2, b2, g2, be2,
    )
    return tuple(jnp.stack([p] * num_layers, axis=0) for p in per_layer)


def encoder_forward(x, attention_mask, params, *, num_layers, num_heads,
                    act="gelu", compute_dtype=jnp.float32):
    """params: single-layer tuple (wq,bq,wk,bk,wv,bv,wo,bo,g1,be1,w1,b1,w2,b2,g2,be2).

    Linear weights are stored pre-transposed as (in, out) so the kernel
    computes x @ W + b (== PyTorch nn.Linear).  attention_mask is the additive
    BERT mask of shape (B, 1, 1, S).  Set compute_dtype=jnp.bfloat16 on
    v6e/v7x at production sizes (f32 accumulation is kept).
    """
    B, S, H = x.shape
    mask3 = attention_mask.reshape(B, 1, S).astype(jnp.float32)
    stacked = _prepare_params(params, num_layers, num_heads)

    kernel = functools.partial(_encoder_kernel, num_layers=num_layers,
                               num_heads=num_heads, act=act,
                               compute_dtype=compute_dtype)

    # Constant-index param specs: DMA'd once, stay resident across the grid.
    param_specs = [pl.BlockSpec(p.shape, lambda b, n=p.ndim: (0,) * n)
                   for p in stacked]
    grid_spec = pltpu.PrefetchScalarGridSpec(
        num_scalar_prefetch=0,
        grid=(B,),
        in_specs=[pl.BlockSpec((pl.Squeezed(), S, H), lambda b: (b, 0, 0)),
                  pl.BlockSpec((pl.Squeezed(), 1, S), lambda b: (b, 0, 0))]
                 + param_specs,
        out_specs=pl.BlockSpec((pl.Squeezed(), S, H), lambda b: (b, 0, 0)),
    )
    return pl.pallas_call(
        kernel,
        out_shape=jax.ShapeDtypeStruct((B, S, H), jnp.float32),
        grid_spec=grid_spec,
        compiler_params=pltpu.CompilerParams(
            dimension_semantics=("parallel",)),   # shards batch across v7x TCs
    )(x.astype(jnp.float32), mask3, *stacked)


# ------------------------- pure-JAX reference (check) -------------------------

def _ref_ln(x, w, b, eps=1e-12):
    u = jnp.mean(x, -1, keepdims=True)
    s = jnp.mean((x - u) ** 2, -1, keepdims=True)
    return w * ((x - u) / jnp.sqrt(s + eps)) + b


def ref_encoder(x, mask4, params, *, num_layers, num_heads):
    (wq, bq, wk, bk, wv, bv, wo, bo,
     g1, be1, w1, b1, w2, b2, g2, be2) = params
    B, S, H = x.shape
    hd = H // num_heads
    h = x
    for _ in range(num_layers):
        def split(t):
            return t.reshape(B, S, num_heads, hd).transpose(0, 2, 1, 3)
        q, k, v = split(h @ wq + bq), split(h @ wk + bk), split(h @ wv + bv)
        sc = jnp.einsum("bnsd,bntd->bnst", q, k) / math.sqrt(hd) + mask4
        p = jax.nn.softmax(sc, axis=-1)
        ctx = jnp.einsum("bnst,bntd->bnsd", p, v).transpose(0, 2, 1, 3)
        ctx = ctx.reshape(B, S, H)
        h1 = _ref_ln((ctx @ wo + bo) + h, g1, be1)
        inter = h1 @ w1 + b1
        inter = inter * 0.5 * (1.0 + jax.scipy.special.erf(
            inter / math.sqrt(2.0)))
        h = _ref_ln((inter @ w2 + b2) + h1, g2, be2)
    return h


# ----------------------------------- main -------------------------------------

if __name__ == "__main__":
    B, S, H = 2, 8, 32          # batch, seq, hidden_size
    NUM_HEADS = 2               # num_attention_heads
    NUM_LAYERS = 2              # num_hidden_layers
    H4 = 4 * H

    key = jax.random.PRNGKey(0)
    ks = jax.random.split(key, 16)
    rnd = lambda k, shp: (0.05 * jax.random.normal(k, shp)).astype(jnp.float32)

    # nn.Linear params (weights pre-transposed to (in, out)); LayerNorm = ones/zeros.
    wq, bq = rnd(ks[0], (H, H)), rnd(ks[1], (1, H))
    wk, bk = rnd(ks[2], (H, H)), rnd(ks[3], (1, H))
    wv, bv = rnd(ks[4], (H, H)), rnd(ks[5], (1, H))
    wo, bo = rnd(ks[6], (H, H)), rnd(ks[7], (1, H))
    g1, be1 = jnp.ones((1, H), jnp.float32), jnp.zeros((1, H), jnp.float32)
    w1, b1 = rnd(ks[8], (H, H4)), rnd(ks[9], (1, H4))
    w2, b2 = rnd(ks[10], (H4, H)), rnd(ks[11], (1, H))
    g2, be2 = jnp.ones((1, H), jnp.float32), jnp.zeros((1, H), jnp.float32)
    params = (wq, bq, wk, bk, wv, bv, wo, bo,
              g1, be1, w1, b1, w2, b2, g2, be2)

    hidden_states = jax.random.normal(ks[12], (B, S, H)).astype(jnp.float32)
    # Additive BERT-style attention mask (B, 1, 1, S): last 3 tokens of batch 1
    # are padding.
    valid = jnp.ones((B, S), jnp.float32).at[1, 5:].set(0.0)
    attention_mask = ((1.0 - valid) * -10000.0).reshape(B, 1, 1, S)

    out = encoder_forward(hidden_states, attention_mask, params,
                          num_layers=NUM_LAYERS, num_heads=NUM_HEADS,
                          act="gelu")
    out = jax.block_until_ready(out)

    ref = ref_encoder(hidden_states, attention_mask, params,
                      num_layers=NUM_LAYERS, num_heads=NUM_HEADS)
    assert out.shape == (B, S, H)
    max_err = float(jnp.max(jnp.abs(out - ref)))
    if max_err < 1e-3:
        print("KERNEL_OK")
    else:
        print(f"MISMATCH max_abs_err={max_err}")
</pallas_src>

<mosaic_0001>
module attributes {stable_mosaic.version = 11 : i64} {
  func.func @_encoder_kernel(%arg0: i32, %arg1: memref<1x8x32xf32, #tpu.memory_space<vmem>>, %arg2: memref<1x1x8xf32, #tpu.memory_space<vmem>>, %arg3: memref<2x2x32x16xf32, #tpu.memory_space<vmem>>, %arg4: memref<2x2x1x16xf32, #tpu.memory_space<vmem>>, %arg5: memref<2x2x32x16xf32, #tpu.memory_space<vmem>>, %arg6: memref<2x2x1x16xf32, #tpu.memory_space<vmem>>, %arg7: memref<2x2x32x16xf32, #tpu.memory_space<vmem>>, %arg8: memref<2x2x1x16xf32, #tpu.memory_space<vmem>>, %arg9: memref<2x2x16x32xf32, #tpu.memory_space<vmem>>, %arg10: memref<2x1x32xf32, #tpu.memory_space<vmem>>, %arg11: memref<2x1x32xf32, #tpu.memory_space<vmem>>, %arg12: memref<2x1x32xf32, #tpu.memory_space<vmem>>, %arg13: memref<2x32x128xf32, #tpu.memory_space<vmem>>, %arg14: memref<2x1x128xf32, #tpu.memory_space<vmem>>, %arg15: memref<2x128x32xf32, #tpu.memory_space<vmem>>, %arg16: memref<2x1x32xf32, #tpu.memory_space<vmem>>, %arg17: memref<2x1x32xf32, #tpu.memory_space<vmem>>, %arg18: memref<2x1x32xf32, #tpu.memory_space<vmem>>, %arg19: memref<1x8x32xf32, #tpu.memory_space<vmem>>) attributes {dimension_semantics = [#tpu.dimension_semantics<parallel>], iteration_bounds = array<i64: 2>, scalar_prefetch = 0 : i64, scratch_operands = 0 : i64, tpu.core_type = #tpu.core_type<tc>, window_params = [{transform_indices = @transform_0, window_bounds = array<i64: 1, 8, 32>}, {transform_indices = @transform_1, window_bounds = array<i64: 1, 1, 8>}, {pipeline_mode = #tpu.pipeline_mode<synchronous>, transform_indices = @transform_2, window_bounds = array<i64: 2, 2, 32, 16>}, {pipeline_mode = #tpu.pipeline_mode<synchronous>, transform_indices = @transform_3, window_bounds = array<i64: 2, 2, 1, 16>}, {pipeline_mode = #tpu.pipeline_mode<synchronous>, transform_indices = @transform_4, window_bounds = array<i64: 2, 2, 32, 16>}, {pipeline_mode = #tpu.pipeline_mode<synchronous>, transform_indices = @transform_5, window_bounds = array<i64: 2, 2, 1, 16>}, {pipeline_mode = #tpu.pipeline_mode<synchronous>, transform_indices = @transform_6, window_bounds = array<i64: 2, 2, 32, 16>}, {pipeline_mode = #tpu.pipeline_mode<synchronous>, transform_indices = @transform_7, window_bounds = array<i64: 2, 2, 1, 16>}, {pipeline_mode = #tpu.pipeline_mode<synchronous>, transform_indices = @transform_8, window_bounds = array<i64: 2, 2, 16, 32>}, {pipeline_mode = #tpu.pipeline_mode<synchronous>, transform_indices = @transform_9, window_bounds = array<i64: 2, 1, 32>}, {pipeline_mode = #tpu.pipeline_mode<synchronous>, transform_indices = @transform_10, window_bounds = array<i64: 2, 1, 32>}, {pipeline_mode = #tpu.pipeline_mode<synchronous>, transform_indices = @transform_11, window_bounds = array<i64: 2, 1, 32>}, {pipeline_mode = #tpu.pipeline_mode<synchronous>, transform_indices = @transform_12, window_bounds = array<i64: 2, 32, 128>}, {pipeline_mode = #tpu.pipeline_mode<synchronous>, transform_indices = @transform_13, window_bounds = array<i64: 2, 1, 128>}, {pipeline_mode = #tpu.pipeline_mode<synchronous>, transform_indices = @transform_14, window_bounds = array<i64: 2, 128, 32>}, {pipeline_mode = #tpu.pipeline_mode<synchronous>, transform_indices = @transform_15, window_bounds = array<i64: 2, 1, 32>}, {pipeline_mode = #tpu.pipeline_mode<synchronous>, transform_indices = @transform_16, window_bounds = array<i64: 2, 1, 32>}, {pipeline_mode = #tpu.pipeline_mode<synchronous>, transform_indices = @transform_17, window_bounds = array<i64: 2, 1, 32>}, {transform_indices = @transform_18, window_bounds = array<i64: 1, 8, 32>}]} {
    %c0 = arith.constant 0 : index
    %c0_0 = arith.constant 0 : index
    %c0_1 = arith.constant 0 : index
    %0 = vector.load %arg1[%c0, %c0_0, %c0_1] : memref<1x8x32xf32, #tpu.memory_space<vmem>>, vector<1x8x32xf32>
    %1 = vector.shape_cast %0 : vector<1x8x32xf32> to vector<8x32xf32>
    %c0_2 = arith.constant 0 : index
    %c0_3 = arith.constant 0 : index
    %c0_4 = arith.constant 0 : index
    %2 = vector.load %arg2[%c0_2, %c0_3, %c0_4] : memref<1x1x8xf32, #tpu.memory_space<vmem>>, vector<1x1x8xf32>
    %3 = vector.shape_cast %2 : vector<1x1x8xf32> to vector<1x8xf32>
    %4 = vector.shape_cast %3 : vector<1x8xf32> to vector<1x1x8xf32>
    %c0_i32 = arith.constant 0 : i32
    %5 = vector.shape_cast %1 : vector<8x32xf32> to vector<1x8x32xf32>
    %6 = vector.broadcast %5 : vector<1x8x32xf32> to vector<2x8x32xf32>
    %7 = arith.index_cast %c0_i32 : i32 to index
    %c0_5 = arith.constant 0 : index
    %c0_6 = arith.constant 0 : index
    %c0_7 = arith.constant 0 : index
    %8 = vector.load %arg3[%7, %c0_5, %c0_6, %c0_7] : memref<2x2x32x16xf32, #tpu.memory_space<vmem>>, vector<1x2x32x16xf32>
    %9 = vector.shape_cast %8 : vector<1x2x32x16xf32> to vector<2x32x16xf32>
    "tpu.trace_start"() <{level = 10 : i32, message = "nsk,nkd->nsd"}> : () -> ()
    %cst = arith.constant dense<0.000000e+00> : vector<2x8x16xf32>
    %10 = tpu.matmul %6, %9, %cst {dimension_numbers = #tpu.dot_dimension_numbers<[2], [1], [1], [2], [0, 0, 0, 1, 1, 2], [0], [0]>} : vector<2x8x32xf32>, vector<2x32x16xf32>, vector<2x8x16xf32> -> vector<2x8x16xf32>
    "tpu.trace_stop"() : () -> ()
    %11 = arith.index_cast %c0_i32 : i32 to index
    %c0_8 = arith.constant 0 : index
    %c0_9 = arith.constant 0 : index
    %c0_10 = arith.constant 0 : index
    %12 = vector.load %arg4[%11, %c0_8, %c0_9, %c0_10] : memref<2x2x1x16xf32, #tpu.memory_space<vmem>>, vector<1x2x1x16xf32>
    %13 = vector.shape_cast %12 : vector<1x2x1x16xf32> to vector<2x1x16xf32>
    %14 = vector.broadcast %13 : vector<2x1x16xf32> to vector<2x8x16xf32>
    %15 = arith.addf %10, %14 : vector<2x8x16xf32>
    %16 = arith.index_cast %c0_i32 : i32 to index
    %c0_11 = arith.constant 0 : index
    %c0_12 = arith.constant 0 : index
    %c0_13 = arith.constant 0 : index
    %17 = vector.load %arg5[%16, %c0_11, %c0_12, %c0_13] : memref<2x2x32x16xf32, #tpu.memory_space<vmem>>, vector<1x2x32x16xf32>
    %18 = vector.shape_cast %17 : vector<1x2x32x16xf32> to vector<2x32x16xf32>
    "tpu.trace_start"() <{level = 10 : i32, message = "nsk,nkd->nsd"}> : () -> ()
    %cst_14 = arith.constant dense<0.000000e+00> : vector<2x8x16xf32>
    %19 = tpu.matmul %6, %18, %cst_14 {dimension_numbers = #tpu.dot_dimension_numbers<[2], [1], [1], [2], [0, 0, 0, 1, 1, 2], [0], [0]>} : vector<2x8x32xf32>, vector<2x32x16xf32>, vector<2x8x16xf32> -> vector<2x8x16xf32>
    "tpu.trace_stop"() : () -> ()
    %20 = arith.index_cast %c0_i32 : i32 to index
    %c0_15 = arith.constant 0 : index
    %c0_16 = arith.constant 0 : index
    %c0_17 = arith.constant 0 : index
    %21 = vector.load %arg6[%20, %c0_15, %c0_16, %c0_17] : memref<2x2x1x16xf32, #tpu.memory_space<vmem>>, vector<1x2x1x16xf32>
    %22 = vector.shape_cast %21 : vector<1x2x1x16xf32> to vector<2x1x16xf32>
    %23 = vector.broadcast %22 : vector<2x1x16xf32> to vector<2x8x16xf32>
    %24 = arith.addf %19, %23 : vector<2x8x16xf32>
    %25 = arith.index_cast %c0_i32 : i32 to index
    %c0_18 = arith.constant 0 : index
    %c0_19 = arith.constant 0 : index
    %c0_20 = arith.constant 0 : index
    %26 = vector.load %arg7[%25, %c0_18, %c0_19, %c0_20] : memref<2x2x32x16xf32, #tpu.memory_space<vmem>>, vector<1x2x32x16xf32>
    %27 = vector.shape_cast %26 : vector<1x2x32x16xf32> to vector<2x32x16xf32>
    "tpu.trace_start"() <{level = 10 : i32, message = "nsk,nkd->nsd"}> : () -> ()
    %cst_21 = arith.constant dense<0.000000e+00> : vector<2x8x16xf32>
    %28 = tpu.matmul %6, %27, %cst_21 {dimension_numbers = #tpu.dot_dimension_numbers<[2], [1], [1], [2], [0, 0, 0, 1, 1, 2], [0], [0]>} : vector<2x8x32xf32>, vector<2x32x16xf32>, vector<2x8x16xf32> -> vector<2x8x16xf32>
    "tpu.trace_stop"() : () -> ()
    %29 = arith.index_cast %c0_i32 : i32 to index
    %c0_22 = arith.constant 0 : index
    %c0_23 = arith.constant 0 : index
    %c0_24 = arith.constant 0 : index
    %30 = vector.load %arg8[%29, %c0_22, %c0_23, %c0_24] : memref<2x2x1x16xf32, #tpu.memory_space<vmem>>, vector<1x2x1x16xf32>
    %31 = vector.shape_cast %30 : vector<1x2x1x16xf32> to vector<2x1x16xf32>
    %32 = vector.broadcast %31 : vector<2x1x16xf32> to vector<2x8x16xf32>
    %33 = arith.addf %28, %32 : vector<2x8x16xf32>
    %cst_25 = arith.constant 2.500000e-01 : f32
    %34 = vector.broadcast %cst_25 : f32 to vector<2x8x16xf32>
    %35 = arith.mulf %15, %34 : vector<2x8x16xf32>
    "tpu.trace_start"() <{level = 10 : i32, message = "nqd,nkd->nqk"}> : () -> ()
    %cst_26 = arith.constant dense<0.000000e+00> : vector<2x8x8xf32>
    %36 = tpu.matmul %35, %24, %cst_26 {dimension_numbers = #tpu.dot_dimension_numbers<[2], [2], [1], [1], [0, 0, 0, 1, 1, 1], [0], [0]>} : vector<2x8x16xf32>, vector<2x8x16xf32>, vector<2x8x8xf32> -> vector<2x8x8xf32>
    "tpu.trace_stop"() : () -> ()
    %37 = vector.broadcast %4 : vector<1x1x8xf32> to vector<2x8x8xf32>
    %38 = arith.addf %36, %37 : vector<2x8x8xf32>
    %cst_27 = arith.constant dense<0xFF800000> : vector<2x8xf32>
    %39 = vector.multi_reduction <maximumf>, %38, %cst_27 [2] : vector<2x8x8xf32> to vector<2x8xf32>
    %40 = vector.shape_cast %39 : vector<2x8xf32> to vector<2x8x1xf32>
    %41 = vector.broadcast %40 : vector<2x8x1xf32> to vector<2x8x8xf32>
    %42 = arith.subf %38, %41 : vector<2x8x8xf32>
    %43 = math.exp %42 : vector<2x8x8xf32>
    %cst_28 = arith.constant dense<0.000000e+00> : vector<2x8xf32>
    %44 = vector.multi_reduction <add>, %43, %cst_28 [2] : vector<2x8x8xf32> to vector<2x8xf32>
    %45 = vector.shape_cast %44 : vector<2x8xf32> to vector<2x8x1xf32>
    %46 = tpu.reciprocal %45 {approx = true} : vector<2x8x1xf32> -> vector<2x8x1xf32>
    %47 = vector.broadcast %46 : vector<2x8x1xf32> to vector<2x8x8xf32>
    %48 = arith.mulf %43, %47 : vector<2x8x8xf32>
    "tpu.trace_start"() <{level = 10 : i32, message = "nqk,nkd->nqd"}> : () -> ()
    %cst_29 = arith.constant dense<0.000000e+00> : vector<2x8x16xf32>
    %49 = tpu.matmul %48, %33, %cst_29 {dimension_numbers = #tpu.dot_dimension_numbers<[2], [1], [1], [2], [0, 0, 0, 1, 1, 2], [0], [0]>} : vector<2x8x8xf32>, vector<2x8x16xf32>, vector<2x8x16xf32> -> vector<2x8x16xf32>
    "tpu.trace_stop"() : () -> ()
    %50 = arith.index_cast %c0_i32 : i32 to index
    %c0_30 = arith.constant 0 : index
    %c0_31 = arith.constant 0 : index
    %c0_32 = arith.constant 0 : index
    %51 = vector.load %arg9[%50, %c0_30, %c0_31, %c0_32] : memref<2x2x16x32xf32, #tpu.memory_space<vmem>>, vector<1x2x16x32xf32>
    %52 = vector.shape_cast %51 : vector<1x2x16x32xf32> to vector<2x16x32xf32>
    "tpu.trace_start"() <{level = 10 : i32, message = "nsd,ndh->nsh"}> : () -> ()
    %cst_33 = arith.constant dense<0.000000e+00> : vector<2x8x32xf32>
    %53 = tpu.matmul %49, %52, %cst_33 {dimension_numbers = #tpu.dot_dimension_numbers<[2], [1], [1], [2], [0, 0, 0, 1, 1, 2], [0], [0]>} : vector<2x8x16xf32>, vector<2x16x32xf32>, vector<2x8x32xf32> -> vector<2x8x32xf32>
    "tpu.trace_stop"() : () -> ()
    %cst_34 = arith.constant dense<0.000000e+00> : vector<8x32xf32>
    %54 = vector.multi_reduction <add>, %53, %cst_34 [0] : vector<2x8x32xf32> to vector<8x32xf32>
    %55 = arith.index_cast %c0_i32 : i32 to index
    %c0_35 = arith.constant 0 : index
    %c0_36 = arith.constant 0 : index
    %56 = vector.load %arg10[%55, %c0_35, %c0_36] : memref<2x1x32xf32, #tpu.memory_space<vmem>>, vector<1x1x32xf32>
    %57 = vector.shape_cast %56 : vector<1x1x32xf32> to vector<1x32xf32>
    %58 = vector.broadcast %57 : vector<1x32xf32> to vector<8x32xf32>
    %59 = arith.addf %54, %58 : vector<8x32xf32>
    %60 = arith.addf %59, %1 : vector<8x32xf32>
    %61 = arith.index_cast %c0_i32 : i32 to index
    %c0_37 = arith.constant 0 : index
    %c0_38 = arith.constant 0 : index
    %62 = vector.load %arg11[%61, %c0_37, %c0_38] : memref<2x1x32xf32, #tpu.memory_space<vmem>>, vector<1x1x32xf32>
    %63 = vector.shape_cast %62 : vector<1x1x32xf32> to vector<1x32xf32>
    %64 = arith.index_cast %c0_i32 : i32 to index
    %c0_39 = arith.constant 0 : index
    %c0_40 = arith.constant 0 : index
    %65 = vector.load %arg12[%64, %c0_39, %c0_40] : memref<2x1x32xf32, #tpu.memory_space<vmem>>, vector<1x1x32xf32>
    %66 = vector.shape_cast %65 : vector<1x1x32xf32> to vector<1x32xf32>
    %cst_41 = arith.constant dense<0.000000e+00> : vector<8xf32>
    %67 = vector.multi_reduction <add>, %60, %cst_41 [1] : vector<8x32xf32> to vector<8xf32>
    %68 = vector.shape_cast %67 : vector<8xf32> to vector<8x1xf32>
    %cst_42 = arith.constant 3.200000e+01 : f32
    %69 = vector.broadcast %cst_42 : f32 to vector<8x1xf32>
    %70 = arith.divf %68, %69 : vector<8x1xf32>
    %71 = vector.broadcast %70 : vector<8x1xf32> to vector<8x32xf32>
    %72 = arith.subf %60, %71 : vector<8x32xf32>
    %73 = arith.mulf %72, %72 : vector<8x32xf32>
    %cst_43 = arith.constant dense<0.000000e+00> : vector<8xf32>
    %74 = vector.multi_reduction <add>, %73, %cst_43 [1] : vector<8x32xf32> to vector<8xf32>
    %75 = vector.shape_cast %74 : vector<8xf32> to vector<8x1xf32>
    %cst_44 = arith.constant 3.200000e+01 : f32
    %76 = vector.broadcast %cst_44 : f32 to vector<8x1xf32>
    %77 = arith.divf %75, %76 : vector<8x1xf32>
    %cst_45 = arith.constant 9.99999996E-13 : f32
    %78 = vector.broadcast %cst_45 : f32 to vector<8x1xf32>
    %79 = arith.addf %77, %78 : vector<8x1xf32>
    %80 = math.rsqrt %79 : vector<8x1xf32>
    %81 = vector.broadcast %80 : vector<8x1xf32> to vector<8x32xf32>
    %82 = arith.mulf %72, %81 : vector<8x32xf32>
    %83 = vector.broadcast %63 : vector<1x32xf32> to vector<8x32xf32>
    %84 = arith.mulf %83, %82 : vector<8x32xf32>
    %85 = vector.broadcast %66 : vector<1x32xf32> to vector<8x32xf32>
    %86 = arith.addf %84, %85 : vector<8x32xf32>
    %87 = arith.index_cast %c0_i32 : i32 to index
    %c0_46 = arith.constant 0 : index
    %c0_47 = arith.constant 0 : index
    %88 = vector.load %arg13[%87, %c0_46, %c0_47] : memref<2x32x128xf32, #tpu.memory_space<vmem>>, vector<1x32x128xf32>
    %89 = vector.shape_cast %88 : vector<1x32x128xf32> to vector<32x128xf32>
    %cst_48 = arith.constant dense<0.000000e+00> : vector<8x128xf32>
    %90 = tpu.matmul %86, %89, %cst_48 {dimension_numbers = #tpu.dot_dimension_numbers<[1], [0], [0], [1], [0, 0, 1, 1], [], []>} : vector<8x32xf32>, vector<32x128xf32>, vector<8x128xf32> -> vector<8x128xf32>
    %91 = arith.index_cast %c0_i32 : i32 to index
    %c0_49 = arith.constant 0 : index
    %c0_50 = arith.constant 0 : index
    %92 = vector.load %arg14[%91, %c0_49, %c0_50] : memref<2x1x128xf32, #tpu.memory_space<vmem>>, vector<1x1x128xf32>
    %93 = vector.shape_cast %92 : vector<1x1x128xf32> to vector<1x128xf32>
    %94 = vector.broadcast %93 : vector<1x128xf32> to vector<8x128xf32>
    %95 = arith.addf %90, %94 : vector<8x128xf32>
    %cst_51 = arith.constant 5.000000e-01 : f32
    %96 = vector.broadcast %cst_51 : f32 to vector<8x128xf32>
    %97 = arith.mulf %95, %96 : vector<8x128xf32>
    %cst_52 = arith.constant 0.707106769 : f32
    %98 = vector.broadcast %cst_52 : f32 to vector<8x128xf32>
    %99 = arith.mulf %95, %98 : vector<8x128xf32>
    %100 = math.absf %99 : vector<8x128xf32>
    %cst_53 = arith.constant 5.000000e-01 : f32
    %101 = vector.broadcast %cst_53 : f32 to vector<8x128xf32>
    %102 = arith.mulf %101, %100 : vector<8x128xf32>
    %cst_54 = arith.constant 1.000000e+00 : f32
    %103 = vector.broadcast %cst_54 : f32 to vector<8x128xf32>
    %104 = arith.addf %103, %102 : vector<8x128xf32>
    %cst_55 = arith.constant 1.000000e+00 : f32
    %105 = vector.broadcast %cst_55 : f32 to vector<8x128xf32>
    %106 = arith.divf %105, %104 : vector<8x128xf32>
    %cst_56 = arith.constant 0.000000e+00 : f32
    %107 = vector.broadcast %cst_56 : f32 to vector<8x128xf32>
    %108 = arith.subf %107, %100 : vector<8x128xf32>
    %109 = arith.mulf %108, %100 : vector<8x128xf32>
    %cst_57 = arith.constant 1.26551223 : f32
    %110 = vector.broadcast %cst_57 : f32 to vector<8x128xf32>
    %111 = arith.subf %109, %110 : vector<8x128xf32>
    %cst_58 = arith.constant 0.170872763 : f32
    %112 = vector.broadcast %cst_58 : f32 to vector<8x128xf32>
    %113 = arith.mulf %106, %112 : vector<8x128xf32>
    %cst_59 = arith.constant -0.822152256 : f32
    %114 = vector.broadcast %cst_59 : f32 to vector<8x128xf32>
    %115 = arith.addf %114, %113 : vector<8x128xf32>
    %116 = arith.mulf %106, %115 : vector<8x128xf32>
    %cst_60 = arith.constant 1.48851585 : f32
    %117 = vector.broadcast %cst_60 : f32 to vector<8x128xf32>
    %118 = arith.addf %117, %116 : vector<8x128xf32>
    %119 = arith.mulf %106, %118 : vector<8x128xf32>
    %cst_61 = arith.constant -1.13520396 : f32
    %120 = vector.broadcast %cst_61 : f32 to vector<8x128xf32>
    %121 = arith.addf %120, %119 : vector<8x128xf32>
    %122 = arith.mulf %106, %121 : vector<8x128xf32>
    %cst_62 = arith.constant 0.278868079 : f32
    %123 = vector.broadcast %cst_62 : f32 to vector<8x128xf32>
    %124 = arith.addf %123, %122 : vector<8x128xf32>
    %125 = arith.mulf %106, %124 : vector<8x128xf32>
    %cst_63 = arith.constant -0.186288059 : f32
    %126 = vector.broadcast %cst_63 : f32 to vector<8x128xf32>
    %127 = arith.addf %126, %125 : vector<8x128xf32>
    %128 = arith.mulf %106, %127 : vector<8x128xf32>
    %cst_64 = arith.constant 0.0967841818 : f32
    %129 = vector.broadcast %cst_64 : f32 to vector<8x128xf32>
    %130 = arith.addf %129, %128 : vector<8x128xf32>
    %131 = arith.mulf %106, %130 : vector<8x128xf32>
    %cst_65 = arith.constant 0.374091953 : f32
    %132 = vector.broadcast %cst_65 : f32 to vector<8x128xf32>
    %133 = arith.addf %132, %131 : vector<8x128xf32>
    %134 = arith.mulf %106, %133 : vector<8x128xf32>
    %cst_66 = arith.constant 1.00002372 : f32
    %135 = vector.broadcast %cst_66 : f32 to vector<8x128xf32>
    %136 = arith.addf %135, %134 : vector<8x128xf32>
    %137 = arith.mulf %106, %136 : vector<8x128xf32>
    %138 = arith.addf %111, %137 : vector<8x128xf32>
    %139 = math.exp %138 : vector<8x128xf32>
    %140 = arith.mulf %106, %139 : vector<8x128xf32>
    %cst_67 = arith.constant 0.000000e+00 : f32
    %141 = vector.broadcast %cst_67 : f32 to vector<8x128xf32>
    %142 = arith.cmpf oge, %99, %141 : vector<8x128xf32>
    %cst_68 = arith.constant 1.000000e+00 : f32
    %143 = vector.broadcast %cst_68 : f32 to vector<8x128xf32>
    %144 = arith.subf %143, %140 : vector<8x128xf32>
    %cst_69 = arith.constant 1.000000e+00 : f32
    %145 = vector.broadcast %cst_69 : f32 to vector<8x128xf32>
    %146 = arith.subf %140, %145 : vector<8x128xf32>
    %147 = arith.select %142, %144, %146 : vector<8x128xi1>, vector<8x128xf32>
    %cst_70 = arith.constant 1.000000e+00 : f32
    %148 = vector.broadcast %cst_70 : f32 to vector<8x128xf32>
    %149 = arith.addf %148, %147 : vector<8x128xf32>
    %150 = arith.mulf %97, %149 : vector<8x128xf32>
    %151 = arith.index_cast %c0_i32 : i32 to index
    %c0_71 = arith.constant 0 : index
    %c0_72 = arith.constant 0 : index
    %152 = vector.load %arg15[%151, %c0_71, %c0_72] : memref<2x128x32xf32, #tpu.memory_space<vmem>>, vector<1x128x32xf32>
    %153 = vector.shape_cast %152 : vector<1x128x32xf32> to vector<128x32xf32>
    %cst_73 = arith.constant dense<0.000000e+00> : vector<8x32xf32>
    %154 = tpu.matmul %150, %153, %cst_73 {dimension_numbers = #tpu.dot_dimension_numbers<[1], [0], [0], [1], [0, 0, 1, 1], [], []>} : vector<8x128xf32>, vector<128x32xf32>, vector<8x32xf32> -> vector<8x32xf32>
    %155 = arith.index_cast %c0_i32 : i32 to index
    %c0_74 = arith.constant 0 : index
    %c0_75 = arith.constant 0 : index
    %156 = vector.load %arg16[%155, %c0_74, %c0_75] : memref<2x1x32xf32, #tpu.memory_space<vmem>>, vector<1x1x32xf32>
    %157 = vector.shape_cast %156 : vector<1x1x32xf32> to vector<1x32xf32>
    %158 = vector.broadcast %157 : vector<1x32xf32> to vector<8x32xf32>
    %159 = arith.addf %154, %158 : vector<8x32xf32>
    %160 = arith.addf %159, %86 : vector<8x32xf32>
    %161 = arith.index_cast %c0_i32 : i32 to index
    %c0_76 = arith.constant 0 : index
    %c0_77 = arith.constant 0 : index
    %162 = vector.load %arg17[%161, %c0_76, %c0_77] : memref<2x1x32xf32, #tpu.memory_space<vmem>>, vector<1x1x32xf32>
    %163 = vector.shape_cast %162 : vector<1x1x32xf32> to vector<1x32xf32>
    %164 = arith.index_cast %c0_i32 : i32 to index
    %c0_78 = arith.constant 0 : index
    %c0_79 = arith.constant 0 : index
    %165 = vector.load %arg18[%164, %c0_78, %c0_79] : memref<2x1x32xf32, #tpu.memory_space<vmem>>, vector<1x1x32xf32>
    %166 = vector.shape_cast %165 : vector<1x1x32xf32> to vector<1x32xf32>
    %cst_80 = arith.constant dense<0.000000e+00> : vector<8xf32>
    %167 = vector.multi_reduction <add>, %160, %cst_80 [1] : vector<8x32xf32> to vector<8xf32>
    %168 = vector.shape_cast %167 : vector<8xf32> to vector<8x1xf32>
    %cst_81 = arith.constant 3.200000e+01 : f32
    %169 = vector.broadcast %cst_81 : f32 to vector<8x1xf32>
    %170 = arith.divf %168, %169 : vector<8x1xf32>
    %171 = vector.broadcast %170 : vector<8x1xf32> to vector<8x32xf32>
    %172 = arith.subf %160, %171 : vector<8x32xf32>
    %173 = arith.mulf %172, %172 : vector<8x32xf32>
    %cst_82 = arith.constant dense<0.000000e+00> : vector<8xf32>
    %174 = vector.multi_reduction <add>, %173, %cst_82 [1] : vector<8x32xf32> to vector<8xf32>
    %175 = vector.shape_cast %174 : vector<8xf32> to vector<8x1xf32>
    %cst_83 = arith.constant 3.200000e+01 : f32
    %176 = vector.broadcast %cst_83 : f32 to vector<8x1xf32>
    %177 = arith.divf %175, %176 : vector<8x1xf32>
    %cst_84 = arith.constant 9.99999996E-13 : f32
    %178 = vector.broadcast %cst_84 : f32 to vector<8x1xf32>
    %179 = arith.addf %177, %178 : vector<8x1xf32>
    %180 = math.rsqrt %179 : vector<8x1xf32>
    %181 = vector.broadcast %180 : vector<8x1xf32> to vector<8x32xf32>
    %182 = arith.mulf %172, %181 : vector<8x32xf32>
    %183 = vector.broadcast %163 : vector<1x32xf32> to vector<8x32xf32>
    %184 = arith.mulf %183, %182 : vector<8x32xf32>
    %185 = vector.broadcast %166 : vector<1x32xf32> to vector<8x32xf32>
    %186 = arith.addf %184, %185 : vector<8x32xf32>
    %c1_i32 = arith.constant 1 : i32
    %187 = vector.shape_cast %186 : vector<8x32xf32> to vector<1x8x32xf32>
    %188 = vector.broadcast %187 : vector<1x8x32xf32> to vector<2x8x32xf32>
    %189 = arith.index_cast %c1_i32 : i32 to index
    %c0_85 = arith.constant 0 : index
    %c0_86 = arith.constant 0 : index
    %c0_87 = arith.constant 0 : index
    %190 = vector.load %arg3[%189, %c0_85, %c0_86, %c0_87] : memref<2x2x32x16xf32, #tpu.memory_space<vmem>>, vector<1x2x32x16xf32>
    %191 = vector.shape_cast %190 : vector<1x2x32x16xf32> to vector<2x32x16xf32>
    "tpu.trace_start"() <{level = 10 : i32, message = "nsk,nkd->nsd"}> : () -> ()
    %cst_88 = arith.constant dense<0.000000e+00> : vector<2x8x16xf32>
    %192 = tpu.matmul %188, %191, %cst_88 {dimension_numbers = #tpu.dot_dimension_numbers<[2], [1], [1], [2], [0, 0, 0, 1, 1, 2], [0], [0]>} : vector<2x8x32xf32>, vector<2x32x16xf32>, vector<2x8x16xf32> -> vector<2x8x16xf32>
    "tpu.trace_stop"() : () -> ()
    %193 = arith.index_cast %c1_i32 : i32 to index
    %c0_89 = arith.constant 0 : index
    %c0_90 = arith.constant 0 : index
    %c0_91 = arith.constant 0 : index
    %194 = vector.load %arg4[%193, %c0_89, %c0_90, %c0_91] : memref<2x2x1x16xf32, #tpu.memory_space<vmem>>, vector<1x2x1x16xf32>
    %195 = vector.shape_cast %194 : vector<1x2x1x16xf32> to vector<2x1x16xf32>
    %196 = vector.broadcast %195 : vector<2x1x16xf32> to vector<2x8x16xf32>
    %197 = arith.addf %192, %196 : vector<2x8x16xf32>
    %198 = arith.index_cast %c1_i32 : i32 to index
    %c0_92 = arith.constant 0 : index
    %c0_93 = arith.constant 0 : index
    %c0_94 = arith.constant 0 : index
    %199 = vector.load %arg5[%198, %c0_92, %c0_93, %c0_94] : memref<2x2x32x16xf32, #tpu.memory_space<vmem>>, vector<1x2x32x16xf32>
    %200 = vector.shape_cast %199 : vector<1x2x32x16xf32> to vector<2x32x16xf32>
    "tpu.trace_start"() <{level = 10 : i32, message = "nsk,nkd->nsd"}> : () -> ()
    %cst_95 = arith.constant dense<0.000000e+00> : vector<2x8x16xf32>
    %201 = tpu.matmul %188, %200, %cst_95 {dimension_numbers = #tpu.dot_dimension_numbers<[2], [1], [1], [2], [0, 0, 0, 1, 1, 2], [0], [0]>} : vector<2x8x32xf32>, vector<2x32x16xf32>, vector<2x8x16xf32> -> vector<2x8x16xf32>
    "tpu.trace_stop"() : () -> ()
    %202 = arith.index_cast %c1_i32 : i32 to index
    %c0_96 = arith.constant 0 : index
    %c0_97 = arith.constant 0 : index
    %c0_98 = arith.constant 0 : index
    %203 = vector.load %arg6[%202, %c0_96, %c0_97, %c0_98] : memref<2x2x1x16xf32, #tpu.memory_space<vmem>>, vector<1x2x1x16xf32>
    %204 = vector.shape_cast %203 : vector<1x2x1x16xf32> to vector<2x1x16xf32>
    %205 = vector.broadcast %204 : vector<2x1x16xf32> to vector<2x8x16xf32>
    %206 = arith.addf %201, %205 : vector<2x8x16xf32>
    %207 = arith.index_cast %c1_i32 : i32 to index
    %c0_99 = arith.constant 0 : index
    %c0_100 = arith.constant 0 : index
    %c0_101 = arith.constant 0 : index
    %208 = vector.load %arg7[%207, %c0_99, %c0_100, %c0_101] : memref<2x2x32x16xf32, #tpu.memory_space<vmem>>, vector<1x2x32x16xf32>
    %209 = vector.shape_cast %208 : vector<1x2x32x16xf32> to vector<2x32x16xf32>
    "tpu.trace_start"() <{level = 10 : i32, message = "nsk,nkd->nsd"}> : () -> ()
    %cst_102 = arith.constant dense<0.000000e+00> : vector<2x8x16xf32>
    %210 = tpu.matmul %188, %209, %cst_102 {dimension_numbers = #tpu.dot_dimension_numbers<[2], [1], [1], [2], [0, 0, 0, 1, 1, 2], [0], [0]>} : vector<2x8x32xf32>, vector<2x32x16xf32>, vector<2x8x16xf32> -> vector<2x8x16xf32>
    "tpu.trace_stop"() : () -> ()
    %211 = arith.index_cast %c1_i32 : i32 to index
    %c0_103 = arith.constant 0 : index
    %c0_104 = arith.constant 0 : index
    %c0_105 = arith.constant 0 : index
    %212 = vector.load %arg8[%211, %c0_103, %c0_104, %c0_105] : memref<2x2x1x16xf32, #tpu.memory_space<vmem>>, vector<1x2x1x16xf32>
    %213 = vector.shape_cast %212 : vector<1x2x1x16xf32> to vector<2x1x16xf32>
    %214 = vector.broadcast %213 : vector<2x1x16xf32> to vector<2x8x16xf32>
    %215 = arith.addf %210, %214 : vector<2x8x16xf32>
    %cst_106 = arith.constant 2.500000e-01 : f32
    %216 = vector.broadcast %cst_106 : f32 to vector<2x8x16xf32>
    %217 = arith.mulf %197, %216 : vector<2x8x16xf32>
    "tpu.trace_start"() <{level = 10 : i32, message = "nqd,nkd->nqk"}> : () -> ()
    %cst_107 = arith.constant dense<0.000000e+00> : vector<2x8x8xf32>
    %218 = tpu.matmul %217, %206, %cst_107 {dimension_numbers = #tpu.dot_dimension_numbers<[2], [2], [1], [1], [0, 0, 0, 1, 1, 1], [0], [0]>} : vector<2x8x16xf32>, vector<2x8x16xf32>, vector<2x8x8xf32> -> vector<2x8x8xf32>
    "tpu.trace_stop"() : () -> ()
    %219 = vector.broadcast %4 : vector<1x1x8xf32> to vector<2x8x8xf32>
    %220 = arith.addf %218, %219 : vector<2x8x8xf32>
    %cst_108 = arith.constant dense<0xFF800000> : vector<2x8xf32>
    %221 = vector.multi_reduction <maximumf>, %220, %cst_108 [2] : vector<2x8x8xf32> to vector<2x8xf32>
    %222 = vector.shape_cast %221 : vector<2x8xf32> to vector<2x8x1xf32>
    %223 = vector.broadcast %222 : vector<2x8x1xf32> to vector<2x8x8xf32>
    %224 = arith.subf %220, %223 : vector<2x8x8xf32>
    %225 = math.exp %224 : vector<2x8x8xf32>
    %cst_109 = arith.constant dense<0.000000e+00> : vector<2x8xf32>
    %226 = vector.multi_reduction <add>, %225, %cst_109 [2] : vector<2x8x8xf32> to vector<2x8xf32>
    %227 = vector.shape_cast %226 : vector<2x8xf32> to vector<2x8x1xf32>
    %228 = tpu.reciprocal %227 {approx = true} : vector<2x8x1xf32> -> vector<2x8x1xf32>
    %229 = vector.broadcast %228 : vector<2x8x1xf32> to vector<2x8x8xf32>
    %230 = arith.mulf %225, %229 : vector<2x8x8xf32>
    "tpu.trace_start"() <{level = 10 : i32, message = "nqk,nkd->nqd"}> : () -> ()
    %cst_110 = arith.constant dense<0.000000e+00> : vector<2x8x16xf32>
    %231 = tpu.matmul %230, %215, %cst_110 {dimension_numbers = #tpu.dot_dimension_numbers<[2], [1], [1], [2], [0, 0, 0, 1, 1, 2], [0], [0]>} : vector<2x8x8xf32>, vector<2x8x16xf32>, vector<2x8x16xf32> -> vector<2x8x16xf32>
    "tpu.trace_stop"() : () -> ()
    %232 = arith.index_cast %c1_i32 : i32 to index
    %c0_111 = arith.constant 0 : index
    %c0_112 = arith.constant 0 : index
    %c0_113 = arith.constant 0 : index
    %233 = vector.load %arg9[%232, %c0_111, %c0_112, %c0_113] : memref<2x2x16x32xf32, #tpu.memory_space<vmem>>, vector<1x2x16x32xf32>
    %234 = vector.shape_cast %233 : vector<1x2x16x32xf32> to vector<2x16x32xf32>
    "tpu.trace_start"() <{level = 10 : i32, message = "nsd,ndh->nsh"}> : () -> ()
    %cst_114 = arith.constant dense<0.000000e+00> : vector<2x8x32xf32>
    %235 = tpu.matmul %231, %234, %cst_114 {dimension_numbers = #tpu.dot_dimension_numbers<[2], [1], [1], [2], [0, 0, 0, 1, 1, 2], [0], [0]>} : vector<2x8x16xf32>, vector<2x16x32xf32>, vector<2x8x32xf32> -> vector<2x8x32xf32>
    "tpu.trace_stop"() : () -> ()
    %cst_115 = arith.constant dense<0.000000e+00> : vector<8x32xf32>
    %236 = vector.multi_reduction <add>, %235, %cst_115 [0] : vector<2x8x32xf32> to vector<8x32xf32>
    %237 = arith.index_cast %c1_i32 : i32 to index
    %c0_116 = arith.constant 0 : index
    %c0_117 = arith.constant 0 : index
    %238 = vector.load %arg10[%237, %c0_116, %c0_117] : memref<2x1x32xf32, #tpu.memory_space<vmem>>, vector<1x1x32xf32>
    %239 = vector.shape_cast %238 : vector<1x1x32xf32> to vector<1x32xf32>
    %240 = vector.broadcast %239 : vector<1x32xf32> to vector<8x32xf32>
    %241 = arith.addf %236, %240 : vector<8x32xf32>
    %242 = arith.addf %241, %186 : vector<8x32xf32>
    %243 = arith.index_cast %c1_i32 : i32 to index
    %c0_118 = arith.constant 0 : index
    %c0_119 = arith.constant 0 : index
    %244 = vector.load %arg11[%243, %c0_118, %c0_119] : memref<2x1x32xf32, #tpu.memory_space<vmem>>, vector<1x1x32xf32>
    %245 = vector.shape_cast %244 : vector<1x1x32xf32> to vector<1x32xf32>
    %246 = arith.index_cast %c1_i32 : i32 to index
    %c0_120 = arith.constant 0 : index
    %c0_121 = arith.constant 0 : index
    %247 = vector.load %arg12[%246, %c0_120, %c0_121] : memref<2x1x32xf32, #tpu.memory_space<vmem>>, vector<1x1x32xf32>
    %248 = vector.shape_cast %247 : vector<1x1x32xf32> to vector<1x32xf32>
    %cst_122 = arith.constant dense<0.000000e+00> : vector<8xf32>
    %249 = vector.multi_reduction <add>, %242, %cst_122 [1] : vector<8x32xf32> to vector<8xf32>
    %250 = vector.shape_cast %249 : vector<8xf32> to vector<8x1xf32>
    %cst_123 = arith.constant 3.200000e+01 : f32
    %251 = vector.broadcast %cst_123 : f32 to vector<8x1xf32>
    %252 = arith.divf %250, %251 : vector<8x1xf32>
    %253 = vector.broadcast %252 : vector<8x1xf32> to vector<8x32xf32>
    %254 = arith.subf %242, %253 : vector<8x32xf32>
    %255 = arith.mulf %254, %254 : vector<8x32xf32>
    %cst_124 = arith.constant dense<0.000000e+00> : vector<8xf32>
    %256 = vector.multi_reduction <add>, %255, %cst_124 [1] : vector<8x32xf32> to vector<8xf32>
    %257 = vector.shape_cast %256 : vector<8xf32> to vector<8x1xf32>
    %cst_125 = arith.constant 3.200000e+01 : f32
    %258 = vector.broadcast %cst_125 : f32 to vector<8x1xf32>
    %259 = arith.divf %257, %258 : vector<8x1xf32>
    %cst_126 = arith.constant 9.99999996E-13 : f32
    %260 = vector.broadcast %cst_126 : f32 to vector<8x1xf32>
    %261 = arith.addf %259, %260 : vector<8x1xf32>
    %262 = math.rsqrt %261 : vector<8x1xf32>
    %263 = vector.broadcast %262 : vector<8x1xf32> to vector<8x32xf32>
    %264 = arith.mulf %254, %263 : vector<8x32xf32>
    %265 = vector.broadcast %245 : vector<1x32xf32> to vector<8x32xf32>
    %266 = arith.mulf %265, %264 : vector<8x32xf32>
    %267 = vector.broadcast %248 : vector<1x32xf32> to vector<8x32xf32>
    %268 = arith.addf %266, %267 : vector<8x32xf32>
    %269 = arith.index_cast %c1_i32 : i32 to index
    %c0_127 = arith.constant 0 : index
    %c0_128 = arith.constant 0 : index
    %270 = vector.load %arg13[%269, %c0_127, %c0_128] : memref<2x32x128xf32, #tpu.memory_space<vmem>>, vector<1x32x128xf32>
    %271 = vector.shape_cast %270 : vector<1x32x128xf32> to vector<32x128xf32>
    %cst_129 = arith.constant dense<0.000000e+00> : vector<8x128xf32>
    %272 = tpu.matmul %268, %271, %cst_129 {dimension_numbers = #tpu.dot_dimension_numbers<[1], [0], [0], [1], [0, 0, 1, 1], [], []>} : vector<8x32xf32>, vector<32x128xf32>, vector<8x128xf32> -> vector<8x128xf32>
    %273 = arith.index_cast %c1_i32 : i32 to index
    %c0_130 = arith.constant 0 : index
    %c0_131 = arith.constant 0 : index
    %274 = vector.load %arg14[%273, %c0_130, %c0_131] : memref<2x1x128xf32, #tpu.memory_space<vmem>>, vector<1x1x128xf32>
    %275 = vector.shape_cast %274 : vector<1x1x128xf32> to vector<1x128xf32>
    %276 = vector.broadcast %275 : vector<1x128xf32> to vector<8x128xf32>
    %277 = arith.addf %272, %276 : vector<8x128xf32>
    %cst_132 = arith.constant 5.000000e-01 : f32
    %278 = vector.broadcast %cst_132 : f32 to vector<8x128xf32>
    %279 = arith.mulf %277, %278 : vector<8x128xf32>
    %cst_133 = arith.constant 0.707106769 : f32
    %280 = vector.broadcast %cst_133 : f32 to vector<8x128xf32>
    %281 = arith.mulf %277, %280 : vector<8x128xf32>
    %282 = math.absf %281 : vector<8x128xf32>
    %cst_134 = arith.constant 5.000000e-01 : f32
    %283 = vector.broadcast %cst_134 : f32 to vector<8x128xf32>
    %284 = arith.mulf %283, %282 : vector<8x128xf32>
    %cst_135 = arith.constant 1.000000e+00 : f32
    %285 = vector.broadcast %cst_135 : f32 to vector<8x128xf32>
    %286 = arith.addf %285, %284 : vector<8x128xf32>
    %cst_136 = arith.constant 1.000000e+00 : f32
    %287 = vector.broadcast %cst_136 : f32 to vector<8x128xf32>
    %288 = arith.divf %287, %286 : vector<8x128xf32>
    %cst_137 = arith.constant 0.000000e+00 : f32
    %289 = vector.broadcast %cst_137 : f32 to vector<8x128xf32>
    %290 = arith.subf %289, %282 : vector<8x128xf32>
    %291 = arith.mulf %290, %282 : vector<8x128xf32>
    %cst_138 = arith.constant 1.26551223 : f32
    %292 = vector.broadcast %cst_138 : f32 to vector<8x128xf32>
    %293 = arith.subf %291, %292 : vector<8x128xf32>
    %cst_139 = arith.constant 0.170872763 : f32
    %294 = vector.broadcast %cst_139 : f32 to vector<8x128xf32>
    %295 = arith.mulf %288, %294 : vector<8x128xf32>
    %cst_140 = arith.constant -0.822152256 : f32
    %296 = vector.broadcast %cst_140 : f32 to vector<8x128xf32>
    %297 = arith.addf %296, %295 : vector<8x128xf32>
    %298 = arith.mulf %288, %297 : vector<8x128xf32>
    %cst_141 = arith.constant 1.48851585 : f32
    %299 = vector.broadcast %cst_141 : f32 to vector<8x128xf32>
    %300 = arith.addf %299, %298 : vector<8x128xf32>
    %301 = arith.mulf %288, %300 : vector<8x128xf32>
    %cst_142 = arith.constant -1.13520396 : f32
    %302 = vector.broadcast %cst_142 : f32 to vector<8x128xf32>
    %303 = arith.addf %302, %301 : vector<8x128xf32>
    %304 = arith.mulf %288, %303 : vector<8x128xf32>
    %cst_143 = arith.constant 0.278868079 : f32
    %305 = vector.broadcast %cst_143 : f32 to vector<8x128xf32>
    %306 = arith.addf %305, %304 : vector<8x128xf32>
    %307 = arith.mulf %288, %306 : vector<8x128xf32>
    %cst_144 = arith.constant -0.186288059 : f32
    %308 = vector.broadcast %cst_144 : f32 to vector<8x128xf32>
    %309 = arith.addf %308, %307 : vector<8x128xf32>
    %310 = arith.mulf %288, %309 : vector<8x128xf32>
    %cst_145 = arith.constant 0.0967841818 : f32
    %311 = vector.broadcast %cst_145 : f32 to vector<8x128xf32>
    %312 = arith.addf %311, %310 : vector<8x128xf32>
    %313 = arith.mulf %288, %312 : vector<8x128xf32>
    %cst_146 = arith.constant 0.374091953 : f32
    %314 = vector.broadcast %cst_146 : f32 to vector<8x128xf32>
    %315 = arith.addf %314, %313 : vector<8x128xf32>
    %316 = arith.mulf %288, %315 : vector<8x128xf32>
    %cst_147 = arith.constant 1.00002372 : f32
    %317 = vector.broadcast %cst_147 : f32 to vector<8x128xf32>
    %318 = arith.addf %317, %316 : vector<8x128xf32>
    %319 = arith.mulf %288, %318 : vector<8x128xf32>
    %320 = arith.addf %293, %319 : vector<8x128xf32>
    %321 = math.exp %320 : vector<8x128xf32>
    %322 = arith.mulf %288, %321 : vector<8x128xf32>
    %cst_148 = arith.constant 0.000000e+00 : f32
    %323 = vector.broadcast %cst_148 : f32 to vector<8x128xf32>
    %324 = arith.cmpf oge, %281, %323 : vector<8x128xf32>
    %cst_149 = arith.constant 1.000000e+00 : f32
    %325 = vector.broadcast %cst_149 : f32 to vector<8x128xf32>
    %326 = arith.subf %325, %322 : vector<8x128xf32>
    %cst_150 = arith.constant 1.000000e+00 : f32
    %327 = vector.broadcast %cst_150 : f32 to vector<8x128xf32>
    %328 = arith.subf %322, %327 : vector<8x128xf32>
    %329 = arith.select %324, %326, %328 : vector<8x128xi1>, vector<8x128xf32>
    %cst_151 = arith.constant 1.000000e+00 : f32
    %330 = vector.broadcast %cst_151 : f32 to vector<8x128xf32>
    %331 = arith.addf %330, %329 : vector<8x128xf32>
    %332 = arith.mulf %279, %331 : vector<8x128xf32>
    %333 = arith.index_cast %c1_i32 : i32 to index
    %c0_152 = arith.constant 0 : index
    %c0_153 = arith.constant 0 : index
    %334 = vector.load %arg15[%333, %c0_152, %c0_153] : memref<2x128x32xf32, #tpu.memory_space<vmem>>, vector<1x128x32xf32>
    %335 = vector.shape_cast %334 : vector<1x128x32xf32> to vector<128x32xf32>
    %cst_154 = arith.constant dense<0.000000e+00> : vector<8x32xf32>
    %336 = tpu.matmul %332, %335, %cst_154 {dimension_numbers = #tpu.dot_dimension_numbers<[1], [0], [0], [1], [0, 0, 1, 1], [], []>} : vector<8x128xf32>, vector<128x32xf32>, vector<8x32xf32> -> vector<8x32xf32>
    %337 = arith.index_cast %c1_i32 : i32 to index
    %c0_155 = arith.constant 0 : index
    %c0_156 = arith.constant 0 : index
    %338 = vector.load %arg16[%337, %c0_155, %c0_156] : memref<2x1x32xf32, #tpu.memory_space<vmem>>, vector<1x1x32xf32>
    %339 = vector.shape_cast %338 : vector<1x1x32xf32> to vector<1x32xf32>
    %340 = vector.broadcast %339 : vector<1x32xf32> to vector<8x32xf32>
    %341 = arith.addf %336, %340 : vector<8x32xf32>
    %342 = arith.addf %341, %268 : vector<8x32xf32>
    %343 = arith.index_cast %c1_i32 : i32 to index
    %c0_157 = arith.constant 0 : index
    %c0_158 = arith.constant 0 : index
    %344 = vector.load %arg17[%343, %c0_157, %c0_158] : memref<2x1x32xf32, #tpu.memory_space<vmem>>, vector<1x1x32xf32>
    %345 = vector.shape_cast %344 : vector<1x1x32xf32> to vector<1x32xf32>
    %346 = arith.index_cast %c1_i32 : i32 to index
    %c0_159 = arith.constant 0 : index
    %c0_160 = arith.constant 0 : index
    %347 = vector.load %arg18[%346, %c0_159, %c0_160] : memref<2x1x32xf32, #tpu.memory_space<vmem>>, vector<1x1x32xf32>
    %348 = vector.shape_cast %347 : vector<1x1x32xf32> to vector<1x32xf32>
    %cst_161 = arith.constant dense<0.000000e+00> : vector<8xf32>
    %349 = vector.multi_reduction <add>, %342, %cst_161 [1] : vector<8x32xf32> to vector<8xf32>
    %350 = vector.shape_cast %349 : vector<8xf32> to vector<8x1xf32>
    %cst_162 = arith.constant 3.200000e+01 : f32
    %351 = vector.broadcast %cst_162 : f32 to vector<8x1xf32>
    %352 = arith.divf %350, %351 : vector<8x1xf32>
    %353 = vector.broadcast %352 : vector<8x1xf32> to vector<8x32xf32>
    %354 = arith.subf %342, %353 : vector<8x32xf32>
    %355 = arith.mulf %354, %354 : vector<8x32xf32>
    %cst_163 = arith.constant dense<0.000000e+00> : vector<8xf32>
    %356 = vector.multi_reduction <add>, %355, %cst_163 [1] : vector<8x32xf32> to vector<8xf32>
    %357 = vector.shape_cast %356 : vector<8xf32> to vector<8x1xf32>
    %cst_164 = arith.constant 3.200000e+01 : f32
    %358 = vector.broadcast %cst_164 : f32 to vector<8x1xf32>
    %359 = arith.divf %357, %358 : vector<8x1xf32>
    %cst_165 = arith.constant 9.99999996E-13 : f32
    %360 = vector.broadcast %cst_165 : f32 to vector<8x1xf32>
    %361 = arith.addf %359, %360 : vector<8x1xf32>
    %362 = math.rsqrt %361 : vector<8x1xf32>
    %363 = vector.broadcast %362 : vector<8x1xf32> to vector<8x32xf32>
    %364 = arith.mulf %354, %363 : vector<8x32xf32>
    %365 = vector.broadcast %345 : vector<1x32xf32> to vector<8x32xf32>
    %366 = arith.mulf %365, %364 : vector<8x32xf32>
    %367 = vector.broadcast %348 : vector<1x32xf32> to vector<8x32xf32>
    %368 = arith.addf %366, %367 : vector<8x32xf32>
    %c2_i32 = arith.constant 2 : i32
    %c0_166 = arith.constant 0 : index
    %c0_167 = arith.constant 0 : index
    %c0_168 = arith.constant 0 : index
    %369 = vector.load %arg19[%c0_166, %c0_167, %c0_168] : memref<1x8x32xf32, #tpu.memory_space<vmem>>, vector<1x8x32xf32>
    %370 = vector.shape_cast %369 : vector<1x8x32xf32> to vector<8x32xf32>
    %371 = vector.shape_cast %368 : vector<8x32xf32> to vector<1x8x32xf32>
    tpu.vector_store %arg19[%c0_166, %c0_167, %c0_168], %371 {strides = array<i32>} : memref<1x8x32xf32, #tpu.memory_space<vmem>>, vector<1x8x32xf32>,
    return
  }
  func.func @transform_0(%arg0: i32) -> (i32, i32, i32) {
    %c0_i32 = arith.constant 0 : i32
    %c0_i32_0 = arith.constant 0 : i32
    %c0_i32_1 = arith.constant 0 : i32
    return %arg0, %c0_i32, %c0_i32_0 : i32, i32, i32
  }
  func.func @transform_1(%arg0: i32) -> (i32, i32, i32) {
    %c0_i32 = arith.constant 0 : i32
    %c0_i32_0 = arith.constant 0 : i32
    %c0_i32_1 = arith.constant 0 : i32
    return %arg0, %c0_i32, %c0_i32_0 : i32, i32, i32
  }
  func.func @transform_2(%arg0: i32) -> (i32, i32, i32, i32) {
    %c0_i32 = arith.constant 0 : i32
    %c0_i32_0 = arith.constant 0 : i32
    %c0_i32_1 = arith.constant 0 : i32
    %c0_i32_2 = arith.constant 0 : i32
    %c0_i32_3 = arith.constant 0 : i32
    return %c0_i32, %c0_i32_0, %c0_i32_1, %c0_i32_2 : i32, i32, i32, i32
  }
  func.func @transform_3(%arg0: i32) -> (i32, i32, i32, i32) {
    %c0_i32 = arith.constant 0 : i32
    %c0_i32_0 = arith.constant 0 : i32
    %c0_i32_1 = arith.constant 0 : i32
    %c0_i32_2 = arith.constant 0 : i32
    %c0_i32_3 = arith.constant 0 : i32
    return %c0_i32, %c0_i32_0, %c0_i32_1, %c0_i32_2 : i32, i32, i32, i32
  }
  func.func @transform_4(%arg0: i32) -> (i32, i32, i32, i32) {
    %c0_i32 = arith.constant 0 : i32
    %c0_i32_0 = arith.constant 0 : i32
    %c0_i32_1 = arith.constant 0 : i32
    %c0_i32_2 = arith.constant 0 : i32
    %c0_i32_3 = arith.constant 0 : i32
    return %c0_i32, %c0_i32_0, %c0_i32_1, %c0_i32_2 : i32, i32, i32, i32
  }
  func.func @transform_5(%arg0: i32) -> (i32, i32, i32, i32) {
    %c0_i32 = arith.constant 0 : i32
    %c0_i32_0 = arith.constant 0 : i32
    %c0_i32_1 = arith.constant 0 : i32
    %c0_i32_2 = arith.constant 0 : i32
    %c0_i32_3 = arith.constant 0 : i32
    return %c0_i32, %c0_i32_0, %c0_i32_1, %c0_i32_2 : i32, i32, i32, i32
  }
  func.func @transform_6(%arg0: i32) -> (i32, i32, i32, i32) {
    %c0_i32 = arith.constant 0 : i32
    %c0_i32_0 = arith.constant 0 : i32
    %c0_i32_1 = arith.constant 0 : i32
    %c0_i32_2 = arith.constant 0 : i32
    %c0_i32_3 = arith.constant 0 : i32
    return %c0_i32, %c0_i32_0, %c0_i32_1, %c0_i32_2 : i32, i32, i32, i32
  }
  func.func @transform_7(%arg0: i32) -> (i32, i32, i32, i32) {
    %c0_i32 = arith.constant 0 : i32
    %c0_i32_0 = arith.constant 0 : i32
    %c0_i32_1 = arith.constant 0 : i32
    %c0_i32_2 = arith.constant 0 : i32
    %c0_i32_3 = arith.constant 0 : i32
    return %c0_i32, %c0_i32_0, %c0_i32_1, %c0_i32_2 : i32, i32, i32, i32
  }
  func.func @transform_8(%arg0: i32) -> (i32, i32, i32, i32) {
    %c0_i32 = arith.constant 0 : i32
    %c0_i32_0 = arith.constant 0 : i32
    %c0_i32_1 = arith.constant 0 : i32
    %c0_i32_2 = arith.constant 0 : i32
    %c0_i32_3 = arith.constant 0 : i32
    return %c0_i32, %c0_i32_0, %c0_i32_1, %c0_i32_2 : i32, i32, i32, i32
  }
  func.func @transform_9(%arg0: i32) -> (i32, i32, i32) {
    %c0_i32 = arith.constant 0 : i32
    %c0_i32_0 = arith.constant 0 : i32
    %c0_i32_1 = arith.constant 0 : i32
    %c0_i32_2 = arith.constant 0 : i32
    return %c0_i32, %c0_i32_0, %c0_i32_1 : i32, i32, i32
  }
  func.func @transform_10(%arg0: i32) -> (i32, i32, i32) {
    %c0_i32 = arith.constant 0 : i32
    %c0_i32_0 = arith.constant 0 : i32
    %c0_i32_1 = arith.constant 0 : i32
    %c0_i32_2 = arith.constant 0 : i32
    return %c0_i32, %c0_i32_0, %c0_i32_1 : i32, i32, i32
  }
  func.func @transform_11(%arg0: i32) -> (i32, i32, i32) {
    %c0_i32 = arith.constant 0 : i32
    %c0_i32_0 = arith.constant 0 : i32
    %c0_i32_1 = arith.constant 0 : i32
    %c0_i32_2 = arith.constant 0 : i32
    return %c0_i32, %c0_i32_0, %c0_i32_1 : i32, i32, i32
  }
  func.func @transform_12(%arg0: i32) -> (i32, i32, i32) {
    %c0_i32 = arith.constant 0 : i32
    %c0_i32_0 = arith.constant 0 : i32
    %c0_i32_1 = arith.constant 0 : i32
    %c0_i32_2 = arith.constant 0 : i32
    return %c0_i32, %c0_i32_0, %c0_i32_1 : i32, i32, i32
  }
  func.func @transform_13(%arg0: i32) -> (i32, i32, i32) {
    %c0_i32 = arith.constant 0 : i32
    %c0_i32_0 = arith.constant 0 : i32
    %c0_i32_1 = arith.constant 0 : i32
    %c0_i32_2 = arith.constant 0 : i32
    return %c0_i32, %c0_i32_0, %c0_i32_1 : i32, i32, i32
  }
  func.func @transform_14(%arg0: i32) -> (i32, i32, i32) {
    %c0_i32 = arith.constant 0 : i32
    %c0_i32_0 = arith.constant 0 : i32
    %c0_i32_1 = arith.constant 0 : i32
    %c0_i32_2 = arith.constant 0 : i32
    return %c0_i32, %c0_i32_0, %c0_i32_1 : i32, i32, i32
  }
  func.func @transform_15(%arg0: i32) -> (i32, i32, i32) {
    %c0_i32 = arith.constant 0 : i32
    %c0_i32_0 = arith.constant 0 : i32
    %c0_i32_1 = arith.constant 0 : i32
    %c0_i32_2 = arith.constant 0 : i32
    return %c0_i32, %c0_i32_0, %c0_i32_1 : i32, i32, i32
  }
  func.func @transform_16(%arg0: i32) -> (i32, i32, i32) {
    %c0_i32 = arith.constant 0 : i32
    %c0_i32_0 = arith.constant 0 : i32
    %c0_i32_1 = arith.constant 0 : i32
    %c0_i32_2 = arith.constant 0 : i32
    return %c0_i32, %c0_i32_0, %c0_i32_1 : i32, i32, i32
  }
  func.func @transform_17(%arg0: i32) -> (i32, i32, i32) {
    %c0_i32 = arith.constant 0 : i32
    %c0_i32_0 = arith.constant 0 : i32
    %c0_i32_1 = arith.constant 0 : i32
    %c0_i32_2 = arith.constant 0 : i32
    return %c0_i32, %c0_i32_0, %c0_i32_1 : i32, i32, i32
  }
  func.func @transform_18(%arg0: i32) -> (i32, i32, i32) {
    %c0_i32 = arith.constant 0 : i32
    %c0_i32_0 = arith.constant 0 : i32
    %c0_i32_1 = arith.constant 0 : i32
    return %arg0, %c0_i32, %c0_i32_0 : i32, i32, i32
  }
}

</mosaic_0001>

<llo_original>
// kernel: tpu_custom_call.1
$region0: #{tpu_custom_call.1}
  #allocation0 [shape = 'u32[]', space=smem, size = 0x4, offset = 0x4, fixed_abs, tag = 'smem constant byte address 0x4 - core index']
  #allocation1 [shape = 'u32[144,128]{1,0:T(1,128)}', space=vmem, size = 0x12000, scoped, tag = 'internal scratch']
  %s0 = inlined_call_operand.vmem [shape: f32[2,8,32], index: 0, kind: input, shape index: {}]
  %s1 = inlined_call_operand.vmem [shape: f32[2,1,8], index: 1, kind: input, shape index: {}]
  %s2 = inlined_call_operand.vmem [shape: f32[2,2,32,16], index: 2, kind: input, shape index: {}]
  %s3 = inlined_call_operand.vmem [shape: f32[2,2,1,16], index: 3, kind: input, shape index: {}]
  %s4 = inlined_call_operand.vmem [shape: f32[2,2,32,16], index: 4, kind: input, shape index: {}]
  %s5 = inlined_call_operand.vmem [shape: f32[2,2,1,16], index: 5, kind: input, shape index: {}]
  %s6 = inlined_call_operand.vmem [shape: f32[2,2,32,16], index: 6, kind: input, shape index: {}]
  %s7 = inlined_call_operand.vmem [shape: f32[2,2,1,16], index: 7, kind: input, shape index: {}]
  %s8 = inlined_call_operand.vmem [shape: f32[2,2,16,32], index: 8, kind: input, shape index: {}]
  %s9 = inlined_call_operand.vmem [shape: f32[2,1,32], index: 9, kind: input, shape index: {}]
  %s10 = inlined_call_operand.vmem [shape: f32[2,1,32], index: 10, kind: input, shape index: {}]
  %s11 = inlined_call_operand.vmem [shape: f32[2,1,32], index: 11, kind: input, shape index: {}]
  %s12 = inlined_call_operand.vmem [shape: f32[2,32,128], index: 12, kind: input, shape index: {}]
  %s13 = inlined_call_operand.vmem [shape: f32[2,1,128], index: 13, kind: input, shape index: {}]
  %s14 = inlined_call_operand.vmem [shape: f32[2,128,32], index: 14, kind: input, shape index: {}]
  %s15 = inlined_call_operand.vmem [shape: f32[2,1,32], index: 15, kind: input, shape index: {}]
  %s16 = inlined_call_operand.vmem [shape: f32[2,1,32], index: 16, kind: input, shape index: {}]
  %s17 = inlined_call_operand.vmem [shape: f32[2,1,32], index: 17, kind: input, shape index: {}]
  %s18 = inlined_call_operand.hbm [shape: f32[2,8,32], index: 18, kind: output, shape index: {}]
  %s19 = sld [smem:[#allocation0]]
  $region105: #{tpu_custom_call.1} parent=0
    _
  %s21 = ssub.s32 1, %s19
  %s22 = scalar_select 0, %s21, %s19
  $region1: #{tpu_custom_call.1} parent=0
    #allocation2 [shape = 'u8[8192]{0}', space=vmem, size = 0x2000, scoped, tag = 'output window, operand 0']
    #allocation3 [shape = 's32[2]{0}', space=sflag, size = 0x8, scoped, tag = 'scoped memory for tpu_custom_call.1']
    %23 = vsyncpa [#allocation3], 0
    %s24 = scalar_lea.sflag [#allocation3], 1
    %25 = vsyncpa %s24, 0
    loop: start=0, step=1, limit=4
    $region2: #{tpu_custom_call.1} parent=1 // loop_pre_header
      _
    $region3: #{tpu_custom_call.1} parent=1 // loop_header
      %s27 = sphi 0, %s31
      %p28 = scmp.ge.s32.totalorder %s27, 4
      %s37 = sphi 0, %s39
      %s40 = sphi 0, %s37
      %s41 = sphi 0, %s40
      %s57 = sphi 0, %s41
      %s63 = sphi 0, %s65
      %s66 = sphi 0, %s63
      %s67 = sphi 0, %s66
      %s83 = sphi 0, %s67
      %s87 = sphi 0, %s87
      %s89 = sphi 0, %s87
      %s90 = sphi 0, %s89
      %s104 = sphi 0, %s90
      %s108 = sphi 0, %s108
      %s110 = sphi 0, %s108
      %s111 = sphi 0, %s110
      %s125 = sphi 0, %s111
      %s129 = sphi 0, %s129
      %s131 = sphi 0, %s129
      %s132 = sphi 0, %s131
      %s146 = sphi 0, %s132
      %s150 = sphi 0, %s150
      %s152 = sphi 0, %s150
      %s153 = sphi 0, %s152
      %s167 = sphi 0, %s153
      %s171 = sphi 0, %s171
      %s173 = sphi 0, %s171
      %s174 = sphi 0, %s173
      %s188 = sphi 0, %s174
      %s192 = sphi 0, %s192
      %s194 = sphi 0, %s192
      %s195 = sphi 0, %s194
      %s209 = sphi 0, %s195
      %s213 = sphi 0, %s213
      %s215 = sphi 0, %s213
      %s216 = sphi 0, %s215
      %s230 = sphi 0, %s216
      %s234 = sphi 0, %s234
      %s236 = sphi 0, %s234
      %s237 = sphi 0, %s236
      %s251 = sphi 0, %s237
      %s255 = sphi 0, %s255
      %s257 = sphi 0, %s255
      %s258 = sphi 0, %s257
      %s272 = sphi 0, %s258
      %s276 = sphi 0, %s276
      %s278 = sphi 0, %s276
      %s279 = sphi 0, %s278
      %s293 = sphi 0, %s279
      %s297 = sphi 0, %s297
      %s299 = sphi 0, %s297
      %s300 = sphi 0, %s299
      %s314 = sphi 0, %s300
      %s318 = sphi 0, %s318
      %s320 = sphi 0, %s318
      %s321 = sphi 0, %s320
      %s335 = sphi 0, %s321
      %s339 = sphi 0, %s339
      %s341 = sphi 0, %s339
      %s342 = sphi 0, %s341
      %s356 = sphi 0, %s342
      %s360 = sphi 0, %s360
      %s362 = sphi 0, %s360
      %s363 = sphi 0, %s362
      %s377 = sphi 0, %s363
      %s381 = sphi 0, %s381
      %s383 = sphi 0, %s381
      %s384 = sphi 0, %s383
      %s398 = sphi 0, %s384
      %s402 = sphi 0, %s402
      %s404 = sphi 0, %s402
      %s405 = sphi 0, %s404
      %s419 = sphi 0, %s405
      %s425 = sphi 0, %s427
      %s428 = sphi 0, %s425
      %s429 = sphi 0, %s428
      %s445 = sphi 0, %s429
    $region4: #{tpu_custom_call.1} parent=1 // loop_header_branch
      %30 = sbr.rel (%p28) target = $region8
    $region5: #{tpu_custom_call.1} parent=1 // loop_body
      %s32 = ssub.s32 %s27, 1
      %s33 = ssub.s32 %s27, 2
      %s34 = sadd.s32 %s27, 1
      %s35 = ssub.s32 %s27, %s34
      %p36 = scmp.eq.s32.totalorder %s35, 0
      %s38 = sadd.s32 %s37, 1
      %s39 = scalar_select %p36, %s37, %s38
      %p42 = pneg %p36
      %p43 = scmp.eq.s32.totalorder %s27, 1
      %p44 = por %p42, %p43
      %p45 = scmp.ne.s32.totalorder %s37, %s40
      %p46 = scmp.eq.s32.totalorder %s27, 0
      %p47 = por %p45, %p46
      %p48 = scmp.ne.s32.totalorder %s37, %s40
      %p49 = scmp.eq.s32.totalorder %s32, 1
      %p50 = por %p48, %p49
      %p51 = scmp.ne.s32.totalorder %s40, %s41
      %p52 = scmp.eq.s32.totalorder %s32, 0
      %p53 = por %p51, %p52
      %p54 = scmp.ne.s32.totalorder %s40, %s41
      %p55 = scmp.eq.s32.totalorder %s33, 1
      %p56 = por %p54, %p55
      %p58 = scmp.ne.s32.totalorder %s41, %s57
      %p59 = scmp.eq.s32.totalorder %s33, 0
      %p60 = por %p58, %p59
      %s61 = ssub.s32 %s27, %s34
      %p62 = scmp.eq.s32.totalorder %s61, 0
      %s64 = sadd.s32 %s63, 1
      %s65 = scalar_select %p62, %s63, %s64
      %p68 = pneg %p62
      %p69 = scmp.eq.s32.totalorder %s27, 1
      %p70 = por %p68, %p69
      %p71 = scmp.ne.s32.totalorder %s63, %s66
      %p72 = scmp.eq.s32.totalorder %s27, 0
      %p73 = por %p71, %p72
      %p74 = scmp.ne.s32.totalorder %s63, %s66
      %p75 = scmp.eq.s32.totalorder %s32, 1
      %p76 = por %p74, %p75
      %p77 = scmp.ne.s32.totalorder %s66, %s67
      %p78 = scmp.eq.s32.totalorder %s32, 0
      %p79 = por %p77, %p78
      %p80 = scmp.ne.s32.totalorder %s66, %s67
      %p81 = scmp.eq.s32.totalorder %s33, 1
      %p82 = por %p80, %p81
      %p84 = scmp.ne.s32.totalorder %s67, %s83
      %p85 = scmp.eq.s32.totalorder %s33, 0
      %p86 = por %p84, %p85
      %s88 = sadd.s32 %s87, 1
      %p91 = scmp.eq.s32.totalorder %s27, 1
      %p92 = scmp.ne.s32.totalorder %s87, %s89
      %p93 = scmp.eq.s32.totalorder %s27, 0
      %p94 = por %p92, %p93
      %p95 = scmp.ne.s32.totalorder %s87, %s89
      %p96 = scmp.eq.s32.totalorder %s32, 1
      %p97 = por %p95, %p96
      %p98 = scmp.ne.s32.totalorder %s89, %s90
      %p99 = scmp.eq.s32.totalorder %s32, 0
      %p100 = por %p98, %p99
      %p101 = scmp.ne.s32.totalorder %s89, %s90
      %p102 = scmp.eq.s32.totalorder %s33, 1
      %p103 = por %p101, %p102
      %p105 = scmp.ne.s32.totalorder %s90, %s104
      %p106 = scmp.eq.s32.totalorder %s33, 0
      %p107 = por %p105, %p106
      %s109 = sadd.s32 %s108, 1
      %p112 = scmp.eq.s32.totalorder %s27, 1
      %p113 = scmp.ne.s32.totalorder %s108, %s110
      %p114 = scmp.eq.s32.totalorder %s27, 0
      %p115 = por %p113, %p114
      %p116 = scmp.ne.s32.totalorder %s108, %s110
      %p117 = scmp.eq.s32.totalorder %s32, 1
      %p118 = por %p116, %p117
      %p119 = scmp.ne.s32.totalorder %s110, %s111
      %p120 = scmp.eq.s32.totalorder %s32, 0
      %p121 = por %p119, %p120
      %p122 = scmp.ne.s32.totalorder %s110, %s111
      %p123 = scmp.eq.s32.totalorder %s33, 1
      %p124 = por %p122, %p123
      %p126 = scmp.ne.s32.totalorder %s111, %s125
      %p127 = scmp.eq.s32.totalorder %s33, 0
      %p128 = por %p126, %p127
      %s130 = sadd.s32 %s129, 1
      %p133 = scmp.eq.s32.totalorder %s27, 1
      %p134 = scmp.ne.s32.totalorder %s129, %s131
      %p135 = scmp.eq.s32.totalorder %s27, 0
      %p136 = por %p134, %p135
      %p137 = scmp.ne.s32.totalorder %s129, %s131
      %p138 = scmp.eq.s32.totalorder %s32, 1
      %p139 = por %p137, %p138
      %p140 = scmp.ne.s32.totalorder %s131, %s132
      %p141 = scmp.eq.s32.totalorder %s32, 0
      %p142 = por %p140, %p141
      %p143 = scmp.ne.s32.totalorder %s131, %s132
      %p144 = scmp.eq.s32.totalorder %s33, 1
      %p145 = por %p143, %p144
      %p147 = scmp.ne.s32.totalorder %s132, %s146
      %p148 = scmp.eq.s32.totalorder %s33, 0
      %p149 = por %p147, %p148
      %s151 = sadd.s32 %s150, 1
      %p154 = scmp.eq.s32.totalorder %s27, 1
      %p155 = scmp.ne.s32.totalorder %s150, %s152
      %p156 = scmp.eq.s32.totalorder %s27, 0
      %p157 = por %p155, %p156
      %p158 = scmp.ne.s32.totalorder %s150, %s152
      %p159 = scmp.eq.s32.totalorder %s32, 1
      %p160 = por %p158, %p159
      %p161 = scmp.ne.s32.totalorder %s152, %s153
      %p162 = scmp.eq.s32.totalorder %s32, 0
      %p163 = por %p161, %p162
      %p164 = scmp.ne.s32.totalorder %s152, %s153
      %p165 = scmp.eq.s32.totalorder %s33, 1
      %p166 = por %p164, %p165
      %p168 = scmp.ne.s32.totalorder %s153, %s167
      %p169 = scmp.eq.s32.totalorder %s33, 0
      %p170 = por %p168, %p169
      %s172 = sadd.s32 %s171, 1
      %p175 = scmp.eq.s32.totalorder %s27, 1
      %p176 = scmp.ne.s32.totalorder %s171, %s173
      %p177 = scmp.eq.s32.totalorder %s27, 0
      %p178 = por %p176, %p177
      %p179 = scmp.ne.s32.totalorder %s171, %s173
      %p180 = scmp.eq.s32.totalorder %s32, 1
      %p181 = por %p179, %p180
      %p182 = scmp.ne.s32.totalorder %s173, %s174
      %p183 = scmp.eq.s32.totalorder %s32, 0
      %p184 = por %p182, %p183
      %p185 = scmp.ne.s32.totalorder %s173, %s174
      %p186 = scmp.eq.s32.totalorder %s33, 1
      %p187 = por %p185, %p186
      %p189 = scmp.ne.s32.totalorder %s174, %s188
      %p190 = scmp.eq.s32.totalorder %s33, 0
      %p191 = por %p189, %p190
      %s193 = sadd.s32 %s192, 1
      %p196 = scmp.eq.s32.totalorder %s27, 1
      %p197 = scmp.ne.s32.totalorder %s192, %s194
      %p198 = scmp.eq.s32.totalorder %s27, 0
      %p199 = por %p197, %p198
      %p200 = scmp.ne.s32.totalorder %s192, %s194
      %p201 = scmp.eq.s32.totalorder %s32, 1
      %p202 = por %p200, %p201
      %p203 = scmp.ne.s32.totalorder %s194, %s195
      %p204 = scmp.eq.s32.totalorder %s32, 0
      %p205 = por %p203, %p204
      %p206 = scmp.ne.s32.totalorder %s194, %s195
      %p207 = scmp.eq.s32.totalorder %s33, 1
      %p208 = por %p206, %p207
      %p210 = scmp.ne.s32.totalorder %s195, %s209
      %p211 = scmp.eq.s32.totalorder %s33, 0
      %p212 = por %p210, %p211
      %s214 = sadd.s32 %s213, 1
      %p217 = scmp.eq.s32.totalorder %s27, 1
      %p218 = scmp.ne.s32.totalorder %s213, %s215
      %p219 = scmp.eq.s32.totalorder %s27, 0
      %p220 = por %p218, %p219
      %p221 = scmp.ne.s32.totalorder %s213, %s215
      %p222 = scmp.eq.s32.totalorder %s32, 1
      %p223 = por %p221, %p222
      %p224 = scmp.ne.s32.totalorder %s215, %s216
      %p225 = scmp.eq.s32.totalorder %s32, 0
      %p226 = por %p224, %p225
      %p227 = scmp.ne.s32.totalorder %s215, %s216
      %p228 = scmp.eq.s32.totalorder %s33, 1
      %p229 = por %p227, %p228
      %p231 = scmp.ne.s32.totalorder %s216, %s230
      %p232 = scmp.eq.s32.totalorder %s33, 0
      %p233 = por %p231, %p232
      %s235 = sadd.s32 %s234, 1
      %p238 = scmp.eq.s32.totalorder %s27, 1
      %p239 = scmp.ne.s32.totalorder %s234, %s236
      %p240 = scmp.eq.s32.totalorder %s27, 0
      %p241 = por %p239, %p240
      %p242 = scmp.ne.s32.totalorder %s234, %s236
      %p243 = scmp.eq.s32.totalorder %s32, 1
      %p244 = por %p242, %p243
      %p245 = scmp.ne.s32.totalorder %s236, %s237
      %p246 = scmp.eq.s32.totalorder %s32, 0
      %p247 = por %p245, %p246
      %p248 = scmp.ne.s32.totalorder %s236, %s237
      %p249 = scmp.eq.s32.totalorder %s33, 1
      %p250 = por %p248, %p249
      %p252 = scmp.ne.s32.totalorder %s237, %s251
      %p253 = scmp.eq.s32.totalorder %s33, 0
      %p254 = por %p252, %p253
      %s256 = sadd.s32 %s255, 1
      %p259 = scmp.eq.s32.totalorder %s27, 1
      %p260 = scmp.ne.s32.totalorder %s255, %s257
      %p261 = scmp.eq.s32.totalorder %s27, 0
      %p262 = por %p260, %p261
      %p263 = scmp.ne.s32.totalorder %s255, %s257
      %p264 = scmp.eq.s32.totalorder %s32, 1
      %p265 = por %p263, %p264
      %p266 = scmp.ne.s32.totalorder %s257, %s258
      %p267 = scmp.eq.s32.totalorder %s32, 0
      %p268 = por %p266, %p267
      %p269 = scmp.ne.s32.totalorder %s257, %s258
      %p270 = scmp.eq.s32.totalorder %s33, 1
      %p271 = por %p269, %p270
      %p273 = scmp.ne.s32.totalorder %s258, %s272
      %p274 = scmp.eq.s32.totalorder %s33, 0
      %p275 = por %p273, %p274
      %s277 = sadd.s32 %s276, 1
      %p280 = scmp.eq.s32.totalorder %s27, 1
      %p281 = scmp.ne.s32.totalorder %s276, %s278
      %p282 = scmp.eq.s32.totalorder %s27, 0
      %p283 = por %p281, %p282
      %p284 = scmp.ne.s32.totalorder %s276, %s278
      %p285 = scmp.eq.s32.totalorder %s32, 1
      %p286 = por %p284, %p285
      %p287 = scmp.ne.s32.totalorder %s278, %s279
      %p288 = scmp.eq.s32.totalorder %s32, 0
      %p289 = por %p287, %p288
      %p290 = scmp.ne.s32.totalorder %s278, %s279
      %p291 = scmp.eq.s32.totalorder %s33, 1
      %p292 = por %p290, %p291
      %p294 = scmp.ne.s32.totalorder %s279, %s293
      %p295 = scmp.eq.s32.totalorder %s33, 0
      %p296 = por %p294, %p295
      %s298 = sadd.s32 %s297, 1
      %p301 = scmp.eq.s32.totalorder %s27, 1
      %p302 = scmp.ne.s32.totalorder %s297, %s299
      %p303 = scmp.eq.s32.totalorder %s27, 0
      %p304 = por %p302, %p303
      %p305 = scmp.ne.s32.totalorder %s297, %s299
      %p306 = scmp.eq.s32.totalorder %s32, 1
      %p307 = por %p305, %p306
      %p308 = scmp.ne.s32.totalorder %s299, %s300
      %p309 = scmp.eq.s32.totalorder %s32, 0
      %p310 = por %p308, %p309
      %p311 = scmp.ne.s32.totalorder %s299, %s300
      %p312 = scmp.eq.s32.totalorder %s33, 1
      %p313 = por %p311, %p312
      %p315 = scmp.ne.s32.totalorder %s300, %s314
      %p316 = scmp.eq.s32.totalorder %s33, 0
      %p317 = por %p315, %p316
      %s319 = sadd.s32 %s318, 1
      %p322 = scmp.eq.s32.totalorder %s27, 1
      %p323 = scmp.ne.s32.totalorder %s318, %s320
      %p324 = scmp.eq.s32.totalorder %s27, 0
      %p325 = por %p323, %p324
      %p326 = scmp.ne.s32.totalorder %s318, %s320
      %p327 = scmp.eq.s32.totalorder %s32, 1
      %p328 = por %p326, %p327
      %p329 = scmp.ne.s32.totalorder %s320, %s321
      %p330 = scmp.eq.s32.totalorder %s32, 0
      %p331 = por %p329, %p330
      %p332 = scmp.ne.s32.totalorder %s320, %s321
      %p333 = scmp.eq.s32.totalorder %s33, 1
      %p334 = por %p332, %p333
      %p336 = scmp.ne.s32.totalorder %s321, %s335
      %p337 = scmp.eq.s32.totalorder %s33, 0
      %p338 = por %p336, %p337
      %s340 = sadd.s32 %s339, 1
      %p343 = scmp.eq.s32.totalorder %s27, 1
      %p344 = scmp.ne.s32.totalorder %s339, %s341
      %p345 = scmp.eq.s32.totalorder %s27, 0
      %p346 = por %p344, %p345
      %p347 = scmp.ne.s32.totalorder %s339, %s341
      %p348 = scmp.eq.s32.totalorder %s32, 1
      %p349 = por %p347, %p348
      %p350 = scmp.ne.s32.totalorder %s341, %s342
      %p351 = scmp.eq.s32.totalorder %s32, 0
      %p352 = por %p350, %p351
      %p353 = scmp.ne.s32.totalorder %s341, %s342
      %p354 = scmp.eq.s32.totalorder %s33, 1
      %p355 = por %p353, %p354
      %p357 = scmp.ne.s32.totalorder %s342, %s356
      %p358 = scmp.eq.s32.totalorder %s33, 0
      %p359 = por %p357, %p358
      %s361 = sadd.s32 %s360, 1
      %p364 = scmp.eq.s32.totalorder %s27, 1
      %p365 = scmp.ne.s32.totalorder %s360, %s362
      %p366 = scmp.eq.s32.totalorder %s27, 0
      %p367 = por %p365, %p366
      %p368 = scmp.ne.s32.totalorder %s360, %s362
      %p369 = scmp.eq.s32.totalorder %s32, 1
      %p370 = por %p368, %p369
      %p371 = scmp.ne.s32.totalorder %s362, %s363
      %p372 = scmp.eq.s32.totalorder %s32, 0
      %p373 = por %p371, %p372
      %p374 = scmp.ne.s32.totalorder %s362, %s363
      %p375 = scmp.eq.s32.totalorder %s33, 1
      %p376 = por %p374, %p375
      %p378 = scmp.ne.s32.totalorder %s363, %s377
      %p379 = scmp.eq.s32.totalorder %s33, 0
      %p380 = por %p378, %p379
      %s382 = sadd.s32 %s381, 1
      %p385 = scmp.eq.s32.totalorder %s27, 1
      %p386 = scmp.ne.s32.totalorder %s381, %s383
      %p387 = scmp.eq.s32.totalorder %s27, 0
      %p388 = por %p386, %p387
      %p389 = scmp.ne.s32.totalorder %s381, %s383
      %p390 = scmp.eq.s32.totalorder %s32, 1
      %p391 = por %p389, %p390
      %p392 = scmp.ne.s32.totalorder %s383, %s384
      %p393 = scmp.eq.s32.totalorder %s32, 0
      %p394 = por %p392, %p393
      %p395 = scmp.ne.s32.totalorder %s383, %s384
      %p396 = scmp.eq.s32.totalorder %s33, 1
      %p397 = por %p395, %p396
      %p399 = scmp.ne.s32.totalorder %s384, %s398
      %p400 = scmp.eq.s32.totalorder %s33, 0
      %p401 = por %p399, %p400
      %s403 = sadd.s32 %s402, 1
      %p406 = scmp.eq.s32.totalorder %s27, 1
      %p407 = scmp.ne.s32.totalorder %s402, %s404
      %p408 = scmp.eq.s32.totalorder %s27, 0
      %p409 = por %p407, %p408
      %p410 = scmp.ne.s32.totalorder %s402, %s404
      %p411 = scmp.eq.s32.totalorder %s32, 1
      %p412 = por %p410, %p411
      %p413 = scmp.ne.s32.totalorder %s404, %s405
      %p414 = scmp.eq.s32.totalorder %s32, 0
      %p415 = por %p413, %p414
      %p416 = scmp.ne.s32.totalorder %s404, %s405
      %p417 = scmp.eq.s32.totalorder %s33, 1
      %p418 = por %p416, %p417
      %p420 = scmp.ne.s32.totalorder %s405, %s419
      %p421 = scmp.eq.s32.totalorder %s33, 0
      %p422 = por %p420, %p421
      %s423 = ssub.s32 %s27, %s34
      %p424 = scmp.eq.s32.totalorder %s423, 0
      %s426 = sadd.s32 %s425, 1
      %s427 = scalar_select %p424, %s425, %s426
      %p430 = pneg %p424
      %p431 = scmp.eq.s32.totalorder %s27, 1
      %p432 = por %p430, %p431
      %p433 = scmp.ne.s32.totalorder %s425, %s428
      %p434 = scmp.eq.s32.totalorder %s27, 0
      %p435 = por %p433, %p434
      %p436 = scmp.ne.s32.totalorder %s425, %s428
      %p437 = scmp.eq.s32.totalorder %s32, 1
      %p438 = por %p436, %p437
      %p439 = scmp.ne.s32.totalorder %s428, %s429
      %p440 = scmp.eq.s32.totalorder %s32, 0
      %p441 = por %p439, %p440
      %p442 = scmp.ne.s32.totalorder %s428, %s429
      %p443 = scmp.eq.s32.totalorder %s33, 1
      %p444 = por %p442, %p443
      %p446 = scmp.ne.s32.totalorder %s429, %s445
      %p447 = scmp.eq.s32.totalorder %s33, 0
      %p448 = por %p446, %p447
      %p449 = scmp.le.s32.totalorder 1, %s27
      %p450 = scmp.lt.s32.totalorder %s27, 3
      %p451 = pnand %p449, %p450
      %p452 = pneg %p451
      // Predicated region
      $region9: #{tpu_custom_call.1} parent=5 // pred_check
        _
      $region10: #{tpu_custom_call.1} parent=5 // pred_check_branch
        %454 = sbr.rel (%p451) target = $region12
      $region11: #{tpu_custom_call.1} parent=5 // pred_region
        %s455 = ssub.s32 %s27, 1
        // Predicated region
        $region13: #{tpu_custom_call.1} parent=11 // pred_check
          %p456 = pneg %p100
        $region14: #{tpu_custom_call.1} parent=11 // pred_check_branch
          %458 = sbr.rel (%p456) target = $region16
        $region15: #{tpu_custom_call.1} parent=11 // pred_region
          _
        $region16: #{tpu_custom_call.1} parent=11 // pred_fallthru
          _
        // Predicated region
        $region17: #{tpu_custom_call.1} parent=11 // pred_check
          %p459 = pneg %p121
        $region18: #{tpu_custom_call.1} parent=11 // pred_check_branch
          %461 = sbr.rel (%p459) target = $region20
        $region19: #{tpu_custom_call.1} parent=11 // pred_region
          _
        $region20: #{tpu_custom_call.1} parent=11 // pred_fallthru
          _
        // Predicated region
        $region21: #{tpu_custom_call.1} parent=11 // pred_check
          %p462 = pneg %p142
        $region22: #{tpu_custom_call.1} parent=11 // pred_check_branch
          %464 = sbr.rel (%p462) target = $region24
        $region23: #{tpu_custom_call.1} parent=11 // pred_region
          _
        $region24: #{tpu_custom_call.1} parent=11 // pred_fallthru
          _
        // Predicated region
        $region25: #{tpu_custom_call.1} parent=11 // pred_check
          %p465 = pneg %p163
        $region26: #{tpu_custom_call.1} parent=11 // pred_check_branch
          %467 = sbr.rel (%p465) target = $region28
        $region27: #{tpu_custom_call.1} parent=11 // pred_region
          _
        $region28: #{tpu_custom_call.1} parent=11 // pred_fallthru
          _
        // Predicated region
        $region29: #{tpu_custom_call.1} parent=11 // pred_check
          %p468 = pneg %p184
        $region30: #{tpu_custom_call.1} parent=11 // pred_check_branch
          %470 = sbr.rel (%p468) target = $region32
        $region31: #{tpu_custom_call.1} parent=11 // pred_region
          _
        $region32: #{tpu_custom_call.1} parent=11 // pred_fallthru
          _
        // Predicated region
        $region33: #{tpu_custom_call.1} parent=11 // pred_check
          %p471 = pneg %p205
        $region34: #{tpu_custom_call.1} parent=11 // pred_check_branch
          %473 = sbr.rel (%p471) target = $region36
        $region35: #{tpu_custom_call.1} parent=11 // pred_region
          _
        $region36: #{tpu_custom_call.1} parent=11 // pred_fallthru
          _
        // Predicated region
        $region37: #{tpu_custom_call.1} parent=11 // pred_check
          %p474 = pneg %p226
        $region38: #{tpu_custom_call.1} parent=11 // pred_check_branch
          %476 = sbr.rel (%p474) target = $region40
        $region39: #{tpu_custom_call.1} parent=11 // pred_region
          _
        $region40: #{tpu_custom_call.1} parent=11 // pred_fallthru
          _
        // Predicated region
        $region41: #{tpu_custom_call.1} parent=11 // pred_check
          %p477 = pneg %p247
        $region42: #{tpu_custom_call.1} parent=11 // pred_check_branch
          %479 = sbr.rel (%p477) target = $region44
        $region43: #{tpu_custom_call.1} parent=11 // pred_region
          _
        $region44: #{tpu_custom_call.1} parent=11 // pred_fallthru
          _
        // Predicated region
        $region45: #{tpu_custom_call.1} parent=11 // pred_check
          %p480 = pneg %p268
        $region46: #{tpu_custom_call.1} parent=11 // pred_check_branch
          %482 = sbr.rel (%p480) target = $region48
        $region47: #{tpu_custom_call.1} parent=11 // pred_region
          _
        $region48: #{tpu_custom_call.1} parent=11 // pred_fallthru
          _
        // Predicated region
        $region49: #{tpu_custom_call.1} parent=11 // pred_check
          %p483 = pneg %p289
        $region50: #{tpu_custom_call.1} parent=11 // pred_check_branch
          %485 = sbr.rel (%p483) target = $region52
        $region51: #{tpu_custom_call.1} parent=11 // pred_region
          _
        $region52: #{tpu_custom_call.1} parent=11 // pred_fallthru
          _
        // Predicated region
        $region53: #{tpu_custom_call.1} parent=11 // pred_check
          %p486 = pneg %p310
        $region54: #{tpu_custom_call.1} parent=11 // pred_check_branch
          %488 = sbr.rel (%p486) target = $region56
        $region55: #{tpu_custom_call.1} parent=11 // pred_region
          _
        $region56: #{tpu_custom_call.1} parent=11 // pred_fallthru
          _
        // Predicated region
        $region57: #{tpu_custom_call.1} parent=11 // pred_check
          %p489 = pneg %p331
        $region58: #{tpu_custom_call.1} parent=11 // pred_check_branch
          %491 = sbr.rel (%p489) target = $region60
        $region59: #{tpu_custom_call.1} parent=11 // pred_region
          _
        $region60: #{tpu_custom_call.1} parent=11 // pred_fallthru
          _
        // Predicated region
        $region61: #{tpu_custom_call.1} parent=11 // pred_check
          %p492 = pneg %p352
        $region62: #{tpu_custom_call.1} parent=11 // pred_check_branch
          %494 = sbr.rel (%p492) target = $region64
        $region63: #{tpu_custom_call.1} parent=11 // pred_region
          _
        $region64: #{tpu_custom_call.1} parent=11 // pred_fallthru
          _
        // Predicated region
        $region65: #{tpu_custom_call.1} parent=11 // pred_check
          %p495 = pneg %p373
        $region66: #{tpu_custom_call.1} parent=11 // pred_check_branch
          %497 = sbr.rel (%p495) target = $region68
        $region67: #{tpu_custom_call.1} parent=11 // pred_region
          _
        $region68: #{tpu_custom_call.1} parent=11 // pred_fallthru
          _
        // Predicated region
        $region69: #{tpu_custom_call.1} parent=11 // pred_check
          %p498 = pneg %p394
        $region70: #{tpu_custom_call.1} parent=11 // pred_check_branch
          %500 = sbr.rel (%p498) target = $region72
        $region71: #{tpu_custom_call.1} parent=11 // pred_region
          _
        $region72: #{tpu_custom_call.1} parent=11 // pred_fallthru
          _
        // Predicated region
        $region73: #{tpu_custom_call.1} parent=11 // pred_check
          %p501 = pneg %p415
        $region74: #{tpu_custom_call.1} parent=11 // pred_check_branch
          %503 = sbr.rel (%p501) target = $region76
        $region75: #{tpu_custom_call.1} parent=11 // pred_region
          _
        $region76: #{tpu_custom_call.1} parent=11 // pred_fallthru
          _
      $region12: #{tpu_custom_call.1} parent=5 // pred_fallthru
        _
      %p504 = scmp.lt.s32.totalorder %s27, 2
      // Predicated region
      $region77: #{tpu_custom_call.1} parent=5 // pred_check
        %p505 = pneg %p504
      $region78: #{tpu_custom_call.1} parent=5 // pred_check_branch
        %507 = sbr.rel (%p505) target = $region80
      $region79: #{tpu_custom_call.1} parent=5 // pred_region
        // Predicated region
        $region81: #{tpu_custom_call.1} parent=79 // pred_check
          %p508 = pneg %p47
        $region82: #{tpu_custom_call.1} parent=79 // pred_check_branch
          %510 = sbr.rel (%p508) target = $region84
        $region83: #{tpu_custom_call.1} parent=79 // pred_region
          %p511 = scmp.lt.s32.totalorder %s27, 1
          %s512 = scalar_select %p511, %s27, 1
          %s513 = smul.addr %s512, 8
          %s514 = scalar_lea.vmem %s0, %s513
        $region84: #{tpu_custom_call.1} parent=79 // pred_fallthru
          _
        // Predicated region
        $region85: #{tpu_custom_call.1} parent=79 // pred_check
          %p515 = pneg %p73
        $region86: #{tpu_custom_call.1} parent=79 // pred_check_branch
          %517 = sbr.rel (%p515) target = $region88
        $region87: #{tpu_custom_call.1} parent=79 // pred_region
          %p518 = scmp.lt.s32.totalorder %s27, 1
          %s519 = scalar_select %p518, %s27, 1
          %s520 = scalar_lea.vmem %s1, %s519
        $region88: #{tpu_custom_call.1} parent=79 // pred_fallthru
          _
      $region80: #{tpu_custom_call.1} parent=5 // pred_fallthru
        _
      %p521 = scmp.le.s32.totalorder 1, %s27
      %p522 = scmp.lt.s32.totalorder %s27, 3
      %p523 = pnand %p521, %p522
      %p524 = pneg %p523
      // Predicated region
      $region89: #{tpu_custom_call.1} parent=5 // pred_check
        _
      $region90: #{tpu_custom_call.1} parent=5 // pred_check_branch
        %526 = sbr.rel (%p523) target = $region92
      $region91: #{tpu_custom_call.1} parent=5 // pred_region
        %s527 = ssub.s32 %s27, 1
        %p528 = scmp.lt.s32.totalorder %s32, 1
        %s529 = scalar_select %p528, %s32, 1
        %s530 = smul.addr %s529, 8
        %s531 = scalar_lea.vmem %s0, %s530
        %p532 = pneg %p53
        %p533 = pneg %p50
        %p534 = scmp.lt.s32.totalorder %s32, 1
        %s535 = scalar_select %p534, %s32, 1
        %s536 = scalar_lea.vmem %s1, %s535
        %p537 = pneg %p79
        %p538 = pneg %p76
        %p539 = pneg %p100
        %p540 = pneg %p97
        %p541 = pneg %p121
        %p542 = pneg %p118
        %p543 = pneg %p142
        %p544 = pneg %p139
        %p545 = pneg %p163
        %p546 = pneg %p160
        %p547 = pneg %p184
        %p548 = pneg %p181
        %p549 = pneg %p205
        %p550 = pneg %p202
        %p551 = pneg %p226
        %p552 = pneg %p223
        %p553 = pneg %p247
        %p554 = pneg %p244
        %p555 = pneg %p268
        %p556 = pneg %p265
        %p557 = pneg %p289
        %p558 = pneg %p286
        %p559 = pneg %p310
        %p560 = pneg %p307
        %p561 = pneg %p331
        %p562 = pneg %p328
        %p563 = pneg %p352
        %p564 = pneg %p349
        %p565 = pneg %p373
        %p566 = pneg %p370
        %p567 = pneg %p394
        %p568 = pneg %p391
        %p569 = pneg %p415
        %p570 = pneg %p412
        %p571 = pneg %p441
        %p572 = pneg %p438
        %s573 = sand.u32 %s428, 1
        %s574 = scalar_lea.sflag [#allocation3], %s573
        %s575 = sand.u32 %s428, 1
        %s576 = smul.addr %s575, 8
        %s577 = scalar_lea.vmem [#allocation2], %s576
        %p578 = scmp.lt.s32.totalorder %s32, 1
        %s579 = scalar_select %p578, %s32, 1
        %s580 = smul.addr %s579, 8
        %s581 = scalar_lea.vmem %s0, %s580
        %p582 = scmp.lt.s32.totalorder %s32, 1
        %s583 = scalar_select %p582, %s32, 1
        %s584 = scalar_lea.vmem %s1, %s583
        %v585 = vld [vmem:[%s581] sm:$0xff]
        %v586 = vld [vmem:[%s584] sm:$0x1]
        %v587 = vld [vmem:[%s2] sm:$0xff]
        %v588 = vld [vmem:[%s2 + $0x8] sm:$0xff]
        %v589 = vld [vmem:[%s2 + $0x10] sm:$0xff]
        %v590 = vld [vmem:[%s2 + $0x18] sm:$0xff]
        %v591 = vld [vmem:[%s2 + $0x20] sm:$0xff]
        %v592 = vld [vmem:[%s2 + $0x28] sm:$0xff]
        %v593 = vld [vmem:[%s2 + $0x30] sm:$0xff]
        %v594 = vld [vmem:[%s2 + $0x38] sm:$0xff]
        %v595 = vld [vmem:[%s3] sm:$0x1]
        %v596 = vld [vmem:[%s3 + $0x1] sm:$0x1]
        %v599 = vlaneseq
        %v600 = vshrl.u32 %v599, 7
        %v601 = vsub.s32 0, %v600
        %v602 = vrot.slane %v595, %v601
        %v603 = vlaneseq
        %v604 = vshrl.u32 %v603, 7
        %v605 = vsub.s32 0, %v604
        %v606 = vrot.slane %v596, %v605
        %vm609 = vcmask 261120
        %v611 = vsel %vm609, %v585, 0
        %613 = vmatprep.subr.mxu0 0.0
        %614 = vmatpush1.msra.mxu0 %v587
        %615 = vmatprep.subr.mxu0 0.0
        %616 = vmatpush1.msra.mxu0 %v588
        %617 = vmatprep.subr.mxu0 0.0
        %618 = vmatpush1.msra.mxu0 %v589
        %619 = vmatprep.subr.mxu0 0.0
        %620 = vmatpush1.msra.mxu0 %v590
        %621 = vmatprep.subr.mxu0 0.0
        %622 = vmatpush1.msra.mxu0 0.0
        %623 = vmatprep.subr.mxu0 0.0
        %624 = vmatpush1.msra.mxu0 0.0
        %625 = vmatprep.subr.mxu0 0.0
        %626 = vmatpush1.msra.mxu0 0.0
        %627 = vmatprep.subr.mxu0 0.0
        %628 = vmatpush1.msra.mxu0 0.0
        %629 = vmatprep.subr.mxu0 0.0
        %630 = vmatpush1.msra.mxu0 0.0
        %631 = vmatprep.subr.mxu0 0.0
        %632 = vmatpush1.msra.mxu0 0.0
        %633 = vmatprep.subr.mxu0 0.0
        %634 = vmatpush1.msra.mxu0 0.0
        %635 = vmatprep.subr.mxu0 0.0
        %636 = vmatpush1.msra.mxu0 0.0
        %637 = vmatprep.subr.mxu0 0.0
        %638 = vmatpush1.msra.mxu0 0.0
        %639 = vmatprep.subr.mxu0 0.0
        %640 = vmatpush1.msra.mxu0 0.0
        %641 = vmatprep.subr.mxu0 0.0
        %642 = vmatpush1.msra.mxu0 0.0
        %643 = vmatprep.subr.mxu0 0.0
        %644 = vmatpush1.msra.mxu0 0.0
        %645 = vmatprep.subr.mxu0 0.0
        %646 = vmatpush1.msra.mxu0 0.0
        %647 = vmatprep.subr.mxu0 0.0
        %648 = vmatpush1.msra.mxu0 0.0
        %649 = vmatprep.subr.mxu0 0.0
        %650 = vmatpush1.msra.mxu0 0.0
        %651 = vmatprep.subr.mxu0 0.0
        %652 = vmatpush1.msra.mxu0 0.0
        %653 = vmatprep.subr.mxu0 0.0
        %654 = vmatpush1.msra.mxu0 0.0
        %655 = vmatprep.subr.mxu0 0.0
        %656 = vmatpush1.msra.mxu0 0.0
        %657 = vmatprep.subr.mxu0 0.0
        %658 = vmatpush1.msra.mxu0 0.0
        %659 = vmatprep.subr.mxu0 0.0
        %660 = vmatpush1.msra.mxu0 0.0
        %661 = vmatprep.subr.mxu0 0.0
        %662 = vmatpush1.msra.mxu0 0.0
        %663 = vmatprep.subr.mxu0 0.0
        %664 = vmatpush1.msra.mxu0 0.0
        %665 = vmatprep.subr.mxu0 0.0
        %666 = vmatpush1.msra.mxu0 0.0
        %667 = vmatprep.subr.mxu0 0.0
        %668 = vmatpush1.msra.mxu0 0.0
        %669 = vmatprep.subr.mxu0 0.0
        %670 = vmatpush1.msra.mxu0 0.0
        %671 = vmatprep.subr.mxu0 0.0
        %672 = vmatpush1.msra.mxu0 0.0
        %673 = vmatprep.subr.mxu0 0.0
        %674 = vmatpush1.msra.mxu0 0.0
        %675 = vmatprep.subr.mxu0 0.0
        %676 = vmatpush1.msra.mxu0 0.0
        %677 = vmatprep.mubr.f32.mxu0 0.0
        %678 = vmatmul.mubr.f32.gmra.mrb[0].mxu0 %v611
        %v679 = vpop.f32.mrb[0].mxu0
        %v680 = vadd.f32 %v602, %v679
        %v681 = vpop.f32.mrb[0].mxu0
        %682 = vdwg.mxu0
        %683 = vmatprep.subr.mxu0 0.0
        %684 = vmatpush1.msra.mxu0 %v591
        %685 = vmatprep.subr.mxu0 0.0
        %686 = vmatpush1.msra.mxu0 %v592
        %687 = vmatprep.subr.mxu0 0.0
        %688 = vmatpush1.msra.mxu0 %v593
        %689 = vmatprep.subr.mxu0 0.0
        %690 = vmatpush1.msra.mxu0 %v594
        %691 = vmatprep.subr.mxu0 0.0
        %692 = vmatpush1.msra.mxu0 0.0
        %693 = vmatprep.subr.mxu0 0.0
        %694 = vmatpush1.msra.mxu0 0.0
        %695 = vmatprep.subr.mxu0 0.0
        %696 = vmatpush1.msra.mxu0 0.0
        %697 = vmatprep.subr.mxu0 0.0
        %698 = vmatpush1.msra.mxu0 0.0
        %699 = vmatprep.subr.mxu0 0.0
        %700 = vmatpush1.msra.mxu0 0.0
        %701 = vmatprep.subr.mxu0 0.0
        %702 = vmatpush1.msra.mxu0 0.0
        %703 = vmatprep.subr.mxu0 0.0
        %704 = vmatpush1.msra.mxu0 0.0
        %705 = vmatprep.subr.mxu0 0.0
        %706 = vmatpush1.msra.mxu0 0.0
        %707 = vmatprep.subr.mxu0 0.0
        %708 = vmatpush1.msra.mxu0 0.0
        %709 = vmatprep.subr.mxu0 0.0
        %710 = vmatpush1.msra.mxu0 0.0
        %711 = vmatprep.subr.mxu0 0.0
        %712 = vmatpush1.msra.mxu0 0.0
        %713 = vmatprep.subr.mxu0 0.0
        %714 = vmatpush1.msra.mxu0 0.0
        %715 = vmatprep.subr.mxu0 0.0
        %716 = vmatpush1.msra.mxu0 0.0
        %717 = vmatprep.subr.mxu0 0.0
        %718 = vmatpush1.msra.mxu0 0.0
        %719 = vmatprep.subr.mxu0 0.0
        %720 = vmatpush1.msra.mxu0 0.0
        %721 = vmatprep.subr.mxu0 0.0
        %722 = vmatpush1.msra.mxu0 0.0
        %723 = vmatprep.subr.mxu0 0.0
        %724 = vmatpush1.msra.mxu0 0.0
        %725 = vmatprep.subr.mxu0 0.0
        %726 = vmatpush1.msra.mxu0 0.0
        %727 = vmatprep.subr.mxu0 0.0
        %728 = vmatpush1.msra.mxu0 0.0
        %729 = vmatprep.subr.mxu0 0.0
        %730 = vmatpush1.msra.mxu0 0.0
        %731 = vmatprep.subr.mxu0 0.0
        %732 = vmatpush1.msra.mxu0 0.0
        %733 = vmatprep.subr.mxu0 0.0
        %734 = vmatpush1.msra.mxu0 0.0
        %735 = vmatprep.subr.mxu0 0.0
        %736 = vmatpush1.msra.mxu0 0.0
        %737 = vmatprep.subr.mxu0 0.0
        %738 = vmatpush1.msra.mxu0 0.0
        %739 = vmatprep.subr.mxu0 0.0
        %740 = vmatpush1.msra.mxu0 0.0
        %741 = vmatprep.subr.mxu0 0.0
        %742 = vmatpush1.msra.mxu0 0.0
        %743 = vmatprep.subr.mxu0 0.0
        %744 = vmatpush1.msra.mxu0 0.0
        %745 = vmatprep.subr.mxu0 0.0
        %746 = vmatpush1.msra.mxu0 0.0
        %747 = vmatprep.mubr.f32.mxu0 0.0
        %748 = vmatmul.mubr.f32.gmra.mrb[0].mxu0 %v611
        %v749 = vpop.f32.mrb[0].mxu0
        %v750 = vadd.f32 %v606, %v749
        %v751 = vpop.f32.mrb[0].mxu0
        %752 = vdwg.mxu0
        %v753 = vld [vmem:[%s4] sm:$0xff]
        %v754 = vld [vmem:[%s4 + $0x8] sm:$0xff]
        %v755 = vld [vmem:[%s4 + $0x10] sm:$0xff]
        %v756 = vld [vmem:[%s4 + $0x18] sm:$0xff]
        %v757 = vld [vmem:[%s4 + $0x20] sm:$0xff]
        %v758 = vld [vmem:[%s4 + $0x28] sm:$0xff]
        %v759 = vld [vmem:[%s4 + $0x30] sm:$0xff]
        %v760 = vld [vmem:[%s4 + $0x38] sm:$0xff]
        %v761 = vld [vmem:[%s5] sm:$0x1]
        %v762 = vld [vmem:[%s5 + $0x1] sm:$0x1]
        %v765 = vlaneseq
        %v766 = vshrl.u32 %v765, 7
        %v767 = vsub.s32 0, %v766
        %v768 = vrot.slane %v761, %v767
        %v769 = vlaneseq
        %v770 = vshrl.u32 %v769, 7
        %v771 = vsub.s32 0, %v770
        %v772 = vrot.slane %v762, %v771
        %775 = vmatprep.subr.mxu0 0.0
        %776 = vmatpush1.msra.mxu0 %v753
        %777 = vmatprep.subr.mxu0 0.0
        %778 = vmatpush1.msra.mxu0 %v754
        %779 = vmatprep.subr.mxu0 0.0
        %780 = vmatpush1.msra.mxu0 %v755
        %781 = vmatprep.subr.mxu0 0.0
        %782 = vmatpush1.msra.mxu0 %v756
        %783 = vmatprep.subr.mxu0 0.0
        %784 = vmatpush1.msra.mxu0 0.0
        %785 = vmatprep.subr.mxu0 0.0
        %786 = vmatpush1.msra.mxu0 0.0
        %787 = vmatprep.subr.mxu0 0.0
        %788 = vmatpush1.msra.mxu0 0.0
        %789 = vmatprep.subr.mxu0 0.0
        %790 = vmatpush1.msra.mxu0 0.0
        %791 = vmatprep.subr.mxu0 0.0
        %792 = vmatpush1.msra.mxu0 0.0
        %793 = vmatprep.subr.mxu0 0.0
        %794 = vmatpush1.msra.mxu0 0.0
        %795 = vmatprep.subr.mxu0 0.0
        %796 = vmatpush1.msra.mxu0 0.0
        %797 = vmatprep.subr.mxu0 0.0
        %798 = vmatpush1.msra.mxu0 0.0
        %799 = vmatprep.subr.mxu0 0.0
        %800 = vmatpush1.msra.mxu0 0.0
        %801 = vmatprep.subr.mxu0 0.0
        %802 = vmatpush1.msra.mxu0 0.0
        %803 = vmatprep.subr.mxu0 0.0
        %804 = vmatpush1.msra.mxu0 0.0
        %805 = vmatprep.subr.mxu0 0.0
        %806 = vmatpush1.msra.mxu0 0.0
        %807 = vmatprep.subr.mxu0 0.0
        %808 = vmatpush1.msra.mxu0 0.0
        %809 = vmatprep.subr.mxu0 0.0
        %810 = vmatpush1.msra.mxu0 0.0
        %811 = vmatprep.subr.mxu0 0.0
        %812 = vmatpush1.msra.mxu0 0.0
        %813 = vmatprep.subr.mxu0 0.0
        %814 = vmatpush1.msra.mxu0 0.0
        %815 = vmatprep.subr.mxu0 0.0
        %816 = vmatpush1.msra.mxu0 0.0
        %817 = vmatprep.subr.mxu0 0.0
        %818 = vmatpush1.msra.mxu0 0.0
        %819 = vmatprep.subr.mxu0 0.0
        %820 = vmatpush1.msra.mxu0 0.0
        %821 = vmatprep.subr.mxu0 0.0
        %822 = vmatpush1.msra.mxu0 0.0
        %823 = vmatprep.subr.mxu0 0.0
        %824 = vmatpush1.msra.mxu0 0.0
        %825 = vmatprep.subr.mxu0 0.0
        %826 = vmatpush1.msra.mxu0 0.0
        %827 = vmatprep.subr.mxu0 0.0
        %828 = vmatpush1.msra.mxu0 0.0
        %829 = vmatprep.subr.mxu0 0.0
        %830 = vmatpush1.msra.mxu0 0.0
        %831 = vmatprep.subr.mxu0 0.0
        %832 = vmatpush1.msra.mxu0 0.0
        %833 = vmatprep.subr.mxu0 0.0
        %834 = vmatpush1.msra.mxu0 0.0
        %835 = vmatprep.subr.mxu0 0.0
        %836 = vmatpush1.msra.mxu0 0.0
        %837 = vmatprep.subr.mxu0 0.0
        %838 = vmatpush1.msra.mxu0 0.0
        %839 = vmatprep.mubr.f32.mxu0 0.0
        %840 = vmatmul.mubr.f32.gmra.mrb[0].mxu0 %v611
        %v841 = vpop.f32.mrb[0].mxu0
        %v842 = vadd.f32 %v768, %v841
        %v843 = vpop.f32.mrb[0].mxu0
        %844 = vdwg.mxu0
        %845 = vmatprep.subr.mxu0 0.0
        %846 = vmatpush1.msra.mxu0 %v757
        %847 = vmatprep.subr.mxu0 0.0
        %848 = vmatpush1.msra.mxu0 %v758
        %849 = vmatprep.subr.mxu0 0.0
        %850 = vmatpush1.msra.mxu0 %v759
        %851 = vmatprep.subr.mxu0 0.0
        %852 = vmatpush1.msra.mxu0 %v760
        %853 = vmatprep.subr.mxu0 0.0
        %854 = vmatpush1.msra.mxu0 0.0
        %855 = vmatprep.subr.mxu0 0.0
        %856 = vmatpush1.msra.mxu0 0.0
        %857 = vmatprep.subr.mxu0 0.0
        %858 = vmatpush1.msra.mxu0 0.0
        %859 = vmatprep.subr.mxu0 0.0
        %860 = vmatpush1.msra.mxu0 0.0
        %861 = vmatprep.subr.mxu0 0.0
        %862 = vmatpush1.msra.mxu0 0.0
        %863 = vmatprep.subr.mxu0 0.0
        %864 = vmatpush1.msra.mxu0 0.0
        %865 = vmatprep.subr.mxu0 0.0
        %866 = vmatpush1.msra.mxu0 0.0
        %867 = vmatprep.subr.mxu0 0.0
        %868 = vmatpush1.msra.mxu0 0.0
        %869 = vmatprep.subr.mxu0 0.0
        %870 = vmatpush1.msra.mxu0 0.0
        %871 = vmatprep.subr.mxu0 0.0
        %872 = vmatpush1.msra.mxu0 0.0
        %873 = vmatprep.subr.mxu0 0.0
        %874 = vmatpush1.msra.mxu0 0.0
        %875 = vmatprep.subr.mxu0 0.0
        %876 = vmatpush1.msra.mxu0 0.0
        %877 = vmatprep.subr.mxu0 0.0
        %878 = vmatpush1.msra.mxu0 0.0
        %879 = vmatprep.subr.mxu0 0.0
        %880 = vmatpush1.msra.mxu0 0.0
        %881 = vmatprep.subr.mxu0 0.0
        %882 = vmatpush1.msra.mxu0 0.0
        %883 = vmatprep.subr.mxu0 0.0
        %884 = vmatpush1.msra.mxu0 0.0
        %885 = vmatprep.subr.mxu0 0.0
        %886 = vmatpush1.msra.mxu0 0.0
        %887 = vmatprep.subr.mxu0 0.0
        %888 = vmatpush1.msra.mxu0 0.0
        %889 = vmatprep.subr.mxu0 0.0
        %890 = vmatpush1.msra.mxu0 0.0
        %891 = vmatprep.subr.mxu0 0.0
        %892 = vmatpush1.msra.mxu0 0.0
        %893 = vmatprep.subr.mxu0 0.0
        %894 = vmatpush1.msra.mxu0 0.0
        %895 = vmatprep.subr.mxu0 0.0
        %896 = vmatpush1.msra.mxu0 0.0
        %897 = vmatprep.subr.mxu0 0.0
        %898 = vmatpush1.msra.mxu0 0.0
        %899 = vmatprep.subr.mxu0 0.0
        %900 = vmatpush1.msra.mxu0 0.0
        %901 = vmatprep.subr.mxu0 0.0
        %902 = vmatpush1.msra.mxu0 0.0
        %903 = vmatprep.subr.mxu0 0.0
        %904 = vmatpush1.msra.mxu0 0.0
        %905 = vmatprep.subr.mxu0 0.0
        %906 = vmatpush1.msra.mxu0 0.0
        %907 = vmatprep.subr.mxu0 0.0
        %908 = vmatpush1.msra.mxu0 0.0
        %909 = vmatprep.mubr.f32.mxu0 0.0
        %910 = vmatmul.mubr.f32.gmra.mrb[0].mxu0 %v611
        %v911 = vpop.f32.mrb[0].mxu0
        %v912 = vadd.f32 %v772, %v911
        %v913 = vpop.f32.mrb[0].mxu0
        %914 = vdwg.mxu0
        %v915 = vld [vmem:[%s6] sm:$0xff]
        %v916 = vld [vmem:[%s6 + $0x8] sm:$0xff]
        %v917 = vld [vmem:[%s6 + $0x10] sm:$0xff]
        %v918 = vld [vmem:[%s6 + $0x18] sm:$0xff]
        %v919 = vld [vmem:[%s6 + $0x20] sm:$0xff]
        %v920 = vld [vmem:[%s6 + $0x28] sm:$0xff]
        %v921 = vld [vmem:[%s6 + $0x30] sm:$0xff]
        %v922 = vld [vmem:[%s6 + $0x38] sm:$0xff]
        %v923 = vld [vmem:[%s7] sm:$0x1]
        %v924 = vld [vmem:[%s7 + $0x1] sm:$0x1]
        %v927 = vlaneseq
        %v928 = vshrl.u32 %v927, 7
        %v929 = vsub.s32 0, %v928
        %v930 = vrot.slane %v923, %v929
        %v931 = vlaneseq
        %v932 = vshrl.u32 %v931, 7
        %v933 = vsub.s32 0, %v932
        %v934 = vrot.slane %v924, %v933
        %937 = vmatprep.subr.mxu0 0.0
        %938 = vmatpush1.msra.mxu0 %v915
        %939 = vmatprep.subr.mxu0 0.0
        %940 = vmatpush1.msra.mxu0 %v916
        %941 = vmatprep.subr.mxu0 0.0
        %942 = vmatpush1.msra.mxu0 %v917
        %943 = vmatprep.subr.mxu0 0.0
        %944 = vmatpush1.msra.mxu0 %v918
        %945 = vmatprep.subr.mxu0 0.0
        %946 = vmatpush1.msra.mxu0 0.0
        %947 = vmatprep.subr.mxu0 0.0
        %948 = vmatpush1.msra.mxu0 0.0
        %949 = vmatprep.subr.mxu0 0.0
        %950 = vmatpush1.msra.mxu0 0.0
        %951 = vmatprep.subr.mxu0 0.0
        %952 = vmatpush1.msra.mxu0 0.0
        %953 = vmatprep.subr.mxu0 0.0
        %954 = vmatpush1.msra.mxu0 0.0
        %955 = vmatprep.subr.mxu0 0.0
        %956 = vmatpush1.msra.mxu0 0.0
        %957 = vmatprep.subr.mxu0 0.0
        %958 = vmatpush1.msra.mxu0 0.0
        %959 = vmatprep.subr.mxu0 0.0
        %960 = vmatpush1.msra.mxu0 0.0
        %961 = vmatprep.subr.mxu0 0.0
        %962 = vmatpush1.msra.mxu0 0.0
        %963 = vmatprep.subr.mxu0 0.0
        %964 = vmatpush1.msra.mxu0 0.0
        %965 = vmatprep.subr.mxu0 0.0
        %966 = vmatpush1.msra.mxu0 0.0
        %967 = vmatprep.subr.mxu0 0.0
        %968 = vmatpush1.msra.mxu0 0.0
        %969 = vmatprep.subr.mxu0 0.0
        %970 = vmatpush1.msra.mxu0 0.0
        %971 = vmatprep.subr.mxu0 0.0
        %972 = vmatpush1.msra.mxu0 0.0
        %973 = vmatprep.subr.mxu0 0.0
        %974 = vmatpush1.msra.mxu0 0.0
        %975 = vmatprep.subr.mxu0 0.0
        %976 = vmatpush1.msra.mxu0 0.0
        %977 = vmatprep.subr.mxu0 0.0
        %978 = vmatpush1.msra.mxu0 0.0
        %979 = vmatprep.subr.mxu0 0.0
        %980 = vmatpush1.msra.mxu0 0.0
        %981 = vmatprep.subr.mxu0 0.0
        %982 = vmatpush1.msra.mxu0 0.0
        %983 = vmatprep.subr.mxu0 0.0
        %984 = vmatpush1.msra.mxu0 0.0
        %985 = vmatprep.subr.mxu0 0.0
        %986 = vmatpush1.msra.mxu0 0.0
        %987 = vmatprep.subr.mxu0 0.0
        %988 = vmatpush1.msra.mxu0 0.0
        %989 = vmatprep.subr.mxu0 0.0
        %990 = vmatpush1.msra.mxu0 0.0
        %991 = vmatprep.subr.mxu0 0.0
        %992 = vmatpush1.msra.mxu0 0.0
        %993 = vmatprep.subr.mxu0 0.0
        %994 = vmatpush1.msra.mxu0 0.0
        %995 = vmatprep.subr.mxu0 0.0
        %996 = vmatpush1.msra.mxu0 0.0
        %997 = vmatprep.subr.mxu0 0.0
        %998 = vmatpush1.msra.mxu0 0.0
        %999 = vmatprep.subr.mxu0 0.0
        %1000 = vmatpush1.msra.mxu0 0.0
        %1001 = vmatprep.mubr.f32.mxu0 0.0
        %1002 = vmatmul.mubr.f32.gmra.mrb[0].mxu0 %v611
        %v1003 = vpop.f32.mrb[0].mxu0
        %v1004 = vadd.f32 %v930, %v1003
        %v1005 = vpop.f32.mrb[0].mxu0
        %1006 = vdwg.mxu0
        %1007 = vmatprep.subr.mxu0 0.0
        %1008 = vmatpush1.msra.mxu0 %v919
        %1009 = vmatprep.subr.mxu0 0.0
        %1010 = vmatpush1.msra.mxu0 %v920
        %1011 = vmatprep.subr.mxu0 0.0
        %1012 = vmatpush1.msra.mxu0 %v921
        %1013 = vmatprep.subr.mxu0 0.0
        %1014 = vmatpush1.msra.mxu0 %v922
        %1015 = vmatprep.subr.mxu0 0.0
        %1016 = vmatpush1.msra.mxu0 0.0
        %1017 = vmatprep.subr.mxu0 0.0
        %1018 = vmatpush1.msra.mxu0 0.0
        %1019 = vmatprep.subr.mxu0 0.0
        %1020 = vmatpush1.msra.mxu0 0.0
        %1021 = vmatprep.subr.mxu0 0.0
        %1022 = vmatpush1.msra.mxu0 0.0
        %1023 = vmatprep.subr.mxu0 0.0
        %1024 = vmatpush1.msra.mxu0 0.0
        %1025 = vmatprep.subr.mxu0 0.0
        %1026 = vmatpush1.msra.mxu0 0.0
        %1027 = vmatprep.subr.mxu0 0.0
        %1028 = vmatpush1.msra.mxu0 0.0
        %1029 = vmatprep.subr.mxu0 0.0
        %1030 = vmatpush1.msra.mxu0 0.0
        %1031 = vmatprep.subr.mxu0 0.0
        %1032 = vmatpush1.msra.mxu0 0.0
        %1033 = vmatprep.subr.mxu0 0.0
        %1034 = vmatpush1.msra.mxu0 0.0
        %1035 = vmatprep.subr.mxu0 0.0
        %1036 = vmatpush1.msra.mxu0 0.0
        %1037 = vmatprep.subr.mxu0 0.0
        %1038 = vmatpush1.msra.mxu0 0.0
        %1039 = vmatprep.subr.mxu0 0.0
        %1040 = vmatpush1.msra.mxu0 0.0
        %1041 = vmatprep.subr.mxu0 0.0
        %1042 = vmatpush1.msra.mxu0 0.0
        %1043 = vmatprep.subr.mxu0 0.0
        %1044 = vmatpush1.msra.mxu0 0.0
        %1045 = vmatprep.subr.mxu0 0.0
        %1046 = vmatpush1.msra.mxu0 0.0
        %1047 = vmatprep.subr.mxu0 0.0
        %1048 = vmatpush1.msra.mxu0 0.0
        %1049 = vmatprep.subr.mxu0 0.0
        %1050 = vmatpush1.msra.mxu0 0.0
        %1051 = vmatprep.subr.mxu0 0.0
        %1052 = vmatpush1.msra.mxu0 0.0
        %1053 = vmatprep.subr.mxu0 0.0
        %1054 = vmatpush1.msra.mxu0 0.0
        %1055 = vmatprep.subr.mxu0 0.0
        %1056 = vmatpush1.msra.mxu0 0.0
        %1057 = vmatprep.subr.mxu0 0.0
        %1058 = vmatpush1.msra.mxu0 0.0
        %1059 = vmatprep.subr.mxu0 0.0
        %1060 = vmatpush1.msra.mxu0 0.0
        %1061 = vmatprep.subr.mxu0 0.0
        %1062 = vmatpush1.msra.mxu0 0.0
        %1063 = vmatprep.subr.mxu0 0.0
        %1064 = vmatpush1.msra.mxu0 0.0
        %1065 = vmatprep.subr.mxu0 0.0
        %1066 = vmatpush1.msra.mxu0 0.0
        %1067 = vmatprep.subr.mxu0 0.0
        %1068 = vmatpush1.msra.mxu0 0.0
        %1069 = vmatprep.subr.mxu0 0.0
        %1070 = vmatpush1.msra.mxu0 0.0
        %1071 = vmatprep.mubr.f32.mxu0 0.0
        %1072 = vmatmul.mubr.f32.gmra.mrb[0].mxu0 %v611
        %v1073 = vpop.f32.mrb[0].mxu0
        %v1074 = vadd.f32 %v934, %v1073
        %v1075 = vpop.f32.mrb[0].mxu0
        %1076 = vdwg.mxu0
        %v1077 = vmul.f32 %v680, 0.25
        %v1078 = vmul.f32 %v750, 0.25
        %v1080 = vlaneseq
        %v1081 = vshrl.u32 %v1080, 7
        %v1082 = vsub.s32 0, %v1081
        %v1083 = vrot.slane %v586, %v1082
        %vm1085 = vcmask 130048
        %v1087 = vsel %vm1085, %v1077, 0
        %v1090 = vsel %vm1085, %v842, 0
        %1092 = vmatprep.subr.mxu0 0.0
        %1093 = vmatpush1.xpose.msra.mxu0 %v1090
        %1094 = vmatprep.subr.mxu0 0.0
        %1095 = vmatpush1.xpose.msra.mxu0 0.0
        %1096 = vmatprep.subr.mxu0 0.0
        %1097 = vmatpush1.xpose.msra.mxu0 0.0
        %1098 = vmatprep.subr.mxu0 0.0
        %1099 = vmatpush1.xpose.msra.mxu0 0.0
        %1100 = vmatprep.subr.mxu0 0.0
        %1101 = vmatpush1.xpose.msra.mxu0 0.0
        %1102 = vmatprep.subr.mxu0 0.0
        %1103 = vmatpush1.xpose.msra.mxu0 0.0
        %1104 = vmatprep.subr.mxu0 0.0
        %1105 = vmatpush1.xpose.msra.mxu0 0.0
        %1106 = vmatprep.subr.mxu0 0.0
        %1107 = vmatpush1.xpose.msra.mxu0 0.0
        %1108 = vmatprep.subr.mxu0 0.0
        %1109 = vmatpush1.xpose.msra.mxu0 0.0
        %1110 = vmatprep.subr.mxu0 0.0
        %1111 = vmatpush1.xpose.msra.mxu0 0.0
        %1112 = vmatprep.subr.mxu0 0.0
        %1113 = vmatpush1.xpose.msra.mxu0 0.0
        %1114 = vmatprep.subr.mxu0 0.0
        %1115 = vmatpush1.xpose.msra.mxu0 0.0
        %1116 = vmatprep.subr.mxu0 0.0
        %1117 = vmatpush1.xpose.msra.mxu0 0.0
        %1118 = vmatprep.subr.mxu0 0.0
        %1119 = vmatpush1.xpose.msra.mxu0 0.0
        %1120 = vmatprep.subr.mxu0 0.0
        %1121 = vmatpush1.xpose.msra.mxu0 0.0
        %1122 = vmatprep.subr.mxu0 0.0
        %1123 = vmatpush1.xpose.msra.mxu0 0.0
        %1124 = vmatprep.subr.mxu0 0.0
        %1125 = vmatpush1.xpose.msra.mxu0 0.0
        %1126 = vmatprep.subr.mxu0 0.0
        %1127 = vmatpush1.xpose.msra.mxu0 0.0
        %1128 = vmatprep.subr.mxu0 0.0
        %1129 = vmatpush1.xpose.msra.mxu0 0.0
        %1130 = vmatprep.subr.mxu0 0.0
        %1131 = vmatpush1.xpose.msra.mxu0 0.0
        %1132 = vmatprep.subr.mxu0 0.0
        %1133 = vmatpush1.xpose.msra.mxu0 0.0
        %1134 = vmatprep.subr.mxu0 0.0
        %1135 = vmatpush1.xpose.msra.mxu0 0.0
        %1136 = vmatprep.subr.mxu0 0.0
        %1137 = vmatpush1.xpose.msra.mxu0 0.0
        %1138 = vmatprep.subr.mxu0 0.0
        %1139 = vmatpush1.xpose.msra.mxu0 0.0
        %1140 = vmatprep.subr.mxu0 0.0
        %1141 = vmatpush1.xpose.msra.mxu0 0.0
        %1142 = vmatprep.subr.mxu0 0.0
        %1143 = vmatpush1.xpose.msra.mxu0 0.0
        %1144 = vmatprep.subr.mxu0 0.0
        %1145 = vmatpush1.xpose.msra.mxu0 0.0
        %1146 = vmatprep.subr.mxu0 0.0
        %1147 = vmatpush1.xpose.msra.mxu0 0.0
        %1148 = vmatprep.subr.mxu0 0.0
        %1149 = vmatpush1.xpose.msra.mxu0 0.0
        %1150 = vmatprep.subr.mxu0 0.0
        %1151 = vmatpush1.xpose.msra.mxu0 0.0
        %1152 = vmatprep.subr.mxu0 0.0
        %1153 = vmatpush1.xpose.msra.mxu0 0.0
        %1154 = vmatprep.subr.mxu0 0.0
        %1155 = vmatpush1.xpose.msra.mxu0 0.0
        %1156 = vmatprep.mubr.f32.mxu0 0.0
        %1157 = vmatmul.mubr.f32.gmra.mrb[0].mxu0 %v1087
        %v1158 = vpop.f32.mrb[0].mxu0
        %v1159 = vadd.f32 %v1083, %v1158
        %v1160 = vpop.f32.mrb[0].mxu0
        %1161 = vdwg.mxu0
        %v1163 = vsel %vm1085, %v1078, 0
        %v1166 = vsel %vm1085, %v912, 0
        %1168 = vmatprep.subr.mxu0 0.0
        %1169 = vmatpush1.xpose.msra.mxu0 %v1166
        %1170 = vmatprep.subr.mxu0 0.0
        %1171 = vmatpush1.xpose.msra.mxu0 0.0
        %1172 = vmatprep.subr.mxu0 0.0
        %1173 = vmatpush1.xpose.msra.mxu0 0.0
        %1174 = vmatprep.subr.mxu0 0.0
        %1175 = vmatpush1.xpose.msra.mxu0 0.0
        %1176 = vmatprep.subr.mxu0 0.0
        %1177 = vmatpush1.xpose.msra.mxu0 0.0
        %1178 = vmatprep.subr.mxu0 0.0
        %1179 = vmatpush1.xpose.msra.mxu0 0.0
        %1180 = vmatprep.subr.mxu0 0.0
        %1181 = vmatpush1.xpose.msra.mxu0 0.0
        %1182 = vmatprep.subr.mxu0 0.0
        %1183 = vmatpush1.xpose.msra.mxu0 0.0
        %1184 = vmatprep.subr.mxu0 0.0
        %1185 = vmatpush1.xpose.msra.mxu0 0.0
        %1186 = vmatprep.subr.mxu0 0.0
        %1187 = vmatpush1.xpose.msra.mxu0 0.0
        %1188 = vmatprep.subr.mxu0 0.0
        %1189 = vmatpush1.xpose.msra.mxu0 0.0
        %1190 = vmatprep.subr.mxu0 0.0
        %1191 = vmatpush1.xpose.msra.mxu0 0.0
        %1192 = vmatprep.subr.mxu0 0.0
        %1193 = vmatpush1.xpose.msra.mxu0 0.0
        %1194 = vmatprep.subr.mxu0 0.0
        %1195 = vmatpush1.xpose.msra.mxu0 0.0
        %1196 = vmatprep.subr.mxu0 0.0
        %1197 = vmatpush1.xpose.msra.mxu0 0.0
        %1198 = vmatprep.subr.mxu0 0.0
        %1199 = vmatpush1.xpose.msra.mxu0 0.0
        %1200 = vmatprep.subr.mxu0 0.0
        %1201 = vmatpush1.xpose.msra.mxu0 0.0
        %1202 = vmatprep.subr.mxu0 0.0
        %1203 = vmatpush1.xpose.msra.mxu0 0.0
        %1204 = vmatprep.subr.mxu0 0.0
        %1205 = vmatpush1.xpose.msra.mxu0 0.0
        %1206 = vmatprep.subr.mxu0 0.0
        %1207 = vmatpush1.xpose.msra.mxu0 0.0
        %1208 = vmatprep.subr.mxu0 0.0
        %1209 = vmatpush1.xpose.msra.mxu0 0.0
        %1210 = vmatprep.subr.mxu0 0.0
        %1211 = vmatpush1.xpose.msra.mxu0 0.0
        %1212 = vmatprep.subr.mxu0 0.0
        %1213 = vmatpush1.xpose.msra.mxu0 0.0
        %1214 = vmatprep.subr.mxu0 0.0
        %1215 = vmatpush1.xpose.msra.mxu0 0.0
        %1216 = vmatprep.subr.mxu0 0.0
        %1217 = vmatpush1.xpose.msra.mxu0 0.0
        %1218 = vmatprep.subr.mxu0 0.0
        %1219 = vmatpush1.xpose.msra.mxu0 0.0
        %1220 = vmatprep.subr.mxu0 0.0
        %1221 = vmatpush1.xpose.msra.mxu0 0.0
        %1222 = vmatprep.subr.mxu0 0.0
        %1223 = vmatpush1.xpose.msra.mxu0 0.0
        %1224 = vmatprep.subr.mxu0 0.0
        %1225 = vmatpush1.xpose.msra.mxu0 0.0
        %1226 = vmatprep.subr.mxu0 0.0
        %1227 = vmatpush1.xpose.msra.mxu0 0.0
        %1228 = vmatprep.subr.mxu0 0.0
        %1229 = vmatpush1.xpose.msra.mxu0 0.0
        %1230 = vmatprep.subr.mxu0 0.0
        %1231 = vmatpush1.xpose.msra.mxu0 0.0
        %1232 = vmatprep.mubr.f32.mxu0 0.0
        %1233 = vmatmul.mubr.f32.gmra.mrb[0].mxu0 %v1163
        %v1234 = vpop.f32.mrb[0].mxu0
        %v1235 = vadd.f32 %v1083, %v1234
        %v1236 = vpop.f32.mrb[0].mxu0
        %1237 = vdwg.mxu0
        %vm1238 = vcmask 64512
        %v1239 = vsel %vm1238, %v1159, -inf
        %1240 = vmax.xlane.f32.xlu0 %v1239
        %v1241 = vpop.xlane.xlu0 %1240
        %v1242 = vsel %vm1238, %v1235, -inf
        %1243 = vmax.xlane.f32.xlu0 %v1242
        %v1244 = vpop.xlane.xlu0 %1243
        %v1245 = vsub.f32 %v1159, %v1241
        %v1246 = vsub.f32 %v1235, %v1244
        %v1247 = vmul.f32 %v1245, 1.442695
        %v1248 = vpow.pop %v1247
        %v1249 = vmul.f32 %v1246, 1.442695
        %v1250 = vpow.pop %v1249
        %v1251 = vsel %vm1238, %v1248, 0.0
        %1252 = vadd.xlane.f32.xlu0 %v1251
        %v1253 = vpop.xlane.xlu0 %1252
        %v1254 = vsel %vm1238, %v1250, 0.0
        %1255 = vadd.xlane.f32.xlu0 %v1254
        %v1256 = vpop.xlane.xlu0 %1255
        %v1257 = vrcp.pop %v1253
        %v1258 = vrcp.pop %v1256
        %v1259 = vmul.f32 %v1248, %v1257
        %v1260 = vmul.f32 %v1250, %v1258
        %v1262 = vsel %vm1238, %v1259, 0
        %1264 = vmatprep.subr.mxu0 0.0
        %1265 = vmatpush1.msra.mxu0 %v1004
        %1266 = vmatprep.subr.mxu0 0.0
        %1267 = vmatpush1.msra.mxu0 0.0
        %1268 = vmatprep.subr.mxu0 0.0
        %1269 = vmatpush1.msra.mxu0 0.0
        %1270 = vmatprep.subr.mxu0 0.0
        %1271 = vmatpush1.msra.mxu0 0.0
        %1272 = vmatprep.subr.mxu0 0.0
        %1273 = vmatpush1.msra.mxu0 0.0
        %1274 = vmatprep.subr.mxu0 0.0
        %1275 = vmatpush1.msra.mxu0 0.0
        %1276 = vmatprep.subr.mxu0 0.0
        %1277 = vmatpush1.msra.mxu0 0.0
        %1278 = vmatprep.subr.mxu0 0.0
        %1279 = vmatpush1.msra.mxu0 0.0
        %1280 = vmatprep.subr.mxu0 0.0
        %1281 = vmatpush1.msra.mxu0 0.0
        %1282 = vmatprep.subr.mxu0 0.0
        %1283 = vmatpush1.msra.mxu0 0.0
        %1284 = vmatprep.subr.mxu0 0.0
        %1285 = vmatpush1.msra.mxu0 0.0
        %1286 = vmatprep.subr.mxu0 0.0
        %1287 = vmatpush1.msra.mxu0 0.0
        %1288 = vmatprep.subr.mxu0 0.0
        %1289 = vmatpush1.msra.mxu0 0.0
        %1290 = vmatprep.subr.mxu0 0.0
        %1291 = vmatpush1.msra.mxu0 0.0
        %1292 = vmatprep.subr.mxu0 0.0
        %1293 = vmatpush1.msra.mxu0 0.0
        %1294 = vmatprep.subr.mxu0 0.0
        %1295 = vmatpush1.msra.mxu0 0.0
        %1296 = vmatprep.subr.mxu0 0.0
        %1297 = vmatpush1.msra.mxu0 0.0
        %1298 = vmatprep.subr.mxu0 0.0
        %1299 = vmatpush1.msra.mxu0 0.0
        %1300 = vmatprep.subr.mxu0 0.0
        %1301 = vmatpush1.msra.mxu0 0.0
        %1302 = vmatprep.subr.mxu0 0.0
        %1303 = vmatpush1.msra.mxu0 0.0
        %1304 = vmatprep.subr.mxu0 0.0
        %1305 = vmatpush1.msra.mxu0 0.0
        %1306 = vmatprep.subr.mxu0 0.0
        %1307 = vmatpush1.msra.mxu0 0.0
        %1308 = vmatprep.subr.mxu0 0.0
        %1309 = vmatpush1.msra.mxu0 0.0
        %1310 = vmatprep.subr.mxu0 0.0
        %1311 = vmatpush1.msra.mxu0 0.0
        %1312 = vmatprep.subr.mxu0 0.0
        %1313 = vmatpush1.msra.mxu0 0.0
        %1314 = vmatprep.subr.mxu0 0.0
        %1315 = vmatpush1.msra.mxu0 0.0
        %1316 = vmatprep.subr.mxu0 0.0
        %1317 = vmatpush1.msra.mxu0 0.0
        %1318 = vmatprep.subr.mxu0 0.0
        %1319 = vmatpush1.msra.mxu0 0.0
        %1320 = vmatprep.subr.mxu0 0.0
        %1321 = vmatpush1.msra.mxu0 0.0
        %1322 = vmatprep.subr.mxu0 0.0
        %1323 = vmatpush1.msra.mxu0 0.0
        %1324 = vmatprep.subr.mxu0 0.0
        %1325 = vmatpush1.msra.mxu0 0.0
        %1326 = vmatprep.subr.mxu0 0.0
        %1327 = vmatpush1.msra.mxu0 0.0
        %1328 = vmatprep.mubr.f32.mxu0 0.0
        %1329 = vmatmul.mubr.f32.gmra.mrb[0].mxu0 %v1262
        %v1330 = vpop.f32.mrb[0].mxu0
        %v1331 = vadd.f32 0.0, %v1330
        %v1332 = vpop.f32.mrb[0].mxu0
        %1333 = vdwg.mxu0
        %v1335 = vsel %vm1238, %v1260, 0
        %1337 = vmatprep.subr.mxu0 0.0
        %1338 = vmatpush1.msra.mxu0 %v1074
        %1339 = vmatprep.subr.mxu0 0.0
        %1340 = vmatpush1.msra.mxu0 0.0
        %1341 = vmatprep.subr.mxu0 0.0
        %1342 = vmatpush1.msra.mxu0 0.0
        %1343 = vmatprep.subr.mxu0 0.0
        %1344 = vmatpush1.msra.mxu0 0.0
        %1345 = vmatprep.subr.mxu0 0.0
        %1346 = vmatpush1.msra.mxu0 0.0
        %1347 = vmatprep.subr.mxu0 0.0
        %1348 = vmatpush1.msra.mxu0 0.0
        %1349 = vmatprep.subr.mxu0 0.0
        %1350 = vmatpush1.msra.mxu0 0.0
        %1351 = vmatprep.subr.mxu0 0.0
        %1352 = vmatpush1.msra.mxu0 0.0
        %1353 = vmatprep.subr.mxu0 0.0
        %1354 = vmatpush1.msra.mxu0 0.0
        %1355 = vmatprep.subr.mxu0 0.0
        %1356 = vmatpush1.msra.mxu0 0.0
        %1357 = vmatprep.subr.mxu0 0.0
        %1358 = vmatpush1.msra.mxu0 0.0
        %1359 = vmatprep.subr.mxu0 0.0
        %1360 = vmatpush1.msra.mxu0 0.0
        %1361 = vmatprep.subr.mxu0 0.0
        %1362 = vmatpush1.msra.mxu0 0.0
        %1363 = vmatprep.subr.mxu0 0.0
        %1364 = vmatpush1.msra.mxu0 0.0
        %1365 = vmatprep.subr.mxu0 0.0
        %1366 = vmatpush1.msra.mxu0 0.0
        %1367 = vmatprep.subr.mxu0 0.0
        %1368 = vmatpush1.msra.mxu0 0.0
        %1369 = vmatprep.subr.mxu0 0.0
        %1370 = vmatpush1.msra.mxu0 0.0
        %1371 = vmatprep.subr.mxu0 0.0
        %1372 = vmatpush1.msra.mxu0 0.0
        %1373 = vmatprep.subr.mxu0 0.0
        %1374 = vmatpush1.msra.mxu0 0.0
        %1375 = vmatprep.subr.mxu0 0.0
        %1376 = vmatpush1.msra.mxu0 0.0
        %1377 = vmatprep.subr.mxu0 0.0
        %1378 = vmatpush1.msra.mxu0 0.0
        %1379 = vmatprep.subr.mxu0 0.0
        %1380 = vmatpush1.msra.mxu0 0.0
        %1381 = vmatprep.subr.mxu0 0.0
        %1382 = vmatpush1.msra.mxu0 0.0
        %1383 = vmatprep.subr.mxu0 0.0
        %1384 = vmatpush1.msra.mxu0 0.0
        %1385 = vmatprep.subr.mxu0 0.0
        %1386 = vmatpush1.msra.mxu0 0.0
        %1387 = vmatprep.subr.mxu0 0.0
        %1388 = vmatpush1.msra.mxu0 0.0
        %1389 = vmatprep.subr.mxu0 0.0
        %1390 = vmatpush1.msra.mxu0 0.0
        %1391 = vmatprep.subr.mxu0 0.0
        %1392 = vmatpush1.msra.mxu0 0.0
        %1393 = vmatprep.subr.mxu0 0.0
        %1394 = vmatpush1.msra.mxu0 0.0
        %1395 = vmatprep.subr.mxu0 0.0
        %1396 = vmatpush1.msra.mxu0 0.0
        %1397 = vmatprep.subr.mxu0 0.0
        %1398 = vmatpush1.msra.mxu0 0.0
        %1399 = vmatprep.subr.mxu0 0.0
        %1400 = vmatpush1.msra.mxu0 0.0
        %1401 = vmatprep.mubr.f32.mxu0 0.0
        %1402 = vmatmul.mubr.f32.gmra.mrb[0].mxu0 %v1335
        %v1403 = vpop.f32.mrb[0].mxu0
        %v1404 = vadd.f32 0.0, %v1403
        %v1405 = vpop.f32.mrb[0].mxu0
        %1406 = vdwg.mxu0
        %v1407 = vld [vmem:[%s8] sm:$0xff]
        %v1408 = vld [vmem:[%s8 + $0x8] sm:$0xff]
        %v1409 = vld [vmem:[%s8 + $0x10] sm:$0xff]
        %v1410 = vld [vmem:[%s8 + $0x18] sm:$0xff]
        %v1412 = vsel %vm1085, %v1331, 0
        %1414 = vmatprep.subr.mxu0 0.0
        %1415 = vmatpush1.msra.mxu0 %v1407
        %1416 = vmatprep.subr.mxu0 0.0
        %1417 = vmatpush1.msra.mxu0 %v1408
        %1418 = vmatprep.subr.mxu0 0.0
        %1419 = vmatpush1.msra.mxu0 0.0
        %1420 = vmatprep.subr.mxu0 0.0
        %1421 = vmatpush1.msra.mxu0 0.0
        %1422 = vmatprep.subr.mxu0 0.0
        %1423 = vmatpush1.msra.mxu0 0.0
        %1424 = vmatprep.subr.mxu0 0.0
        %1425 = vmatpush1.msra.mxu0 0.0
        %1426 = vmatprep.subr.mxu0 0.0
        %1427 = vmatpush1.msra.mxu0 0.0
        %1428 = vmatprep.subr.mxu0 0.0
        %1429 = vmatpush1.msra.mxu0 0.0
        %1430 = vmatprep.subr.mxu0 0.0
        %1431 = vmatpush1.msra.mxu0 0.0
        %1432 = vmatprep.subr.mxu0 0.0
        %1433 = vmatpush1.msra.mxu0 0.0
        %1434 = vmatprep.subr.mxu0 0.0
        %1435 = vmatpush1.msra.mxu0 0.0
        %1436 = vmatprep.subr.mxu0 0.0
        %1437 = vmatpush1.msra.mxu0 0.0
        %1438 = vmatprep.subr.mxu0 0.0
        %1439 = vmatpush1.msra.mxu0 0.0
        %1440 = vmatprep.subr.mxu0 0.0
        %1441 = vmatpush1.msra.mxu0 0.0
        %1442 = vmatprep.subr.mxu0 0.0
        %1443 = vmatpush1.msra.mxu0 0.0
        %1444 = vmatprep.subr.mxu0 0.0
        %1445 = vmatpush1.msra.mxu0 0.0
        %1446 = vmatprep.subr.mxu0 0.0
        %1447 = vmatpush1.msra.mxu0 0.0
        %1448 = vmatprep.subr.mxu0 0.0
        %1449 = vmatpush1.msra.mxu0 0.0
        %1450 = vmatprep.subr.mxu0 0.0
        %1451 = vmatpush1.msra.mxu0 0.0
        %1452 = vmatprep.subr.mxu0 0.0
        %1453 = vmatpush1.msra.mxu0 0.0
        %1454 = vmatprep.subr.mxu0 0.0
        %1455 = vmatpush1.msra.mxu0 0.0
        %1456 = vmatprep.subr.mxu0 0.0
        %1457 = vmatpush1.msra.mxu0 0.0
        %1458 = vmatprep.subr.mxu0 0.0
        %1459 = vmatpush1.msra.mxu0 0.0
        %1460 = vmatprep.subr.mxu0 0.0
        %1461 = vmatpush1.msra.mxu0 0.0
        %1462 = vmatprep.subr.mxu0 0.0
        %1463 = vmatpush1.msra.mxu0 0.0
        %1464 = vmatprep.subr.mxu0 0.0
        %1465 = vmatpush1.msra.mxu0 0.0
        %1466 = vmatprep.subr.mxu0 0.0
        %1467 = vmatpush1.msra.mxu0 0.0
        %1468 = vmatprep.subr.mxu0 0.0
        %1469 = vmatpush1.msra.mxu0 0.0
        %1470 = vmatprep.subr.mxu0 0.0
        %1471 = vmatpush1.msra.mxu0 0.0
        %1472 = vmatprep.subr.mxu0 0.0
        %1473 = vmatpush1.msra.mxu0 0.0
        %1474 = vmatprep.subr.mxu0 0.0
        %1475 = vmatpush1.msra.mxu0 0.0
        %1476 = vmatprep.subr.mxu0 0.0
        %1477 = vmatpush1.msra.mxu0 0.0
        %1478 = vmatprep.mubr.f32.mxu0 0.0
        %1479 = vmatmul.mubr.f32.gmra.mrb[0].mxu0 %v1412
        %v1480 = vpop.f32.mrb[0].mxu0
        %v1481 = vadd.f32 0.0, %v1480
        %v1482 = vpop.f32.mrb[0].mxu0
        %1483 = vdwg.mxu0
        %v1485 = vsel %vm1085, %v1404, 0
        %1487 = vmatprep.subr.mxu0 0.0
        %1488 = vmatpush1.msra.mxu0 %v1409
        %1489 = vmatprep.subr.mxu0 0.0
        %1490 = vmatpush1.msra.mxu0 %v1410
        %1491 = vmatprep.subr.mxu0 0.0
        %1492 = vmatpush1.msra.mxu0 0.0
        %1493 = vmatprep.subr.mxu0 0.0
        %1494 = vmatpush1.msra.mxu0 0.0
        %1495 = vmatprep.subr.mxu0 0.0
        %1496 = vmatpush1.msra.mxu0 0.0
        %1497 = vmatprep.subr.mxu0 0.0
        %1498 = vmatpush1.msra.mxu0 0.0
        %1499 = vmatprep.subr.mxu0 0.0
        %1500 = vmatpush1.msra.mxu0 0.0
        %1501 = vmatprep.subr.mxu0 0.0
        %1502 = vmatpush1.msra.mxu0 0.0
        %1503 = vmatprep.subr.mxu0 0.0
        %1504 = vmatpush1.msra.mxu0 0.0
        %1505 = vmatprep.subr.mxu0 0.0
        %1506 = vmatpush1.msra.mxu0 0.0
        %1507 = vmatprep.subr.mxu0 0.0
        %1508 = vmatpush1.msra.mxu0 0.0
        %1509 = vmatprep.subr.mxu0 0.0
        %1510 = vmatpush1.msra.mxu0 0.0
        %1511 = vmatprep.subr.mxu0 0.0
        %1512 = vmatpush1.msra.mxu0 0.0
        %1513 = vmatprep.subr.mxu0 0.0
        %1514 = vmatpush1.msra.mxu0 0.0
        %1515 = vmatprep.subr.mxu0 0.0
        %1516 = vmatpush1.msra.mxu0 0.0
        %1517 = vmatprep.subr.mxu0 0.0
        %1518 = vmatpush1.msra.mxu0 0.0
        %1519 = vmatprep.subr.mxu0 0.0
        %1520 = vmatpush1.msra.mxu0 0.0
        %1521 = vmatprep.subr.mxu0 0.0
        %1522 = vmatpush1.msra.mxu0 0.0
        %1523 = vmatprep.subr.mxu0 0.0
        %1524 = vmatpush1.msra.mxu0 0.0
        %1525 = vmatprep.subr.mxu0 0.0
        %1526 = vmatpush1.msra.mxu0 0.0
        %1527 = vmatprep.subr.mxu0 0.0
        %1528 = vmatpush1.msra.mxu0 0.0
        %1529 = vmatprep.subr.mxu0 0.0
        %1530 = vmatpush1.msra.mxu0 0.0
        %1531 = vmatprep.subr.mxu0 0.0
        %1532 = vmatpush1.msra.mxu0 0.0
        %1533 = vmatprep.subr.mxu0 0.0
        %1534 = vmatpush1.msra.mxu0 0.0
        %1535 = vmatprep.subr.mxu0 0.0
        %1536 = vmatpush1.msra.mxu0 0.0
        %1537 = vmatprep.subr.mxu0 0.0
        %1538 = vmatpush1.msra.mxu0 0.0
        %1539 = vmatprep.subr.mxu0 0.0
        %1540 = vmatpush1.msra.mxu0 0.0
        %1541 = vmatprep.subr.mxu0 0.0
        %1542 = vmatpush1.msra.mxu0 0.0
        %1543 = vmatprep.subr.mxu0 0.0
        %1544 = vmatpush1.msra.mxu0 0.0
        %1545 = vmatprep.subr.mxu0 0.0
        %1546 = vmatpush1.msra.mxu0 0.0
        %1547 = vmatprep.subr.mxu0 0.0
        %1548 = vmatpush1.msra.mxu0 0.0
        %1549 = vmatprep.subr.mxu0 0.0
        %1550 = vmatpush1.msra.mxu0 0.0
        %1551 = vmatprep.mubr.f32.mxu0 0.0
        %1552 = vmatmul.mubr.f32.gmra.mrb[0].mxu0 %v1485
        %v1553 = vpop.f32.mrb[0].mxu0
        %v1554 = vadd.f32 0.0, %v1553
        %v1555 = vpop.f32.mrb[0].mxu0
        %1556 = vdwg.mxu0
        %v1557 = vsel %vm609, %v1481, 0.0
        %v1558 = vsel %vm609, %v1554, 0.0
        %v1559 = vadd.f32 %v1557, %v1558
        %v1560 = vld [vmem:[%s9] sm:$0x1]
        %v1562 = vlaneseq
        %v1563 = vshrl.u32 %v1562, 7
        %v1564 = vsub.s32 0, %v1563
        %v1565 = vrot.slane %v1560, %v1564
        %v1567 = vadd.f32 %v1559, %v1565
        %v1568 = vadd.f32 %v1567, %v585
        %v1569 = vld [vmem:[%s10] sm:$0x1]
        %v1570 = vld [vmem:[%s11] sm:$0x1]
        %v1571 = vsel %vm609, %v1568, 0.0
        %1572 = vadd.xlane.f32.xlu0 %v1571
        %v1573 = vpop.xlane.xlu0 %1572
        %v1574 = vrcp.pop 32.0
        %v1575 = vmul.f32 %v1573, %v1574
        %v1576 = vsub.f32 %v1568, %v1575
        %v1577 = vmul.f32 %v1576, %v1576
        %v1578 = vsel %vm609, %v1577, 0.0
        %1579 = vadd.xlane.f32.xlu0 %v1578
        %v1580 = vpop.xlane.xlu0 %1579
        %v1581 = vmul.f32 %v1580, %v1574
        %v1582 = vadd.f32 %v1581, 1e-12
        %v1583 = vrsqrt.pop %v1582
        %v1584 = vmul.f32 %v1576, %v1583
        %v1586 = vlaneseq
        %v1587 = vshrl.u32 %v1586, 7
        %v1588 = vsub.s32 0, %v1587
        %v1589 = vrot.slane %v1569, %v1588
        %v1591 = vmul.f32 %v1589, %v1584
        %v1593 = vlaneseq
        %v1594 = vshrl.u32 %v1593, 7
        %v1595 = vsub.s32 0, %v1594
        %v1596 = vrot.slane %v1570, %v1595
        %v1598 = vadd.f32 %v1591, %v1596
        %v1599 = vld [vmem:[%s12] sm:$0xff]
        %v1600 = vld [vmem:[%s12 + $0x8] sm:$0xff]
        %v1601 = vld [vmem:[%s12 + $0x10] sm:$0xff]
        %v1602 = vld [vmem:[%s12 + $0x18] sm:$0xff]
        %v1603 = vld [vmem:[%s13] sm:$0x1]
        %v1605 = vlaneseq
        %v1606 = vshrl.u32 %v1605, 7
        %v1607 = vsub.s32 0, %v1606
        %v1608 = vrot.slane %v1603, %v1607
        %v1611 = vsel %vm609, %v1598, 0
        %1613 = vmatprep.subr.mxu0 0.0
        %1614 = vmatpush1.msra.mxu0 %v1599
        %1615 = vmatprep.subr.mxu0 0.0
        %1616 = vmatpush1.msra.mxu0 %v1600
        %1617 = vmatprep.subr.mxu0 0.0
        %1618 = vmatpush1.msra.mxu0 %v1601
        %1619 = vmatprep.subr.mxu0 0.0
        %1620 = vmatpush1.msra.mxu0 %v1602
        %1621 = vmatprep.subr.mxu0 0.0
        %1622 = vmatpush1.msra.mxu0 0.0
        %1623 = vmatprep.subr.mxu0 0.0
        %1624 = vmatpush1.msra.mxu0 0.0
        %1625 = vmatprep.subr.mxu0 0.0
        %1626 = vmatpush1.msra.mxu0 0.0
        %1627 = vmatprep.subr.mxu0 0.0
        %1628 = vmatpush1.msra.mxu0 0.0
        %1629 = vmatprep.subr.mxu0 0.0
        %1630 = vmatpush1.msra.mxu0 0.0
        %1631 = vmatprep.subr.mxu0 0.0
        %1632 = vmatpush1.msra.mxu0 0.0
        %1633 = vmatprep.subr.mxu0 0.0
        %1634 = vmatpush1.msra.mxu0 0.0
        %1635 = vmatprep.subr.mxu0 0.0
        %1636 = vmatpush1.msra.mxu0 0.0
        %1637 = vmatprep.subr.mxu0 0.0
        %1638 = vmatpush1.msra.mxu0 0.0
        %1639 = vmatprep.subr.mxu0 0.0
        %1640 = vmatpush1.msra.mxu0 0.0
        %1641 = vmatprep.subr.mxu0 0.0
        %1642 = vmatpush1.msra.mxu0 0.0
        %1643 = vmatprep.subr.mxu0 0.0
        %1644 = vmatpush1.msra.mxu0 0.0
        %1645 = vmatprep.subr.mxu0 0.0
        %1646 = vmatpush1.msra.mxu0 0.0
        %1647 = vmatprep.subr.mxu0 0.0
        %1648 = vmatpush1.msra.mxu0 0.0
        %1649 = vmatprep.subr.mxu0 0.0
        %1650 = vmatpush1.msra.mxu0 0.0
        %1651 = vmatprep.subr.mxu0 0.0
        %1652 = vmatpush1.msra.mxu0 0.0
        %1653 = vmatprep.subr.mxu0 0.0
        %1654 = vmatpush1.msra.mxu0 0.0
        %1655 = vmatprep.subr.mxu0 0.0
        %1656 = vmatpush1.msra.mxu0 0.0
        %1657 = vmatprep.subr.mxu0 0.0
        %1658 = vmatpush1.msra.mxu0 0.0
        %1659 = vmatprep.subr.mxu0 0.0
        %1660 = vmatpush1.msra.mxu0 0.0
        %1661 = vmatprep.subr.mxu0 0.0
        %1662 = vmatpush1.msra.mxu0 0.0
        %1663 = vmatprep.subr.mxu0 0.0
        %1664 = vmatpush1.msra.mxu0 0.0
        %1665 = vmatprep.subr.mxu0 0.0
        %1666 = vmatpush1.msra.mxu0 0.0
        %1667 = vmatprep.subr.mxu0 0.0
        %1668 = vmatpush1.msra.mxu0 0.0
        %1669 = vmatprep.subr.mxu0 0.0
        %1670 = vmatpush1.msra.mxu0 0.0
        %1671 = vmatprep.subr.mxu0 0.0
        %1672 = vmatpush1.msra.mxu0 0.0
        %1673 = vmatprep.subr.mxu0 0.0
        %1674 = vmatpush1.msra.mxu0 0.0
        %1675 = vmatprep.subr.mxu0 0.0
        %1676 = vmatpush1.msra.mxu0 0.0
        %1677 = vmatprep.mubr.f32.mxu0 0.0
        %1678 = vmatmul.mubr.f32.gmra.mrb[0].mxu0 %v1611
        %v1679 = vpop.f32.mrb[0].mxu0
        %v1680 = vadd.f32 %v1608, %v1679
        %v1681 = vpop.f32.mrb[0].mxu0
        %1682 = vdwg.mxu0
        %v1683 = vmul.f32 %v1680, 0.5
        %v1684 = vmul.f32 %v1680, 0.70710677
        %v1685 = vand.u32 2147483647, %v1684
        %v1686 = vmul.f32 %v1685, 0.5
        %v1687 = vadd.f32 %v1686, 1.0
        %v1688 = vrcp.pop %v1687
        %v1689 = vmul.f32 1.0, %v1688
        %v1690 = vsub.f32 0.0, %v1685
        %v1691 = vmul.f32 %v1690, %v1685
        %v1692 = vsub.f32 %v1691, 1.2655122
        %v1693 = vmul.f32 %v1689, 0.17087276
        %v1694 = vadd.f32 %v1693, -0.82215226
        %v1695 = vmul.f32 %v1689, %v1694
        %v1696 = vadd.f32 %v1695, 1.4885159
        %v1697 = vmul.f32 %v1689, %v1696
        %v1698 = vadd.f32 %v1697, -1.135204
        %v1699 = vmul.f32 %v1689, %v1698
        %v1700 = vadd.f32 %v1699, 0.27886808
        %v1701 = vmul.f32 %v1689, %v1700
        %v1702 = vadd.f32 %v1701, -0.18628806
        %v1703 = vmul.f32 %v1689, %v1702
        %v1704 = vadd.f32 %v1703, 0.09678418
        %v1705 = vmul.f32 %v1689, %v1704
        %v1706 = vadd.f32 %v1705, 0.37409195
        %v1707 = vmul.f32 %v1689, %v1706
        %v1708 = vadd.f32 %v1707, 1.0000237
        %v1709 = vmul.f32 %v1689, %v1708
        %v1710 = vadd.f32 %v1692, %v1709
        %v1711 = vmul.f32 %v1710, 1.442695
        %v1712 = vpow.pop %v1711
        %v1713 = vmul.f32 %v1689, %v1712
        %vm1714 = vcmp.ge.f32.partialorder %v1684, 0.0
        %v1715 = vsub.f32 1.0, %v1713
        %v1716 = vsub.f32 %v1713, 1.0
        %v1717 = vsel %vm1714, %v1715, %v1716
        %v1718 = vadd.f32 %v1717, 1.0
        %v1719 = vmul.f32 %v1683, %v1718
        %v1720 = vld [vmem:[%s14] sm:$0xff]
        %v1721 = vld [vmem:[%s14 + $0x8] sm:$0xff]
        %v1722 = vld [vmem:[%s14 + $0x10] sm:$0xff]
        %v1723 = vld [vmem:[%s14 + $0x18] sm:$0xff]
        %v1724 = vld [vmem:[%s14 + $0x20] sm:$0xff]
        %v1725 = vld [vmem:[%s14 + $0x28] sm:$0xff]
        %v1726 = vld [vmem:[%s14 + $0x30] sm:$0xff]
        %v1727 = vld [vmem:[%s14 + $0x38] sm:$0xff]
        %v1728 = vld [vmem:[%s14 + $0x40] sm:$0xff]
        %v1729 = vld [vmem:[%s14 + $0x48] sm:$0xff]
        %v1730 = vld [vmem:[%s14 + $0x50] sm:$0xff]
        %v1731 = vld [vmem:[%s14 + $0x58] sm:$0xff]
        %v1732 = vld [vmem:[%s14 + $0x60] sm:$0xff]
        %v1733 = vld [vmem:[%s14 + $0x68] sm:$0xff]
        %v1734 = vld [vmem:[%s14 + $0x70] sm:$0xff]
        %v1735 = vld [vmem:[%s14 + $0x78] sm:$0xff]
        %v1736 = vld [vmem:[%s15] sm:$0x1]
        %v1738 = vlaneseq
        %v1739 = vshrl.u32 %v1738, 7
        %v1740 = vsub.s32 0, %v1739
        %v1741 = vrot.slane %v1736, %v1740
        %1743 = vmatprep.subr.mxu0 0.0
        %1744 = vmatpush1.msra.mxu0 %v1720
        %1745 = vmatprep.subr.mxu0 0.0
        %1746 = vmatpush1.msra.mxu0 %v1721
        %1747 = vmatprep.subr.mxu0 0.0
        %1748 = vmatpush1.msra.mxu0 %v1722
        %1749 = vmatprep.subr.mxu0 0.0
        %1750 = vmatpush1.msra.mxu0 %v1723
        %1751 = vmatprep.subr.mxu0 0.0
        %1752 = vmatpush1.msra.mxu0 %v1724
        %1753 = vmatprep.subr.mxu0 0.0
        %1754 = vmatpush1.msra.mxu0 %v1725
        %1755 = vmatprep.subr.mxu0 0.0
        %1756 = vmatpush1.msra.mxu0 %v1726
        %1757 = vmatprep.subr.mxu0 0.0
        %1758 = vmatpush1.msra.mxu0 %v1727
        %1759 = vmatprep.subr.mxu0 0.0
        %1760 = vmatpush1.msra.mxu0 %v1728
        %1761 = vmatprep.subr.mxu0 0.0
        %1762 = vmatpush1.msra.mxu0 %v1729
        %1763 = vmatprep.subr.mxu0 0.0
        %1764 = vmatpush1.msra.mxu0 %v1730
        %1765 = vmatprep.subr.mxu0 0.0
        %1766 = vmatpush1.msra.mxu0 %v1731
        %1767 = vmatprep.subr.mxu0 0.0
        %1768 = vmatpush1.msra.mxu0 %v1732
        %1769 = vmatprep.subr.mxu0 0.0
        %1770 = vmatpush1.msra.mxu0 %v1733
        %1771 = vmatprep.subr.mxu0 0.0
        %1772 = vmatpush1.msra.mxu0 %v1734
        %1773 = vmatprep.subr.mxu0 0.0
        %1774 = vmatpush1.msra.mxu0 %v1735
        %1775 = vmatprep.subr.mxu0 0.0
        %1776 = vmatpush1.msra.mxu0 0.0
        %1777 = vmatprep.subr.mxu0 0.0
        %1778 = vmatpush1.msra.mxu0 0.0
        %1779 = vmatprep.subr.mxu0 0.0
        %1780 = vmatpush1.msra.mxu0 0.0
        %1781 = vmatprep.subr.mxu0 0.0
        %1782 = vmatpush1.msra.mxu0 0.0
        %1783 = vmatprep.subr.mxu0 0.0
        %1784 = vmatpush1.msra.mxu0 0.0
        %1785 = vmatprep.subr.mxu0 0.0
        %1786 = vmatpush1.msra.mxu0 0.0
        %1787 = vmatprep.subr.mxu0 0.0
        %1788 = vmatpush1.msra.mxu0 0.0
        %1789 = vmatprep.subr.mxu0 0.0
        %1790 = vmatpush1.msra.mxu0 0.0
        %1791 = vmatprep.subr.mxu0 0.0
        %1792 = vmatpush1.msra.mxu0 0.0
        %1793 = vmatprep.subr.mxu0 0.0
        %1794 = vmatpush1.msra.mxu0 0.0
        %1795 = vmatprep.subr.mxu0 0.0
        %1796 = vmatpush1.msra.mxu0 0.0
        %1797 = vmatprep.subr.mxu0 0.0
        %1798 = vmatpush1.msra.mxu0 0.0
        %1799 = vmatprep.subr.mxu0 0.0
        %1800 = vmatpush1.msra.mxu0 0.0
        %1801 = vmatprep.subr.mxu0 0.0
        %1802 = vmatpush1.msra.mxu0 0.0
        %1803 = vmatprep.subr.mxu0 0.0
        %1804 = vmatpush1.msra.mxu0 0.0
        %1805 = vmatprep.subr.mxu0 0.0
        %1806 = vmatpush1.msra.mxu0 0.0
        %1807 = vmatprep.mubr.f32.mxu0 0.0
        %1808 = vmatmul.mubr.f32.gmra.mrb[0].mxu0 %v1719
        %v1809 = vpop.f32.mrb[0].mxu0
        %v1810 = vadd.f32 %v1741, %v1809
        %v1811 = vpop.f32.mrb[0].mxu0
        %1812 = vdwg.mxu0
        %v1813 = vadd.f32 %v1810, %v1598
        %v1814 = vld [vmem:[%s16] sm:$0x1]
        %v1815 = vld [vmem:[%s17] sm:$0x1]
        %v1816 = vsel %vm609, %v1813, 0.0
        %1817 = vadd.xlane.f32.xlu0 %v1816
        %v1818 = vpop.xlane.xlu0 %1817
        %v1819 = vmul.f32 %v1818, %v1574
        %v1820 = vsub.f32 %v1813, %v1819
        %v1821 = vmul.f32 %v1820, %v1820
        %v1822 = vsel %vm609, %v1821, 0.0
        %1823 = vadd.xlane.f32.xlu0 %v1822
        %v1824 = vpop.xlane.xlu0 %1823
        %v1825 = vmul.f32 %v1824, %v1574
        %v1826 = vadd.f32 %v1825, 1e-12
        %v1827 = vrsqrt.pop %v1826
        %v1828 = vmul.f32 %v1820, %v1827
        %v1830 = vlaneseq
        %v1831 = vshrl.u32 %v1830, 7
        %v1832 = vsub.s32 0, %v1831
        %v1833 = vrot.slane %v1814, %v1832
        %v1835 = vmul.f32 %v1833, %v1828
        %v1837 = vlaneseq
        %v1838 = vshrl.u32 %v1837, 7
        %v1839 = vsub.s32 0, %v1838
        %v1840 = vrot.slane %v1815, %v1839
        %v1842 = vadd.f32 %v1835, %v1840
        %s1843 = scalar_lea.vmem %s2, 64
        %v1844 = vld [vmem:[%s1843] sm:$0xff]
        %v1845 = vld [vmem:[%s1843 + $0x8] sm:$0xff]
        %v1846 = vld [vmem:[%s1843 + $0x10] sm:$0xff]
        %v1847 = vld [vmem:[%s1843 + $0x18] sm:$0xff]
        %v1848 = vld [vmem:[%s1843 + $0x20] sm:$0xff]
        %v1849 = vld [vmem:[%s1843 + $0x28] sm:$0xff]
        %v1850 = vld [vmem:[%s1843 + $0x30] sm:$0xff]
        %v1851 = vld [vmem:[%s1843 + $0x38] sm:$0xff]
        %s1852 = scalar_lea.vmem %s3, 2
        %v1853 = vld [vmem:[%s1852] sm:$0x1]
        %v1854 = vld [vmem:[%s1852 + $0x1] sm:$0x1]
        %v1857 = vlaneseq
        %v1858 = vshrl.u32 %v1857, 7
        %v1859 = vsub.s32 0, %v1858
        %v1860 = vrot.slane %v1853, %v1859
        %v1861 = vlaneseq
        %v1862 = vshrl.u32 %v1861, 7
        %v1863 = vsub.s32 0, %v1862
        %v1864 = vrot.slane %v1854, %v1863
        %v1868 = vsel %vm609, %v1842, 0
        %1870 = vmatprep.subr.mxu0 0.0
        %1871 = vmatpush1.msra.mxu0 %v1844
        %1872 = vmatprep.subr.mxu0 0.0
        %1873 = vmatpush1.msra.mxu0 %v1845
        %1874 = vmatprep.subr.mxu0 0.0
        %1875 = vmatpush1.msra.mxu0 %v1846
        %1876 = vmatprep.subr.mxu0 0.0
        %1877 = vmatpush1.msra.mxu0 %v1847
        %1878 = vmatprep.subr.mxu0 0.0
        %1879 = vmatpush1.msra.mxu0 0.0
        %1880 = vmatprep.subr.mxu0 0.0
        %1881 = vmatpush1.msra.mxu0 0.0
        %1882 = vmatprep.subr.mxu0 0.0
        %1883 = vmatpush1.msra.mxu0 0.0
        %1884 = vmatprep.subr.mxu0 0.0
        %1885 = vmatpush1.msra.mxu0 0.0
        %1886 = vmatprep.subr.mxu0 0.0
        %1887 = vmatpush1.msra.mxu0 0.0
        %1888 = vmatprep.subr.mxu0 0.0
        %1889 = vmatpush1.msra.mxu0 0.0
        %1890 = vmatprep.subr.mxu0 0.0
        %1891 = vmatpush1.msra.mxu0 0.0
        %1892 = vmatprep.subr.mxu0 0.0
        %1893 = vmatpush1.msra.mxu0 0.0
        %1894 = vmatprep.subr.mxu0 0.0
        %1895 = vmatpush1.msra.mxu0 0.0
        %1896 = vmatprep.subr.mxu0 0.0
        %1897 = vmatpush1.msra.mxu0 0.0
        %1898 = vmatprep.subr.mxu0 0.0
        %1899 = vmatpush1.msra.mxu0 0.0
        %1900 = vmatprep.subr.mxu0 0.0
        %1901 = vmatpush1.msra.mxu0 0.0
        %1902 = vmatprep.subr.mxu0 0.0
        %1903 = vmatpush1.msra.mxu0 0.0
        %1904 = vmatprep.subr.mxu0 0.0
        %1905 = vmatpush1.msra.mxu0 0.0
        %1906 = vmatprep.subr.mxu0 0.0
        %1907 = vmatpush1.msra.mxu0 0.0
        %1908 = vmatprep.subr.mxu0 0.0
        %1909 = vmatpush1.msra.mxu0 0.0
        %1910 = vmatprep.subr.mxu0 0.0
        %1911 = vmatpush1.msra.mxu0 0.0
        %1912 = vmatprep.subr.mxu0 0.0
        %1913 = vmatpush1.msra.mxu0 0.0
        %1914 = vmatprep.subr.mxu0 0.0
        %1915 = vmatpush1.msra.mxu0 0.0
        %1916 = vmatprep.subr.mxu0 0.0
        %1917 = vmatpush1.msra.mxu0 0.0
        %1918 = vmatprep.subr.mxu0 0.0
        %1919 = vmatpush1.msra.mxu0 0.0
        %1920 = vmatprep.subr.mxu0 0.0
        %1921 = vmatpush1.msra.mxu0 0.0
        %1922 = vmatprep.subr.mxu0 0.0
        %1923 = vmatpush1.msra.mxu0 0.0
        %1924 = vmatprep.subr.mxu0 0.0
        %1925 = vmatpush1.msra.mxu0 0.0
        %1926 = vmatprep.subr.mxu0 0.0
        %1927 = vmatpush1.msra.mxu0 0.0
        %1928 = vmatprep.subr.mxu0 0.0
        %1929 = vmatpush1.msra.mxu0 0.0
        %1930 = vmatprep.subr.mxu0 0.0
        %1931 = vmatpush1.msra.mxu0 0.0
        %1932 = vmatprep.subr.mxu0 0.0
        %1933 = vmatpush1.msra.mxu0 0.0
        %1934 = vmatprep.mubr.f32.mxu0 0.0
        %1935 = vmatmul.mubr.f32.gmra.mrb[0].mxu0 %v1868
        %v1936 = vpop.f32.mrb[0].mxu0
        %v1937 = vadd.f32 %v1860, %v1936
        %v1938 = vpop.f32.mrb[0].mxu0
        %1939 = vdwg.mxu0
        %1940 = vmatprep.subr.mxu0 0.0
        %1941 = vmatpush1.msra.mxu0 %v1848
        %1942 = vmatprep.subr.mxu0 0.0
        %1943 = vmatpush1.msra.mxu0 %v1849
        %1944 = vmatprep.subr.mxu0 0.0
        %1945 = vmatpush1.msra.mxu0 %v1850
        %1946 = vmatprep.subr.mxu0 0.0
        %1947 = vmatpush1.msra.mxu0 %v1851
        %1948 = vmatprep.subr.mxu0 0.0
        %1949 = vmatpush1.msra.mxu0 0.0
        %1950 = vmatprep.subr.mxu0 0.0
        %1951 = vmatpush1.msra.mxu0 0.0
        %1952 = vmatprep.subr.mxu0 0.0
        %1953 = vmatpush1.msra.mxu0 0.0
        %1954 = vmatprep.subr.mxu0 0.0
        %1955 = vmatpush1.msra.mxu0 0.0
        %1956 = vmatprep.subr.mxu0 0.0
        %1957 = vmatpush1.msra.mxu0 0.0
        %1958 = vmatprep.subr.mxu0 0.0
        %1959 = vmatpush1.msra.mxu0 0.0
        %1960 = vmatprep.subr.mxu0 0.0
        %1961 = vmatpush1.msra.mxu0 0.0
        %1962 = vmatprep.subr.mxu0 0.0
        %1963 = vmatpush1.msra.mxu0 0.0
        %1964 = vmatprep.subr.mxu0 0.0
        %1965 = vmatpush1.msra.mxu0 0.0
        %1966 = vmatprep.subr.mxu0 0.0
        %1967 = vmatpush1.msra.mxu0 0.0
        %1968 = vmatprep.subr.mxu0 0.0
        %1969 = vmatpush1.msra.mxu0 0.0
        %1970 = vmatprep.subr.mxu0 0.0
        %1971 = vmatpush1.msra.mxu0 0.0
        %1972 = vmatprep.subr.mxu0 0.0
        %1973 = vmatpush1.msra.mxu0 0.0
        %1974 = vmatprep.subr.mxu0 0.0
        %1975 = vmatpush1.msra.mxu0 0.0
        %1976 = vmatprep.subr.mxu0 0.0
        %1977 = vmatpush1.msra.mxu0 0.0
        %1978 = vmatprep.subr.mxu0 0.0
        %1979 = vmatpush1.msra.mxu0 0.0
        %1980 = vmatprep.subr.mxu0 0.0
        %1981 = vmatpush1.msra.mxu0 0.0
        %1982 = vmatprep.subr.mxu0 0.0
        %1983 = vmatpush1.msra.mxu0 0.0
        %1984 = vmatprep.subr.mxu0 0.0
        %1985 = vmatpush1.msra.mxu0 0.0
        %1986 = vmatprep.subr.mxu0 0.0
        %1987 = vmatpush1.msra.mxu0 0.0
        %1988 = vmatprep.subr.mxu0 0.0
        %1989 = vmatpush1.msra.mxu0 0.0
        %1990 = vmatprep.subr.mxu0 0.0
        %1991 = vmatpush1.msra.mxu0 0.0
        %1992 = vmatprep.subr.mxu0 0.0
        %1993 = vmatpush1.msra.mxu0 0.0
        %1994 = vmatprep.subr.mxu0 0.0
        %1995 = vmatpush1.msra.mxu0 0.0
        %1996 = vmatprep.subr.mxu0 0.0
        %1997 = vmatpush1.msra.mxu0 0.0
        %1998 = vmatprep.subr.mxu0 0.0
        %1999 = vmatpush1.msra.mxu0 0.0
        %2000 = vmatprep.subr.mxu0 0.0
        %2001 = vmatpush1.msra.mxu0 0.0
        %2002 = vmatprep.subr.mxu0 0.0
        %2003 = vmatpush1.msra.mxu0 0.0
        %2004 = vmatprep.mubr.f32.mxu0 0.0
        %2005 = vmatmul.mubr.f32.gmra.mrb[0].mxu0 %v1868
        %v2006 = vpop.f32.mrb[0].mxu0
        %v2007 = vadd.f32 %v1864, %v2006
        %v2008 = vpop.f32.mrb[0].mxu0
        %2009 = vdwg.mxu0
        %s2010 = scalar_lea.vmem %s4, 64
        %v2011 = vld [vmem:[%s2010] sm:$0xff]
        %v2012 = vld [vmem:[%s2010 + $0x8] sm:$0xff]
        %v2013 = vld [vmem:[%s2010 + $0x10] sm:$0xff]
        %v2014 = vld [vmem:[%s2010 + $0x18] sm:$0xff]
        %v2015 = vld [vmem:[%s2010 + $0x20] sm:$0xff]
        %v2016 = vld [vmem:[%s2010 + $0x28] sm:$0xff]
        %v2017 = vld [vmem:[%s2010 + $0x30] sm:$0xff]
        %v2018 = vld [vmem:[%s2010 + $0x38] sm:$0xff]
        %s2019 = scalar_lea.vmem %s5, 2
        %v2020 = vld [vmem:[%s2019] sm:$0x1]
        %v2021 = vld [vmem:[%s2019 + $0x1] sm:$0x1]
        %v2024 = vlaneseq
        %v2025 = vshrl.u32 %v2024, 7
        %v2026 = vsub.s32 0, %v2025
        %v2027 = vrot.slane %v2020, %v2026
        %v2028 = vlaneseq
        %v2029 = vshrl.u32 %v2028, 7
        %v2030 = vsub.s32 0, %v2029
        %v2031 = vrot.slane %v2021, %v2030
        %2034 = vmatprep.subr.mxu0 0.0
        %2035 = vmatpush1.msra.mxu0 %v2011
        %2036 = vmatprep.subr.mxu0 0.0
        %2037 = vmatpush1.msra.mxu0 %v2012
        %2038 = vmatprep.subr.mxu0 0.0
        %2039 = vmatpush1.msra.mxu0 %v2013
        %2040 = vmatprep.subr.mxu0 0.0
        %2041 = vmatpush1.msra.mxu0 %v2014
        %2042 = vmatprep.subr.mxu0 0.0
        %2043 = vmatpush1.msra.mxu0 0.0
        %2044 = vmatprep.subr.mxu0 0.0
        %2045 = vmatpush1.msra.mxu0 0.0
        %2046 = vmatprep.subr.mxu0 0.0
        %2047 = vmatpush1.msra.mxu0 0.0
        %2048 = vmatprep.subr.mxu0 0.0
        %2049 = vmatpush1.msra.mxu0 0.0
        %2050 = vmatprep.subr.mxu0 0.0
        %2051 = vmatpush1.msra.mxu0 0.0
        %2052 = vmatprep.subr.mxu0 0.0
        %2053 = vmatpush1.msra.mxu0 0.0
        %2054 = vmatprep.subr.mxu0 0.0
        %2055 = vmatpush1.msra.mxu0 0.0
        %2056 = vmatprep.subr.mxu0 0.0
        %2057 = vmatpush1.msra.mxu0 0.0
        %2058 = vmatprep.subr.mxu0 0.0
        %2059 = vmatpush1.msra.mxu0 0.0
        %2060 = vmatprep.subr.mxu0 0.0
        %2061 = vmatpush1.msra.mxu0 0.0
        %2062 = vmatprep.subr.mxu0 0.0
        %2063 = vmatpush1.msra.mxu0 0.0
        %2064 = vmatprep.subr.mxu0 0.0
        %2065 = vmatpush1.msra.mxu0 0.0
        %2066 = vmatprep.subr.mxu0 0.0
        %2067 = vmatpush1.msra.mxu0 0.0
        %2068 = vmatprep.subr.mxu0 0.0
        %2069 = vmatpush1.msra.mxu0 0.0
        %2070 = vmatprep.subr.mxu0 0.0
        %2071 = vmatpush1.msra.mxu0 0.0
        %2072 = vmatprep.subr.mxu0 0.0
        %2073 = vmatpush1.msra.mxu0 0.0
        %2074 = vmatprep.subr.mxu0 0.0
        %2075 = vmatpush1.msra.mxu0 0.0
        %2076 = vmatprep.subr.mxu0 0.0
        %2077 = vmatpush1.msra.mxu0 0.0
        %2078 = vmatprep.subr.mxu0 0.0
        %2079 = vmatpush1.msra.mxu0 0.0
        %2080 = vmatprep.subr.mxu0 0.0
        %2081 = vmatpush1.msra.mxu0 0.0
        %2082 = vmatprep.subr.mxu0 0.0
        %2083 = vmatpush1.msra.mxu0 0.0
        %2084 = vmatprep.subr.mxu0 0.0
        %2085 = vmatpush1.msra.mxu0 0.0
        %2086 = vmatprep.subr.mxu0 0.0
        %2087 = vmatpush1.msra.mxu0 0.0
        %2088 = vmatprep.subr.mxu0 0.0
        %2089 = vmatpush1.msra.mxu0 0.0
        %2090 = vmatprep.subr.mxu0 0.0
        %2091 = vmatpush1.msra.mxu0 0.0
        %2092 = vmatprep.subr.mxu0 0.0
        %2093 = vmatpush1.msra.mxu0 0.0
        %2094 = vmatprep.subr.mxu0 0.0
        %2095 = vmatpush1.msra.mxu0 0.0
        %2096 = vmatprep.subr.mxu0 0.0
        %2097 = vmatpush1.msra.mxu0 0.0
        %2098 = vmatprep.mubr.f32.mxu0 0.0
        %2099 = vmatmul.mubr.f32.gmra.mrb[0].mxu0 %v1868
        %v2100 = vpop.f32.mrb[0].mxu0
        %v2101 = vadd.f32 %v2027, %v2100
        %v2102 = vpop.f32.mrb[0].mxu0
        %2103 = vdwg.mxu0
        %2104 = vmatprep.subr.mxu0 0.0
        %2105 = vmatpush1.msra.mxu0 %v2015
        %2106 = vmatprep.subr.mxu0 0.0
        %2107 = vmatpush1.msra.mxu0 %v2016
        %2108 = vmatprep.subr.mxu0 0.0
        %2109 = vmatpush1.msra.mxu0 %v2017
        %2110 = vmatprep.subr.mxu0 0.0
        %2111 = vmatpush1.msra.mxu0 %v2018
        %2112 = vmatprep.subr.mxu0 0.0
        %2113 = vmatpush1.msra.mxu0 0.0
        %2114 = vmatprep.subr.mxu0 0.0
        %2115 = vmatpush1.msra.mxu0 0.0
        %2116 = vmatprep.subr.mxu0 0.0
        %2117 = vmatpush1.msra.mxu0 0.0
        %2118 = vmatprep.subr.mxu0 0.0
        %2119 = vmatpush1.msra.mxu0 0.0
        %2120 = vmatprep.subr.mxu0 0.0
        %2121 = vmatpush1.msra.mxu0 0.0
        %2122 = vmatprep.subr.mxu0 0.0
        %2123 = vmatpush1.msra.mxu0 0.0
        %2124 = vmatprep.subr.mxu0 0.0
        %2125 = vmatpush1.msra.mxu0 0.0
        %2126 = vmatprep.subr.mxu0 0.0
        %2127 = vmatpush1.msra.mxu0 0.0
        %2128 = vmatprep.subr.mxu0 0.0
        %2129 = vmatpush1.msra.mxu0 0.0
        %2130 = vmatprep.subr.mxu0 0.0
        %2131 = vmatpush1.msra.mxu0 0.0
        %2132 = vmatprep.subr.mxu0 0.0
        %2133 = vmatpush1.msra.mxu0 0.0
        %2134 = vmatprep.subr.mxu0 0.0
        %2135 = vmatpush1.msra.mxu0 0.0
        %2136 = vmatprep.subr.mxu0 0.0
        %2137 = vmatpush1.msra.mxu0 0.0
        %2138 = vmatprep.subr.mxu0 0.0
        %2139 = vmatpush1.msra.mxu0 0.0
        %2140 = vmatprep.subr.mxu0 0.0
        %2141 = vmatpush1.msra.mxu0 0.0
        %2142 = vmatprep.subr.mxu0 0.0
        %2143 = vmatpush1.msra.mxu0 0.0
        %2144 = vmatprep.subr.mxu0 0.0
        %2145 = vmatpush1.msra.mxu0 0.0
        %2146 = vmatprep.subr.mxu0 0.0
        %2147 = vmatpush1.msra.mxu0 0.0
        %2148 = vmatprep.subr.mxu0 0.0
        %2149 = vmatpush1.msra.mxu0 0.0
        %2150 = vmatprep.subr.mxu0 0.0
        %2151 = vmatpush1.msra.mxu0 0.0
        %2152 = vmatprep.subr.mxu0 0.0
        %2153 = vmatpush1.msra.mxu0 0.0
        %2154 = vmatprep.subr.mxu0 0.0
        %2155 = vmatpush1.msra.mxu0 0.0
        %2156 = vmatprep.subr.mxu0 0.0
        %2157 = vmatpush1.msra.mxu0 0.0
        %2158 = vmatprep.subr.mxu0 0.0
        %2159 = vmatpush1.msra.mxu0 0.0
        %2160 = vmatprep.subr.mxu0 0.0
        %2161 = vmatpush1.msra.mxu0 0.0
        %2162 = vmatprep.subr.mxu0 0.0
        %2163 = vmatpush1.msra.mxu0 0.0
        %2164 = vmatprep.subr.mxu0 0.0
        %2165 = vmatpush1.msra.mxu0 0.0
        %2166 = vmatprep.subr.mxu0 0.0
        %2167 = vmatpush1.msra.mxu0 0.0
        %2168 = vmatprep.mubr.f32.mxu0 0.0
        %2169 = vmatmul.mubr.f32.gmra.mrb[0].mxu0 %v1868
        %v2170 = vpop.f32.mrb[0].mxu0
        %v2171 = vadd.f32 %v2031, %v2170
        %v2172 = vpop.f32.mrb[0].mxu0
        %2173 = vdwg.mxu0
        %s2174 = scalar_lea.vmem %s6, 64
        %v2175 = vld [vmem:[%s2174] sm:$0xff]
        %v2176 = vld [vmem:[%s2174 + $0x8] sm:$0xff]
        %v2177 = vld [vmem:[%s2174 + $0x10] sm:$0xff]
        %v2178 = vld [vmem:[%s2174 + $0x18] sm:$0xff]
        %v2179 = vld [vmem:[%s2174 + $0x20] sm:$0xff]
        %v2180 = vld [vmem:[%s2174 + $0x28] sm:$0xff]
        %v2181 = vld [vmem:[%s2174 + $0x30] sm:$0xff]
        %v2182 = vld [vmem:[%s2174 + $0x38] sm:$0xff]
        %s2183 = scalar_lea.vmem %s7, 2
        %v2184 = vld [vmem:[%s2183] sm:$0x1]
        %v2185 = vld [vmem:[%s2183 + $0x1] sm:$0x1]
        %v2188 = vlaneseq
        %v2189 = vshrl.u32 %v2188, 7
        %v2190 = vsub.s32 0, %v2189
        %v2191 = vrot.slane %v2184, %v2190
        %v2192 = vlaneseq
        %v2193 = vshrl.u32 %v2192, 7
        %v2194 = vsub.s32 0, %v2193
        %v2195 = vrot.slane %v2185, %v2194
        %2198 = vmatprep.subr.mxu0 0.0
        %2199 = vmatpush1.msra.mxu0 %v2175
        %2200 = vmatprep.subr.mxu0 0.0
        %2201 = vmatpush1.msra.mxu0 %v2176
        %2202 = vmatprep.subr.mxu0 0.0
        %2203 = vmatpush1.msra.mxu0 %v2177
        %2204 = vmatprep.subr.mxu0 0.0
        %2205 = vmatpush1.msra.mxu0 %v2178
        %2206 = vmatprep.subr.mxu0 0.0
        %2207 = vmatpush1.msra.mxu0 0.0
        %2208 = vmatprep.subr.mxu0 0.0
        %2209 = vmatpush1.msra.mxu0 0.0
        %2210 = vmatprep.subr.mxu0 0.0
        %2211 = vmatpush1.msra.mxu0 0.0
        %2212 = vmatprep.subr.mxu0 0.0
        %2213 = vmatpush1.msra.mxu0 0.0
        %2214 = vmatprep.subr.mxu0 0.0
        %2215 = vmatpush1.msra.mxu0 0.0
        %2216 = vmatprep.subr.mxu0 0.0
        %2217 = vmatpush1.msra.mxu0 0.0
        %2218 = vmatprep.subr.mxu0 0.0
        %2219 = vmatpush1.msra.mxu0 0.0
        %2220 = vmatprep.subr.mxu0 0.0
        %2221 = vmatpush1.msra.mxu0 0.0
        %2222 = vmatprep.subr.mxu0 0.0
        %2223 = vmatpush1.msra.mxu0 0.0
        %2224 = vmatprep.subr.mxu0 0.0
        %2225 = vmatpush1.msra.mxu0 0.0
        %2226 = vmatprep.subr.mxu0 0.0
        %2227 = vmatpush1.msra.mxu0 0.0
        %2228 = vmatprep.subr.mxu0 0.0
        %2229 = vmatpush1.msra.mxu0 0.0
        %2230 = vmatprep.subr.mxu0 0.0
        %2231 = vmatpush1.msra.mxu0 0.0
        %2232 = vmatprep.subr.mxu0 0.0
        %2233 = vmatpush1.msra.mxu0 0.0
        %2234 = vmatprep.subr.mxu0 0.0
        %2235 = vmatpush1.msra.mxu0 0.0
        %2236 = vmatprep.subr.mxu0 0.0
        %2237 = vmatpush1.msra.mxu0 0.0
        %2238 = vmatprep.subr.mxu0 0.0
        %2239 = vmatpush1.msra.mxu0 0.0
        %2240 = vmatprep.subr.mxu0 0.0
        %2241 = vmatpush1.msra.mxu0 0.0
        %2242 = vmatprep.subr.mxu0 0.0
        %2243 = vmatpush1.msra.mxu0 0.0
        %2244 = vmatprep.subr.mxu0 0.0
        %2245 = vmatpush1.msra.mxu0 0.0
        %2246 = vmatprep.subr.mxu0 0.0
        %2247 = vmatpush1.msra.mxu0 0.0
        %2248 = vmatprep.subr.mxu0 0.0
        %2249 = vmatpush1.msra.mxu0 0.0
        %2250 = vmatprep.subr.mxu0 0.0
        %2251 = vmatpush1.msra.mxu0 0.0
        %2252 = vmatprep.subr.mxu0 0.0
        %2253 = vmatpush1.msra.mxu0 0.0
        %2254 = vmatprep.subr.mxu0 0.0
        %2255 = vmatpush1.msra.mxu0 0.0
        %2256 = vmatprep.subr.mxu0 0.0
        %2257 = vmatpush1.msra.mxu0 0.0
        %2258 = vmatprep.subr.mxu0 0.0
        %2259 = vmatpush1.msra.mxu0 0.0
        %2260 = vmatprep.subr.mxu0 0.0
        %2261 = vmatpush1.msra.mxu0 0.0
        %2262 = vmatprep.mubr.f32.mxu0 0.0
        %2263 = vmatmul.mubr.f32.gmra.mrb[0].mxu0 %v1868
        %v2264 = vpop.f32.mrb[0].mxu0
        %v2265 = vadd.f32 %v2191, %v2264
        %v2266 = vpop.f32.mrb[0].mxu0
        %2267 = vdwg.mxu0
        %2268 = vmatprep.subr.mxu0 0.0
        %2269 = vmatpush1.msra.mxu0 %v2179
        %2270 = vmatprep.subr.mxu0 0.0
        %2271 = vmatpush1.msra.mxu0 %v2180
        %2272 = vmatprep.subr.mxu0 0.0
        %2273 = vmatpush1.msra.mxu0 %v2181
        %2274 = vmatprep.subr.mxu0 0.0
        %2275 = vmatpush1.msra.mxu0 %v2182
        %2276 = vmatprep.subr.mxu0 0.0
        %2277 = vmatpush1.msra.mxu0 0.0
        %2278 = vmatprep.subr.mxu0 0.0
        %2279 = vmatpush1.msra.mxu0 0.0
        %2280 = vmatprep.subr.mxu0 0.0
        %2281 = vmatpush1.msra.mxu0 0.0
        %2282 = vmatprep.subr.mxu0 0.0
        %2283 = vmatpush1.msra.mxu0 0.0
        %2284 = vmatprep.subr.mxu0 0.0
        %2285 = vmatpush1.msra.mxu0 0.0
        %2286 = vmatprep.subr.mxu0 0.0
        %2287 = vmatpush1.msra.mxu0 0.0
        %2288 = vmatprep.subr.mxu0 0.0
        %2289 = vmatpush1.msra.mxu0 0.0
        %2290 = vmatprep.subr.mxu0 0.0
        %2291 = vmatpush1.msra.mxu0 0.0
        %2292 = vmatprep.subr.mxu0 0.0
        %2293 = vmatpush1.msra.mxu0 0.0
        %2294 = vmatprep.subr.mxu0 0.0
        %2295 = vmatpush1.msra.mxu0 0.0
        %2296 = vmatprep.subr.mxu0 0.0
        %2297 = vmatpush1.msra.mxu0 0.0
        %2298 = vmatprep.subr.mxu0 0.0
        %2299 = vmatpush1.msra.mxu0 0.0
        %2300 = vmatprep.subr.mxu0 0.0
        %2301 = vmatpush1.msra.mxu0 0.0
        %2302 = vmatprep.subr.mxu0 0.0
        %2303 = vmatpush1.msra.mxu0 0.0
        %2304 = vmatprep.subr.mxu0 0.0
        %2305 = vmatpush1.msra.mxu0 0.0
        %2306 = vmatprep.subr.mxu0 0.0
        %2307 = vmatpush1.msra.mxu0 0.0
        %2308 = vmatprep.subr.mxu0 0.0
        %2309 = vmatpush1.msra.mxu0 0.0
        %2310 = vmatprep.subr.mxu0 0.0
        %2311 = vmatpush1.msra.mxu0 0.0
        %2312 = vmatprep.subr.mxu0 0.0
        %2313 = vmatpush1.msra.mxu0 0.0
        %2314 = vmatprep.subr.mxu0 0.0
        %2315 = vmatpush1.msra.mxu0 0.0
        %2316 = vmatprep.subr.mxu0 0.0
        %2317 = vmatpush1.msra.mxu0 0.0
        %2318 = vmatprep.subr.mxu0 0.0
        %2319 = vmatpush1.msra.mxu0 0.0
        %2320 = vmatprep.subr.mxu0 0.0
        %2321 = vmatpush1.msra.mxu0 0.0
        %2322 = vmatprep.subr.mxu0 0.0
        %2323 = vmatpush1.msra.mxu0 0.0
        %2324 = vmatprep.subr.mxu0 0.0
        %2325 = vmatpush1.msra.mxu0 0.0
        %2326 = vmatprep.subr.mxu0 0.0
        %2327 = vmatpush1.msra.mxu0 0.0
        %2328 = vmatprep.subr.mxu0 0.0
        %2329 = vmatpush1.msra.mxu0 0.0
        %2330 = vmatprep.subr.mxu0 0.0
        %2331 = vmatpush1.msra.mxu0 0.0
        %2332 = vmatprep.mubr.f32.mxu0 0.0
        %2333 = vmatmul.mubr.f32.gmra.mrb[0].mxu0 %v1868
        %v2334 = vpop.f32.mrb[0].mxu0
        %v2335 = vadd.f32 %v2195, %v2334
        %v2336 = vpop.f32.mrb[0].mxu0
        %2337 = vdwg.mxu0
        %v2338 = vmul.f32 %v1937, 0.25
        %v2339 = vmul.f32 %v2007, 0.25
        %v2341 = vsel %vm1085, %v2338, 0
        %v2344 = vsel %vm1085, %v2101, 0
        %2346 = vmatprep.subr.mxu0 0.0
        %2347 = vmatpush1.xpose.msra.mxu0 %v2344
        %2348 = vmatprep.subr.mxu0 0.0
        %2349 = vmatpush1.xpose.msra.mxu0 0.0
        %2350 = vmatprep.subr.mxu0 0.0
        %2351 = vmatpush1.xpose.msra.mxu0 0.0
        %2352 = vmatprep.subr.mxu0 0.0
        %2353 = vmatpush1.xpose.msra.mxu0 0.0
        %2354 = vmatprep.subr.mxu0 0.0
        %2355 = vmatpush1.xpose.msra.mxu0 0.0
        %2356 = vmatprep.subr.mxu0 0.0
        %2357 = vmatpush1.xpose.msra.mxu0 0.0
        %2358 = vmatprep.subr.mxu0 0.0
        %2359 = vmatpush1.xpose.msra.mxu0 0.0
        %2360 = vmatprep.subr.mxu0 0.0
        %2361 = vmatpush1.xpose.msra.mxu0 0.0
        %2362 = vmatprep.subr.mxu0 0.0
        %2363 = vmatpush1.xpose.msra.mxu0 0.0
        %2364 = vmatprep.subr.mxu0 0.0
        %2365 = vmatpush1.xpose.msra.mxu0 0.0
        %2366 = vmatprep.subr.mxu0 0.0
        %2367 = vmatpush1.xpose.msra.mxu0 0.0
        %2368 = vmatprep.subr.mxu0 0.0
        %2369 = vmatpush1.xpose.msra.mxu0 0.0
        %2370 = vmatprep.subr.mxu0 0.0
        %2371 = vmatpush1.xpose.msra.mxu0 0.0
        %2372 = vmatprep.subr.mxu0 0.0
        %2373 = vmatpush1.xpose.msra.mxu0 0.0
        %2374 = vmatprep.subr.mxu0 0.0
        %2375 = vmatpush1.xpose.msra.mxu0 0.0
        %2376 = vmatprep.subr.mxu0 0.0
        %2377 = vmatpush1.xpose.msra.mxu0 0.0
        %2378 = vmatprep.subr.mxu0 0.0
        %2379 = vmatpush1.xpose.msra.mxu0 0.0
        %2380 = vmatprep.subr.mxu0 0.0
        %2381 = vmatpush1.xpose.msra.mxu0 0.0
        %2382 = vmatprep.subr.mxu0 0.0
        %2383 = vmatpush1.xpose.msra.mxu0 0.0
        %2384 = vmatprep.subr.mxu0 0.0
        %2385 = vmatpush1.xpose.msra.mxu0 0.0
        %2386 = vmatprep.subr.mxu0 0.0
        %2387 = vmatpush1.xpose.msra.mxu0 0.0
        %2388 = vmatprep.subr.mxu0 0.0
        %2389 = vmatpush1.xpose.msra.mxu0 0.0
        %2390 = vmatprep.subr.mxu0 0.0
        %2391 = vmatpush1.xpose.msra.mxu0 0.0
        %2392 = vmatprep.subr.mxu0 0.0
        %2393 = vmatpush1.xpose.msra.mxu0 0.0
        %2394 = vmatprep.subr.mxu0 0.0
        %2395 = vmatpush1.xpose.msra.mxu0 0.0
        %2396 = vmatprep.subr.mxu0 0.0
        %2397 = vmatpush1.xpose.msra.mxu0 0.0
        %2398 = vmatprep.subr.mxu0 0.0
        %2399 = vmatpush1.xpose.msra.mxu0 0.0
        %2400 = vmatprep.subr.mxu0 0.0
        %2401 = vmatpush1.xpose.msra.mxu0 0.0
        %2402 = vmatprep.subr.mxu0 0.0
        %2403 = vmatpush1.xpose.msra.mxu0 0.0
        %2404 = vmatprep.subr.mxu0 0.0
        %2405 = vmatpush1.xpose.msra.mxu0 0.0
        %2406 = vmatprep.subr.mxu0 0.0
        %2407 = vmatpush1.xpose.msra.mxu0 0.0
        %2408 = vmatprep.subr.mxu0 0.0
        %2409 = vmatpush1.xpose.msra.mxu0 0.0
        %2410 = vmatprep.mubr.f32.mxu0 0.0
        %2411 = vmatmul.mubr.f32.gmra.mrb[0].mxu0 %v2341
        %v2412 = vpop.f32.mrb[0].mxu0
        %v2413 = vadd.f32 %v1083, %v2412
        %v2414 = vpop.f32.mrb[0].mxu0
        %2415 = vdwg.mxu0
        %v2417 = vsel %vm1085, %v2339, 0
        %v2420 = vsel %vm1085, %v2171, 0
        %2422 = vmatprep.subr.mxu0 0.0
        %2423 = vmatpush1.xpose.msra.mxu0 %v2420
        %2424 = vmatprep.subr.mxu0 0.0
        %2425 = vmatpush1.xpose.msra.mxu0 0.0
        %2426 = vmatprep.subr.mxu0 0.0
        %2427 = vmatpush1.xpose.msra.mxu0 0.0
        %2428 = vmatprep.subr.mxu0 0.0
        %2429 = vmatpush1.xpose.msra.mxu0 0.0
        %2430 = vmatprep.subr.mxu0 0.0
        %2431 = vmatpush1.xpose.msra.mxu0 0.0
        %2432 = vmatprep.subr.mxu0 0.0
        %2433 = vmatpush1.xpose.msra.mxu0 0.0
        %2434 = vmatprep.subr.mxu0 0.0
        %2435 = vmatpush1.xpose.msra.mxu0 0.0
        %2436 = vmatprep.subr.mxu0 0.0
        %2437 = vmatpush1.xpose.msra.mxu0 0.0
        %2438 = vmatprep.subr.mxu0 0.0
        %2439 = vmatpush1.xpose.msra.mxu0 0.0
        %2440 = vmatprep.subr.mxu0 0.0
        %2441 = vmatpush1.xpose.msra.mxu0 0.0
        %2442 = vmatprep.subr.mxu0 0.0
        %2443 = vmatpush1.xpose.msra.mxu0 0.0
        %2444 = vmatprep.subr.mxu0 0.0
        %2445 = vmatpush1.xpose.msra.mxu0 0.0
        %2446 = vmatprep.subr.mxu0 0.0
        %2447 = vmatpush1.xpose.msra.mxu0 0.0
        %2448 = vmatprep.subr.mxu0 0.0
        %2449 = vmatpush1.xpose.msra.mxu0 0.0
        %2450 = vmatprep.subr.mxu0 0.0
        %2451 = vmatpush1.xpose.msra.mxu0 0.0
        %2452 = vmatprep.subr.mxu0 0.0
        %2453 = vmatpush1.xpose.msra.mxu0 0.0
        %2454 = vmatprep.subr.mxu0 0.0
        %2455 = vmatpush1.xpose.msra.mxu0 0.0
        %2456 = vmatprep.subr.mxu0 0.0
        %2457 = vmatpush1.xpose.msra.mxu0 0.0
        %2458 = vmatprep.subr.mxu0 0.0
        %2459 = vmatpush1.xpose.msra.mxu0 0.0
        %2460 = vmatprep.subr.mxu0 0.0
        %2461 = vmatpush1.xpose.msra.mxu0 0.0
        %2462 = vmatprep.subr.mxu0 0.0
        %2463 = vmatpush1.xpose.msra.mxu0 0.0
        %2464 = vmatprep.subr.mxu0 0.0
        %2465 = vmatpush1.xpose.msra.mxu0 0.0
        %2466 = vmatprep.subr.mxu0 0.0
        %2467 = vmatpush1.xpose.msra.mxu0 0.0
        %2468 = vmatprep.subr.mxu0 0.0
        %2469 = vmatpush1.xpose.msra.mxu0 0.0
        %2470 = vmatprep.subr.mxu0 0.0
        %2471 = vmatpush1.xpose.msra.mxu0 0.0
        %2472 = vmatprep.subr.mxu0 0.0
        %2473 = vmatpush1.xpose.msra.mxu0 0.0
        %2474 = vmatprep.subr.mxu0 0.0
        %2475 = vmatpush1.xpose.msra.mxu0 0.0
        %2476 = vmatprep.subr.mxu0 0.0
        %2477 = vmatpush1.xpose.msra.mxu0 0.0
        %2478 = vmatprep.subr.mxu0 0.0
        %2479 = vmatpush1.xpose.msra.mxu0 0.0
        %2480 = vmatprep.subr.mxu0 0.0
        %2481 = vmatpush1.xpose.msra.mxu0 0.0
        %2482 = vmatprep.subr.mxu0 0.0
        %2483 = vmatpush1.xpose.msra.mxu0 0.0
        %2484 = vmatprep.subr.mxu0 0.0
        %2485 = vmatpush1.xpose.msra.mxu0 0.0
        %2486 = vmatprep.mubr.f32.mxu0 0.0
        %2487 = vmatmul.mubr.f32.gmra.mrb[0].mxu0 %v2417
        %v2488 = vpop.f32.mrb[0].mxu0
        %v2489 = vadd.f32 %v1083, %v2488
        %v2490 = vpop.f32.mrb[0].mxu0
        %2491 = vdwg.mxu0
        %v2492 = vsel %vm1238, %v2413, -inf
        %2493 = vmax.xlane.f32.xlu0 %v2492
        %v2494 = vpop.xlane.xlu0 %2493
        %v2495 = vsel %vm1238, %v2489, -inf
        %2496 = vmax.xlane.f32.xlu0 %v2495
        %v2497 = vpop.xlane.xlu0 %2496
        %v2498 = vsub.f32 %v2413, %v2494
        %v2499 = vsub.f32 %v2489, %v2497
        %v2500 = vmul.f32 %v2498, 1.442695
        %v2501 = vpow.pop %v2500
        %v2502 = vmul.f32 %v2499, 1.442695
        %v2503 = vpow.pop %v2502
        %v2504 = vsel %vm1238, %v2501, 0.0
        %2505 = vadd.xlane.f32.xlu0 %v2504
        %v2506 = vpop.xlane.xlu0 %2505
        %v2507 = vsel %vm1238, %v2503, 0.0
        %2508 = vadd.xlane.f32.xlu0 %v2507
        %v2509 = vpop.xlane.xlu0 %2508
        %v2510 = vrcp.pop %v2506
        %v2511 = vrcp.pop %v2509
        %v2512 = vmul.f32 %v2501, %v2510
        %v2513 = vmul.f32 %v2503, %v2511
        %v2515 = vsel %vm1238, %v2512, 0
        %2517 = vmatprep.subr.mxu0 0.0
        %2518 = vmatpush1.msra.mxu0 %v2265
        %2519 = vmatprep.subr.mxu0 0.0
        %2520 = vmatpush1.msra.mxu0 0.0
        %2521 = vmatprep.subr.mxu0 0.0
        %2522 = vmatpush1.msra.mxu0 0.0
        %2523 = vmatprep.subr.mxu0 0.0
        %2524 = vmatpush1.msra.mxu0 0.0
        %2525 = vmatprep.subr.mxu0 0.0
        %2526 = vmatpush1.msra.mxu0 0.0
        %2527 = vmatprep.subr.mxu0 0.0
        %2528 = vmatpush1.msra.mxu0 0.0
        %2529 = vmatprep.subr.mxu0 0.0
        %2530 = vmatpush1.msra.mxu0 0.0
        %2531 = vmatprep.subr.mxu0 0.0
        %2532 = vmatpush1.msra.mxu0 0.0
        %2533 = vmatprep.subr.mxu0 0.0
        %2534 = vmatpush1.msra.mxu0 0.0
        %2535 = vmatprep.subr.mxu0 0.0
        %2536 = vmatpush1.msra.mxu0 0.0
        %2537 = vmatprep.subr.mxu0 0.0
        %2538 = vmatpush1.msra.mxu0 0.0
        %2539 = vmatprep.subr.mxu0 0.0
        %2540 = vmatpush1.msra.mxu0 0.0
        %2541 = vmatprep.subr.mxu0 0.0
        %2542 = vmatpush1.msra.mxu0 0.0
        %2543 = vmatprep.subr.mxu0 0.0
        %2544 = vmatpush1.msra.mxu0 0.0
        %2545 = vmatprep.subr.mxu0 0.0
        %2546 = vmatpush1.msra.mxu0 0.0
        %2547 = vmatprep.subr.mxu0 0.0
        %2548 = vmatpush1.msra.mxu0 0.0
        %2549 = vmatprep.subr.mxu0 0.0
        %2550 = vmatpush1.msra.mxu0 0.0
        %2551 = vmatprep.subr.mxu0 0.0
        %2552 = vmatpush1.msra.mxu0 0.0
        %2553 = vmatprep.subr.mxu0 0.0
        %2554 = vmatpush1.msra.mxu0 0.0
        %2555 = vmatprep.subr.mxu0 0.0
        %2556 = vmatpush1.msra.mxu0 0.0
        %2557 = vmatprep.subr.mxu0 0.0
        %2558 = vmatpush1.msra.mxu0 0.0
        %2559 = vmatprep.subr.mxu0 0.0
        %2560 = vmatpush1.msra.mxu0 0.0
        %2561 = vmatprep.subr.mxu0 0.0
        %2562 = vmatpush1.msra.mxu0 0.0
        %2563 = vmatprep.subr.mxu0 0.0
        %2564 = vmatpush1.msra.mxu0 0.0
        %2565 = vmatprep.subr.mxu0 0.0
        %2566 = vmatpush1.msra.mxu0 0.0
        %2567 = vmatprep.subr.mxu0 0.0
        %2568 = vmatpush1.msra.mxu0 0.0
        %2569 = vmatprep.subr.mxu0 0.0
        %2570 = vmatpush1.msra.mxu0 0.0
        %2571 = vmatprep.subr.mxu0 0.0
        %2572 = vmatpush1.msra.mxu0 0.0
        %2573 = vmatprep.subr.mxu0 0.0
        %2574 = vmatpush1.msra.mxu0 0.0
        %2575 = vmatprep.subr.mxu0 0.0
        %2576 = vmatpush1.msra.mxu0 0.0
        %2577 = vmatprep.subr.mxu0 0.0
        %2578 = vmatpush1.msra.mxu0 0.0
        %2579 = vmatprep.subr.mxu0 0.0
        %2580 = vmatpush1.msra.mxu0 0.0
        %2581 = vmatprep.mubr.f32.mxu0 0.0
        %2582 = vmatmul.mubr.f32.gmra.mrb[0].mxu0 %v2515
        %v2583 = vpop.f32.mrb[0].mxu0
        %v2584 = vadd.f32 0.0, %v2583
        %v2585 = vpop.f32.mrb[0].mxu0
        %2586 = vdwg.mxu0
        %v2588 = vsel %vm1238, %v2513, 0
        %2590 = vmatprep.subr.mxu0 0.0
        %2591 = vmatpush1.msra.mxu0 %v2335
        %2592 = vmatprep.subr.mxu0 0.0
        %2593 = vmatpush1.msra.mxu0 0.0
        %2594 = vmatprep.subr.mxu0 0.0
        %2595 = vmatpush1.msra.mxu0 0.0
        %2596 = vmatprep.subr.mxu0 0.0
        %2597 = vmatpush1.msra.mxu0 0.0
        %2598 = vmatprep.subr.mxu0 0.0
        %2599 = vmatpush1.msra.mxu0 0.0
        %2600 = vmatprep.subr.mxu0 0.0
        %2601 = vmatpush1.msra.mxu0 0.0
        %2602 = vmatprep.subr.mxu0 0.0
        %2603 = vmatpush1.msra.mxu0 0.0
        %2604 = vmatprep.subr.mxu0 0.0
        %2605 = vmatpush1.msra.mxu0 0.0
        %2606 = vmatprep.subr.mxu0 0.0
        %2607 = vmatpush1.msra.mxu0 0.0
        %2608 = vmatprep.subr.mxu0 0.0
        %2609 = vmatpush1.msra.mxu0 0.0
        %2610 = vmatprep.subr.mxu0 0.0
        %2611 = vmatpush1.msra.mxu0 0.0
        %2612 = vmatprep.subr.mxu0 0.0
        %2613 = vmatpush1.msra.mxu0 0.0
        %2614 = vmatprep.subr.mxu0 0.0
        %2615 = vmatpush1.msra.mxu0 0.0
        %2616 = vmatprep.subr.mxu0 0.0
        %2617 = vmatpush1.msra.mxu0 0.0
        %2618 = vmatprep.subr.mxu0 0.0
        %2619 = vmatpush1.msra.mxu0 0.0
        %2620 = vmatprep.subr.mxu0 0.0
        %2621 = vmatpush1.msra.mxu0 0.0
        %2622 = vmatprep.subr.mxu0 0.0
        %2623 = vmatpush1.msra.mxu0 0.0
        %2624 = vmatprep.subr.mxu0 0.0
        %2625 = vmatpush1.msra.mxu0 0.0
        %2626 = vmatprep.subr.mxu0 0.0
        %2627 = vmatpush1.msra.mxu0 0.0
        %2628 = vmatprep.subr.mxu0 0.0
        %2629 = vmatpush1.msra.mxu0 0.0
        %2630 = vmatprep.subr.mxu0 0.0
        %2631 = vmatpush1.msra.mxu0 0.0
        %2632 = vmatprep.subr.mxu0 0.0
        %2633 = vmatpush1.msra.mxu0 0.0
        %2634 = vmatprep.subr.mxu0 0.0
        %2635 = vmatpush1.msra.mxu0 0.0
        %2636 = vmatprep.subr.mxu0 0.0
        %2637 = vmatpush1.msra.mxu0 0.0
        %2638 = vmatprep.subr.mxu0 0.0
        %2639 = vmatpush1.msra.mxu0 0.0
        %2640 = vmatprep.subr.mxu0 0.0
        %2641 = vmatpush1.msra.mxu0 0.0
        %2642 = vmatprep.subr.mxu0 0.0
        %2643 = vmatpush1.msra.mxu0 0.0
        %2644 = vmatprep.subr.mxu0 0.0
        %2645 = vmatpush1.msra.mxu0 0.0
        %2646 = vmatprep.subr.mxu0 0.0
        %2647 = vmatpush1.msra.mxu0 0.0
        %2648 = vmatprep.subr.mxu0 0.0
        %2649 = vmatpush1.msra.mxu0 0.0
        %2650 = vmatprep.subr.mxu0 0.0
        %2651 = vmatpush1.msra.mxu0 0.0
        %2652 = vmatprep.subr.mxu0 0.0
        %2653 = vmatpush1.msra.mxu0 0.0
        %2654 = vmatprep.mubr.f32.mxu0 0.0
        %2655 = vmatmul.mubr.f32.gmra.mrb[0].mxu0 %v2588
        %v2656 = vpop.f32.mrb[0].mxu0
        %v2657 = vadd.f32 0.0, %v2656
        %v2658 = vpop.f32.mrb[0].mxu0
        %2659 = vdwg.mxu0
        %s2660 = scalar_lea.vmem %s8, 32
        %v2661 = vld [vmem:[%s2660] sm:$0xff]
        %v2662 = vld [vmem:[%s2660 + $0x8] sm:$0xff]
        %v2663 = vld [vmem:[%s2660 + $0x10] sm:$0xff]
        %v2664 = vld [vmem:[%s2660 + $0x18] sm:$0xff]
        %v2666 = vsel %vm1085, %v2584, 0
        %2668 = vmatprep.subr.mxu0 0.0
        %2669 = vmatpush1.msra.mxu0 %v2661
        %2670 = vmatprep.subr.mxu0 0.0
        %2671 = vmatpush1.msra.mxu0 %v2662
        %2672 = vmatprep.subr.mxu0 0.0
        %2673 = vmatpush1.msra.mxu0 0.0
        %2674 = vmatprep.subr.mxu0 0.0
        %2675 = vmatpush1.msra.mxu0 0.0
        %2676 = vmatprep.subr.mxu0 0.0
        %2677 = vmatpush1.msra.mxu0 0.0
        %2678 = vmatprep.subr.mxu0 0.0
        %2679 = vmatpush1.msra.mxu0 0.0
        %2680 = vmatprep.subr.mxu0 0.0
        %2681 = vmatpush1.msra.mxu0 0.0
        %2682 = vmatprep.subr.mxu0 0.0
        %2683 = vmatpush1.msra.mxu0 0.0
        %2684 = vmatprep.subr.mxu0 0.0
        %2685 = vmatpush1.msra.mxu0 0.0
        %2686 = vmatprep.subr.mxu0 0.0
        %2687 = vmatpush1.msra.mxu0 0.0
        %2688 = vmatprep.subr.mxu0 0.0
        %2689 = vmatpush1.msra.mxu0 0.0
        %2690 = vmatprep.subr.mxu0 0.0
        %2691 = vmatpush1.msra.mxu0 0.0
        %2692 = vmatprep.subr.mxu0 0.0
        %2693 = vmatpush1.msra.mxu0 0.0
        %2694 = vmatprep.subr.mxu0 0.0
        %2695 = vmatpush1.msra.mxu0 0.0
        %2696 = vmatprep.subr.mxu0 0.0
        %2697 = vmatpush1.msra.mxu0 0.0
        %2698 = vmatprep.subr.mxu0 0.0
        %2699 = vmatpush1.msra.mxu0 0.0
        %2700 = vmatprep.subr.mxu0 0.0
        %2701 = vmatpush1.msra.mxu0 0.0
        %2702 = vmatprep.subr.mxu0 0.0
        %2703 = vmatpush1.msra.mxu0 0.0
        %2704 = vmatprep.subr.mxu0 0.0
        %2705 = vmatpush1.msra.mxu0 0.0
        %2706 = vmatprep.subr.mxu0 0.0
        %2707 = vmatpush1.msra.mxu0 0.0
        %2708 = vmatprep.subr.mxu0 0.0
        %2709 = vmatpush1.msra.mxu0 0.0
        %2710 = vmatprep.subr.mxu0 0.0
        %2711 = vmatpush1.msra.mxu0 0.0
        %2712 = vmatprep.subr.mxu0 0.0
        %2713 = vmatpush1.msra.mxu0 0.0
        %2714 = vmatprep.subr.mxu0 0.0
        %2715 = vmatpush1.msra.mxu0 0.0
        %2716 = vmatprep.subr.mxu0 0.0
        %2717 = vmatpush1.msra.mxu0 0.0
        %2718 = vmatprep.subr.mxu0 0.0
        %2719 = vmatpush1.msra.mxu0 0.0
        %2720 = vmatprep.subr.mxu0 0.0
        %2721 = vmatpush1.msra.mxu0 0.0
        %2722 = vmatprep.subr.mxu0 0.0
        %2723 = vmatpush1.msra.mxu0 0.0
        %2724 = vmatprep.subr.mxu0 0.0
        %2725 = vmatpush1.msra.mxu0 0.0
        %2726 = vmatprep.subr.mxu0 0.0
        %2727 = vmatpush1.msra.mxu0 0.0
        %2728 = vmatprep.subr.mxu0 0.0
        %2729 = vmatpush1.msra.mxu0 0.0
        %2730 = vmatprep.subr.mxu0 0.0
        %2731 = vmatpush1.msra.mxu0 0.0
        %2732 = vmatprep.mubr.f32.mxu0 0.0
        %2733 = vmatmul.mubr.f32.gmra.mrb[0].mxu0 %v2666
        %v2734 = vpop.f32.mrb[0].mxu0
        %v2735 = vadd.f32 0.0, %v2734
        %v2736 = vpop.f32.mrb[0].mxu0
        %2737 = vdwg.mxu0
        %v2739 = vsel %vm1085, %v2657, 0
        %2741 = vmatprep.subr.mxu0 0.0
        %2742 = vmatpush1.msra.mxu0 %v2663
        %2743 = vmatprep.subr.mxu0 0.0
        %2744 = vmatpush1.msra.mxu0 %v2664
        %2745 = vmatprep.subr.mxu0 0.0
        %2746 = vmatpush1.msra.mxu0 0.0
        %2747 = vmatprep.subr.mxu0 0.0
        %2748 = vmatpush1.msra.mxu0 0.0
        %2749 = vmatprep.subr.mxu0 0.0
        %2750 = vmatpush1.msra.mxu0 0.0
        %2751 = vmatprep.subr.mxu0 0.0
        %2752 = vmatpush1.msra.mxu0 0.0
        %2753 = vmatprep.subr.mxu0 0.0
        %2754 = vmatpush1.msra.mxu0 0.0
        %2755 = vmatprep.subr.mxu0 0.0
        %2756 = vmatpush1.msra.mxu0 0.0
        %2757 = vmatprep.subr.mxu0 0.0
        %2758 = vmatpush1.msra.mxu0 0.0
        %2759 = vmatprep.subr.mxu0 0.0
        %2760 = vmatpush1.msra.mxu0 0.0
        %2761 = vmatprep.subr.mxu0 0.0
        %2762 = vmatpush1.msra.mxu0 0.0
        %2763 = vmatprep.subr.mxu0 0.0
        %2764 = vmatpush1.msra.mxu0 0.0
        %2765 = vmatprep.subr.mxu0 0.0
        %2766 = vmatpush1.msra.mxu0 0.0
        %2767 = vmatprep.subr.mxu0 0.0
        %2768 = vmatpush1.msra.mxu0 0.0
        %2769 = vmatprep.subr.mxu0 0.0
        %2770 = vmatpush1.msra.mxu0 0.0
        %2771 = vmatprep.subr.mxu0 0.0
        %2772 = vmatpush1.msra.mxu0 0.0
        %2773 = vmatprep.subr.mxu0 0.0
        %2774 = vmatpush1.msra.mxu0 0.0
        %2775 = vmatprep.subr.mxu0 0.0
        %2776 = vmatpush1.msra.mxu0 0.0
        %2777 = vmatprep.subr.mxu0 0.0
        %2778 = vmatpush1.msra.mxu0 0.0
        %2779 = vmatprep.subr.mxu0 0.0
        %2780 = vmatpush1.msra.mxu0 0.0
        %2781 = vmatprep.subr.mxu0 0.0
        %2782 = vmatpush1.msra.mxu0 0.0
        %2783 = vmatprep.subr.mxu0 0.0
        %2784 = vmatpush1.msra.mxu0 0.0
        %2785 = vmatprep.subr.mxu0 0.0
        %2786 = vmatpush1.msra.mxu0 0.0
        %2787 = vmatprep.subr.mxu0 0.0
        %2788 = vmatpush1.msra.mxu0 0.0
        %2789 = vmatprep.subr.mxu0 0.0
        %2790 = vmatpush1.msra.mxu0 0.0
        %2791 = vmatprep.subr.mxu0 0.0
        %2792 = vmatpush1.msra.mxu0 0.0
        %2793 = vmatprep.subr.mxu0 0.0
        %2794 = vmatpush1.msra.mxu0 0.0
        %2795 = vmatprep.subr.mxu0 0.0
        %2796 = vmatpush1.msra.mxu0 0.0
        %2797 = vmatprep.subr.mxu0 0.0
        %2798 = vmatpush1.msra.mxu0 0.0
        %2799 = vmatprep.subr.mxu0 0.0
        %2800 = vmatpush1.msra.mxu0 0.0
        %2801 = vmatprep.subr.mxu0 0.0
        %2802 = vmatpush1.msra.mxu0 0.0
        %2803 = vmatprep.subr.mxu0 0.0
        %2804 = vmatpush1.msra.mxu0 0.0
        %2805 = vmatprep.mubr.f32.mxu0 0.0
        %2806 = vmatmul.mubr.f32.gmra.mrb[0].mxu0 %v2739
        %v2807 = vpop.f32.mrb[0].mxu0
        %v2808 = vadd.f32 0.0, %v2807
        %v2809 = vpop.f32.mrb[0].mxu0
        %2810 = vdwg.mxu0
        %v2811 = vsel %vm609, %v2735, 0.0
        %v2812 = vsel %vm609, %v2808, 0.0
        %v2813 = vadd.f32 %v2811, %v2812
        %s2814 = scalar_lea.vmem %s9, 1
        %v2815 = vld [vmem:[%s2814] sm:$0x1]
        %v2817 = vlaneseq
        %v2818 = vshrl.u32 %v2817, 7
        %v2819 = vsub.s32 0, %v2818
        %v2820 = vrot.slane %v2815, %v2819
        %v2822 = vadd.f32 %v2813, %v2820
        %v2823 = vadd.f32 %v2822, %v1842
        %s2824 = scalar_lea.vmem %s10, 1
        %v2825 = vld [vmem:[%s2824] sm:$0x1]
        %s2826 = scalar_lea.vmem %s11, 1
        %v2827 = vld [vmem:[%s2826] sm:$0x1]
        %v2828 = vsel %vm609, %v2823, 0.0
        %2829 = vadd.xlane.f32.xlu0 %v2828
        %v2830 = vpop.xlane.xlu0 %2829
        %v2831 = vmul.f32 %v2830, %v1574
        %v2832 = vsub.f32 %v2823, %v2831
        %v2833 = vmul.f32 %v2832, %v2832
        %v2834 = vsel %vm609, %v2833, 0.0
        %2835 = vadd.xlane.f32.xlu0 %v2834
        %v2836 = vpop.xlane.xlu0 %2835
        %v2837 = vmul.f32 %v2836, %v1574
        %v2838 = vadd.f32 %v2837, 1e-12
        %v2839 = vrsqrt.pop %v2838
        %v2840 = vmul.f32 %v2832, %v2839
        %v2842 = vlaneseq
        %v2843 = vshrl.u32 %v2842, 7
        %v2844 = vsub.s32 0, %v2843
        %v2845 = vrot.slane %v2825, %v2844
        %v2847 = vmul.f32 %v2845, %v2840
        %v2849 = vlaneseq
        %v2850 = vshrl.u32 %v2849, 7
        %v2851 = vsub.s32 0, %v2850
        %v2852 = vrot.slane %v2827, %v2851
        %v2854 = vadd.f32 %v2847, %v2852
        %s2855 = scalar_lea.vmem %s12, 32
        %v2856 = vld [vmem:[%s2855] sm:$0xff]
        %v2857 = vld [vmem:[%s2855 + $0x8] sm:$0xff]
        %v2858 = vld [vmem:[%s2855 + $0x10] sm:$0xff]
        %v2859 = vld [vmem:[%s2855 + $0x18] sm:$0xff]
        %s2860 = scalar_lea.vmem %s13, 1
        %v2861 = vld [vmem:[%s2860] sm:$0x1]
        %v2863 = vlaneseq
        %v2864 = vshrl.u32 %v2863, 7
        %v2865 = vsub.s32 0, %v2864
        %v2866 = vrot.slane %v2861, %v2865
        %v2869 = vsel %vm609, %v2854, 0
        %2871 = vmatprep.subr.mxu0 0.0
        %2872 = vmatpush1.msra.mxu0 %v2856
        %2873 = vmatprep.subr.mxu0 0.0
        %2874 = vmatpush1.msra.mxu0 %v2857
        %2875 = vmatprep.subr.mxu0 0.0
        %2876 = vmatpush1.msra.mxu0 %v2858
        %2877 = vmatprep.subr.mxu0 0.0
        %2878 = vmatpush1.msra.mxu0 %v2859
        %2879 = vmatprep.subr.mxu0 0.0
        %2880 = vmatpush1.msra.mxu0 0.0
        %2881 = vmatprep.subr.mxu0 0.0
        %2882 = vmatpush1.msra.mxu0 0.0
        %2883 = vmatprep.subr.mxu0 0.0
        %2884 = vmatpush1.msra.mxu0 0.0
        %2885 = vmatprep.subr.mxu0 0.0
        %2886 = vmatpush1.msra.mxu0 0.0
        %2887 = vmatprep.subr.mxu0 0.0
        %2888 = vmatpush1.msra.mxu0 0.0
        %2889 = vmatprep.subr.mxu0 0.0
        %2890 = vmatpush1.msra.mxu0 0.0
        %2891 = vmatprep.subr.mxu0 0.0
        %2892 = vmatpush1.msra.mxu0 0.0
        %2893 = vmatprep.subr.mxu0 0.0
        %2894 = vmatpush1.msra.mxu0 0.0
        %2895 = vmatprep.subr.mxu0 0.0
        %2896 = vmatpush1.msra.mxu0 0.0
        %2897 = vmatprep.subr.mxu0 0.0
        %2898 = vmatpush1.msra.mxu0 0.0
        %2899 = vmatprep.subr.mxu0 0.0
        %2900 = vmatpush1.msra.mxu0 0.0
        %2901 = vmatprep.subr.mxu0 0.0
        %2902 = vmatpush1.msra.mxu0 0.0
        %2903 = vmatprep.subr.mxu0 0.0
        %2904 = vmatpush1.msra.mxu0 0.0
        %2905 = vmatprep.subr.mxu0 0.0
        %2906 = vmatpush1.msra.mxu0 0.0
        %2907 = vmatprep.subr.mxu0 0.0
        %2908 = vmatpush1.msra.mxu0 0.0
        %2909 = vmatprep.subr.mxu0 0.0
        %2910 = vmatpush1.msra.mxu0 0.0
        %2911 = vmatprep.subr.mxu0 0.0
        %2912 = vmatpush1.msra.mxu0 0.0
        %2913 = vmatprep.subr.mxu0 0.0
        %2914 = vmatpush1.msra.mxu0 0.0
        %2915 = vmatprep.subr.mxu0 0.0
        %2916 = vmatpush1.msra.mxu0 0.0
        %2917 = vmatprep.subr.mxu0 0.0
        %2918 = vmatpush1.msra.mxu0 0.0
        %2919 = vmatprep.subr.mxu0 0.0
        %2920 = vmatpush1.msra.mxu0 0.0
        %2921 = vmatprep.subr.mxu0 0.0
        %2922 = vmatpush1.msra.mxu0 0.0
        %2923 = vmatprep.subr.mxu0 0.0
        %2924 = vmatpush1.msra.mxu0 0.0
        %2925 = vmatprep.subr.mxu0 0.0
        %2926 = vmatpush1.msra.mxu0 0.0
        %2927 = vmatprep.subr.mxu0 0.0
        %2928 = vmatpush1.msra.mxu0 0.0
        %2929 = vmatprep.subr.mxu0 0.0
        %2930 = vmatpush1.msra.mxu0 0.0
        %2931 = vmatprep.subr.mxu0 0.0
        %2932 = vmatpush1.msra.mxu0 0.0
        %2933 = vmatprep.subr.mxu0 0.0
        %2934 = vmatpush1.msra.mxu0 0.0
        %2935 = vmatprep.mubr.f32.mxu0 0.0
        %2936 = vmatmul.mubr.f32.gmra.mrb[0].mxu0 %v2869
        %v2937 = vpop.f32.mrb[0].mxu0
        %v2938 = vadd.f32 %v2866, %v2937
        %v2939 = vpop.f32.mrb[0].mxu0
        %2940 = vdwg.mxu0
        %v2941 = vmul.f32 %v2938, 0.5
        %v2942 = vmul.f32 %v2938, 0.70710677
        %v2943 = vand.u32 2147483647, %v2942
        %v2944 = vmul.f32 %v2943, 0.5
        %v2945 = vadd.f32 %v2944, 1.0
        %v2946 = vrcp.pop %v2945
        %v2947 = vmul.f32 1.0, %v2946
        %v2948 = vsub.f32 0.0, %v2943
        %v2949 = vmul.f32 %v2948, %v2943
        %v2950 = vsub.f32 %v2949, 1.2655122
        %v2951 = vmul.f32 %v2947, 0.17087276
        %v2952 = vadd.f32 %v2951, -0.82215226
        %v2953 = vmul.f32 %v2947, %v2952
        %v2954 = vadd.f32 %v2953, 1.4885159
        %v2955 = vmul.f32 %v2947, %v2954
        %v2956 = vadd.f32 %v2955, -1.135204
        %v2957 = vmul.f32 %v2947, %v2956
        %v2958 = vadd.f32 %v2957, 0.27886808
        %v2959 = vmul.f32 %v2947, %v2958
        %v2960 = vadd.f32 %v2959, -0.18628806
        %v2961 = vmul.f32 %v2947, %v2960
        %v2962 = vadd.f32 %v2961, 0.09678418
        %v2963 = vmul.f32 %v2947, %v2962
        %v2964 = vadd.f32 %v2963, 0.37409195
        %v2965 = vmul.f32 %v2947, %v2964
        %v2966 = vadd.f32 %v2965, 1.0000237
        %v2967 = vmul.f32 %v2947, %v2966
        %v2968 = vadd.f32 %v2950, %v2967
        %v2969 = vmul.f32 %v2968, 1.442695
        %v2970 = vpow.pop %v2969
        %v2971 = vmul.f32 %v2947, %v2970
        %vm2972 = vcmp.ge.f32.partialorder %v2942, 0.0
        %v2973 = vsub.f32 1.0, %v2971
        %v2974 = vsub.f32 %v2971, 1.0
        %v2975 = vsel %vm2972, %v2973, %v2974
        %v2976 = vadd.f32 %v2975, 1.0
        %v2977 = vmul.f32 %v2941, %v2976
        %s2978 = scalar_lea.vmem %s14, 128
        %v2979 = vld [vmem:[%s2978] sm:$0xff]
        %v2980 = vld [vmem:[%s2978 + $0x8] sm:$0xff]
        %v2981 = vld [vmem:[%s2978 + $0x10] sm:$0xff]
        %v2982 = vld [vmem:[%s2978 + $0x18] sm:$0xff]
        %v2983 = vld [vmem:[%s2978 + $0x20] sm:$0xff]
        %v2984 = vld [vmem:[%s2978 + $0x28] sm:$0xff]
        %v2985 = vld [vmem:[%s2978 + $0x30] sm:$0xff]
        %v2986 = vld [vmem:[%s2978 + $0x38] sm:$0xff]
        %v2987 = vld [vmem:[%s2978 + $0x40] sm:$0xff]
        %v2988 = vld [vmem:[%s2978 + $0x48] sm:$0xff]
        %v2989 = vld [vmem:[%s2978 + $0x50] sm:$0xff]
        %v2990 = vld [vmem:[%s2978 + $0x58] sm:$0xff]
        %v2991 = vld [vmem:[%s2978 + $0x60] sm:$0xff]
        %v2992 = vld [vmem:[%s2978 + $0x68] sm:$0xff]
        %v2993 = vld [vmem:[%s2978 + $0x70] sm:$0xff]
        %v2994 = vld [vmem:[%s2978 + $0x78] sm:$0xff]
        %s2995 = scalar_lea.vmem %s15, 1
        %v2996 = vld [vmem:[%s2995] sm:$0x1]
        %v2998 = vlaneseq
        %v2999 = vshrl.u32 %v2998, 7
        %v3000 = vsub.s32 0, %v2999
        %v3001 = vrot.slane %v2996, %v3000
        %3003 = vmatprep.subr.mxu0 0.0
        %3004 = vmatpush1.msra.mxu0 %v2979
        %3005 = vmatprep.subr.mxu0 0.0
        %3006 = vmatpush1.msra.mxu0 %v2980
        %3007 = vmatprep.subr.mxu0 0.0
        %3008 = vmatpush1.msra.mxu0 %v2981
        %3009 = vmatprep.subr.mxu0 0.0
        %3010 = vmatpush1.msra.mxu0 %v2982
        %3011 = vmatprep.subr.mxu0 0.0
        %3012 = vmatpush1.msra.mxu0 %v2983
        %3013 = vmatprep.subr.mxu0 0.0
        %3014 = vmatpush1.msra.mxu0 %v2984
        %3015 = vmatprep.subr.mxu0 0.0
        %3016 = vmatpush1.msra.mxu0 %v2985
        %3017 = vmatprep.subr.mxu0 0.0
        %3018 = vmatpush1.msra.mxu0 %v2986
        %3019 = vmatprep.subr.mxu0 0.0
        %3020 = vmatpush1.msra.mxu0 %v2987
        %3021 = vmatprep.subr.mxu0 0.0
        %3022 = vmatpush1.msra.mxu0 %v2988
        %3023 = vmatprep.subr.mxu0 0.0
        %3024 = vmatpush1.msra.mxu0 %v2989
        %3025 = vmatprep.subr.mxu0 0.0
        %3026 = vmatpush1.msra.mxu0 %v2990
        %3027 = vmatprep.subr.mxu0 0.0
        %3028 = vmatpush1.msra.mxu0 %v2991
        %3029 = vmatprep.subr.mxu0 0.0
        %3030 = vmatpush1.msra.mxu0 %v2992
        %3031 = vmatprep.subr.mxu0 0.0
        %3032 = vmatpush1.msra.mxu0 %v2993
        %3033 = vmatprep.subr.mxu0 0.0
        %3034 = vmatpush1.msra.mxu0 %v2994
        %3035 = vmatprep.subr.mxu0 0.0
        %3036 = vmatpush1.msra.mxu0 0.0
        %3037 = vmatprep.subr.mxu0 0.0
        %3038 = vmatpush1.msra.mxu0 0.0
        %3039 = vmatprep.subr.mxu0 0.0
        %3040 = vmatpush1.msra.mxu0 0.0
        %3041 = vmatprep.subr.mxu0 0.0
        %3042 = vmatpush1.msra.mxu0 0.0
        %3043 = vmatprep.subr.mxu0 0.0
        %3044 = vmatpush1.msra.mxu0 0.0
        %3045 = vmatprep.subr.mxu0 0.0
        %3046 = vmatpush1.msra.mxu0 0.0
        %3047 = vmatprep.subr.mxu0 0.0
        %3048 = vmatpush1.msra.mxu0 0.0
        %3049 = vmatprep.subr.mxu0 0.0
        %3050 = vmatpush1.msra.mxu0 0.0
        %3051 = vmatprep.subr.mxu0 0.0
        %3052 = vmatpush1.msra.mxu0 0.0
        %3053 = vmatprep.subr.mxu0 0.0
        %3054 = vmatpush1.msra.mxu0 0.0
        %3055 = vmatprep.subr.mxu0 0.0
        %3056 = vmatpush1.msra.mxu0 0.0
        %3057 = vmatprep.subr.mxu0 0.0
        %3058 = vmatpush1.msra.mxu0 0.0
        %3059 = vmatprep.subr.mxu0 0.0
        %3060 = vmatpush1.msra.mxu0 0.0
        %3061 = vmatprep.subr.mxu0 0.0
        %3062 = vmatpush1.msra.mxu0 0.0
        %3063 = vmatprep.subr.mxu0 0.0
        %3064 = vmatpush1.msra.mxu0 0.0
        %3065 = vmatprep.subr.mxu0 0.0
        %3066 = vmatpush1.msra.mxu0 0.0
        %3067 = vmatprep.mubr.f32.mxu0 0.0
        %3068 = vmatmul.mubr.f32.gmra.mrb[0].mxu0 %v2977
        %v3069 = vpop.f32.mrb[0].mxu0
        %v3070 = vadd.f32 %v3001, %v3069
        %v3071 = vpop.f32.mrb[0].mxu0
        %3072 = vdwg.mxu0
        %v3073 = vadd.f32 %v3070, %v2854
        %s3074 = scalar_lea.vmem %s16, 1
        %v3075 = vld [vmem:[%s3074] sm:$0x1]
        %s3076 = scalar_lea.vmem %s17, 1
        %v3077 = vld [vmem:[%s3076] sm:$0x1]
        %v3078 = vsel %vm609, %v3073, 0.0
        %3079 = vadd.xlane.f32.xlu0 %v3078
        %v3080 = vpop.xlane.xlu0 %3079
        %v3081 = vmul.f32 %v3080, %v1574
        %v3082 = vsub.f32 %v3073, %v3081
        %v3083 = vmul.f32 %v3082, %v3082
        %v3084 = vsel %vm609, %v3083, 0.0
        %3085 = vadd.xlane.f32.xlu0 %v3084
        %v3086 = vpop.xlane.xlu0 %3085
        %v3087 = vmul.f32 %v3086, %v1574
        %v3088 = vadd.f32 %v3087, 1e-12
        %v3089 = vrsqrt.pop %v3088
        %v3090 = vmul.f32 %v3082, %v3089
        %v3092 = vlaneseq
        %v3093 = vshrl.u32 %v3092, 7
        %v3094 = vsub.s32 0, %v3093
        %v3095 = vrot.slane %v3075, %v3094
        %v3097 = vmul.f32 %v3095, %v3090
        %v3099 = vlaneseq
        %v3100 = vshrl.u32 %v3099, 7
        %v3101 = vsub.s32 0, %v3100
        %v3102 = vrot.slane %v3077, %v3101
        %v3104 = vadd.f32 %v3097, %v3102
        %3105 = vst.msk [vmem:[%s577] sm:$0xff] %vm609, %v3104
        %s3106 = sand.u32 %s428, 1
        %s3107 = scalar_lea.sflag [#allocation3], %s3106
        %s3108 = sand.u32 %s428, 1
        %s3109 = smul.addr %s3108, 8
        %s3110 = scalar_lea.vmem [#allocation2], %s3109
        // Predicated region
        $region93: #{tpu_custom_call.1} parent=91 // pred_check
          %p3111 = pneg %p438
        $region94: #{tpu_custom_call.1} parent=91 // pred_check_branch
          %3113 = sbr.rel (%p3111) target = $region96
        $region95: #{tpu_custom_call.1} parent=91 // pred_region
          %s3115 = ssub.s32 128, 128
          %3116 = vsyncadd %s3107, %s3115
          %s3117 = smul.addr %s32, 128
          %s3118 = scalar_lea.hbm %s18, %s3117
          %s3120 = sshll.u32 %s3110, 4
          %s3121 = int_to_ptr.vmem [resolvable:$true] %s3120
          %3123 = dma.vmem_to_hbm [thread:$0]  %s3121, 128, %s3118, %s3107
        $region96: #{tpu_custom_call.1} parent=91 // pred_fallthru
          _
      $region92: #{tpu_custom_call.1} parent=5 // pred_fallthru
        _
      %p3124 = scmp.le.s32.totalorder 2, %s27
      // Predicated region
      $region97: #{tpu_custom_call.1} parent=5 // pred_check
        %p3125 = pneg %p3124
      $region98: #{tpu_custom_call.1} parent=5 // pred_check_branch
        %3127 = sbr.rel (%p3125) target = $region100
      $region99: #{tpu_custom_call.1} parent=5 // pred_region
        %s3128 = ssub.s32 %s27, 2
        // Predicated region
        $region101: #{tpu_custom_call.1} parent=99 // pred_check
          %p3129 = pneg %p444
        $region102: #{tpu_custom_call.1} parent=99 // pred_check_branch
          %3131 = sbr.rel (%p3129) target = $region104
        $region103: #{tpu_custom_call.1} parent=99 // pred_region
          %s3132 = sand.u32 %s429, 1
          %s3133 = scalar_lea.sflag [#allocation3], %s3132
          %s3134 = sand.u32 %s429, 1
          %s3135 = smul.addr %s3134, 8
          %s3136 = scalar_lea.vmem [#allocation2], %s3135
          %3137 = dma.done %s3133, 128
        $region104: #{tpu_custom_call.1} parent=99 // pred_fallthru
          _
      $region100: #{tpu_custom_call.1} parent=5 // pred_fallthru
        _
    $region6: #{tpu_custom_call.1} parent=1 // loop_footer
      %s31 = sadd.s32 1, %s27
    $region7: #{tpu_custom_call.1} parent=1 // loop_footer_branch
      %26 = sbr.rel target = $region3
    $region8: #{tpu_custom_call.1} parent=1 // loop_exit
      _
    %3138 = vsyncpa [#allocation3], 1
    %s3139 = scalar_lea.sflag [#allocation3], 1
    %3140 = vsyncpa %s3139, 1

</llo_original>
